<compile_context>
chip_gen: v7x
topology: tpu7x:2x2x1
jax: 0.10.0
libtpu: 0.0.40
codegen_flags: <defaults>
</compile_context>

<pallas_src>
import jax
import jax.numpy as jnp
from jax.experimental import pallas as pl
from jax.experimental.pallas import tpu as pltpu

IN_DIM = 28
H1, H2, H3 = 128, 256, 512
MAX_OBS_POINTS = 1400          # true output dim of the last Linear
OUT_PAD = 1408                 # 11 * 128 -> full MXU N-tiles for the w4 GEMM
MAX_TB = 512                   # max batch tile (rows per grid step)


def _round_up(n, m):
    return ((n + m - 1) // m) * m


def _batch_tiling(B):
    """Pick (TB, B_pad): TB a multiple of 8, <= MAX_TB, and grid >= 2 whenever
    B > 8 so both v7x TensorCores get work via the "parallel" batch axis."""
    B8 = _round_up(B, 8)
    if B8 <= 8:
        return 8, 8
    tb = min(MAX_TB, _round_up((B8 + 1) // 2, 8))   # aim for >= 2 grid steps
    b_pad = _round_up(B8, tb)
    return tb, b_pad


def decoder_kernel(alpha_ref,                      # SMEM (3,)  PReLU slopes (f32)
                   x_ref,                          # (TB, 28)        f32
                   w1_ref, b1_ref,                 # (28,128)  bf16, (1,128)  f32
                   w2_ref, b2_ref,                 # (128,256) bf16, (1,256)  f32
                   w3_ref, b3_ref,                 # (256,512) bf16, (1,512)  f32
                   w4_ref, b4_ref,                 # (512,1408) bf16,(1,1408) f32
                   o_ref):                         # (TB, 1400)
    def prelu(h, a):
        # PReLU(x) = max(0,x) + a * min(0,x), scalar slope a (f32 on the VPU)
        return jnp.where(h > 0, h, a * h)

    # bf16 MXU operands, f32 accumulation; bias/activation math kept in f32.
    h = jnp.dot(x_ref[...].astype(jnp.bfloat16), w1_ref[...],
                preferred_element_type=jnp.float32) + b1_ref[...]
    h = prelu(h, alpha_ref[0])
    h = jnp.dot(h.astype(jnp.bfloat16), w2_ref[...],
                preferred_element_type=jnp.float32) + b2_ref[...]
    h = prelu(h, alpha_ref[1])
    h = jnp.dot(h.astype(jnp.bfloat16), w3_ref[...],
                preferred_element_type=jnp.float32) + b3_ref[...]
    h = prelu(h, alpha_ref[2])
    h = jnp.dot(h.astype(jnp.bfloat16), w4_ref[...],
                preferred_element_type=jnp.float32) + b4_ref[...]
    # Drop the 1400 -> 1408 matmul padding at the store: o_ref is (TB, 1400)
    # (block last dim == full array dim), so no post-kernel slice is needed.
    o_ref[...] = h[:, :MAX_OBS_POINTS].astype(o_ref.dtype)


def prepare_params(params):
    """One-time parameter prep, hoisted out of the forward path:
    bf16 weights (halves HBM->VMEM traffic, MXU-native), last layer padded
    1400 -> 1408 with zeros so the big GEMM has full MXU N-tiles."""
    w1, b1, w2, b2, w3, b3, w4, b4, alphas = params
    pad = OUT_PAD - MAX_OBS_POINTS
    return (
        w1.astype(jnp.bfloat16), b1.astype(jnp.float32),
        w2.astype(jnp.bfloat16), b2.astype(jnp.float32),
        w3.astype(jnp.bfloat16), b3.astype(jnp.float32),
        jnp.pad(w4, ((0, 0), (0, pad))).astype(jnp.bfloat16),
        jnp.pad(b4.astype(jnp.float32), ((0, 0), (0, pad))),
        alphas.astype(jnp.float32),
    )


def decoder_forward(x, prepared_params, out_dtype=jnp.float32):
    """x: (B, 28) float32 -> (B, 1400) out_dtype.

    Use out_dtype=jnp.bfloat16 on writeback-bound chips (v6e) to halve output
    HBM traffic; numerics are already bf16-limited by the matmul operands.
    """
    w1, b1, w2, b2, w3, b3, w4p, b4p, alphas = prepared_params
    B = x.shape[0]

    TB, B_pad = _batch_tiling(B)
    if B_pad != B:
        x = jnp.pad(x, ((0, B_pad - B), (0, 0)))

    rep = lambda shape: pl.BlockSpec(shape, lambda i: (0, 0))  # resident param

    out = pl.pallas_call(
        decoder_kernel,
        out_shape=jax.ShapeDtypeStruct((B_pad, MAX_OBS_POINTS), out_dtype),
        grid=(B_pad // TB,),
        in_specs=[
            pl.BlockSpec(memory_space=pltpu.SMEM),          # PReLU alphas
            pl.BlockSpec((TB, IN_DIM), lambda i: (i, 0)),   # x tile
            rep((IN_DIM, H1)), rep((1, H1)),
            rep((H1, H2)),     rep((1, H2)),
            rep((H2, H3)),     rep((1, H3)),
            rep((H3, OUT_PAD)), rep((1, OUT_PAD)),
        ],
        out_specs=pl.BlockSpec((TB, MAX_OBS_POINTS), lambda i: (i, 0)),
        compiler_params=pltpu.CompilerParams(
            dimension_semantics=("parallel",),
            vmem_limit_bytes=32 * 1024 * 1024),
    )(alphas, x, w1, b1, w2, b2, w3, b3, w4p, b4p)

    # Row-only slice, and only when B isn't tile-aligned (no column slice).
    return out[:B] if B_pad != B else out


def init_params(key):
    """Deterministic synthetic parameters (PyTorch-Linear-like scaling)."""
    dims = [(IN_DIM, H1), (H1, H2), (H2, H3), (H3, MAX_OBS_POINTS)]
    params = []
    keys = jax.random.split(key, 2 * len(dims))
    for i, (fan_in, fan_out) in enumerate(dims):
        bound = 1.0 / jnp.sqrt(fan_in)
        w = jax.random.uniform(keys[2 * i], (fan_in, fan_out),
                               jnp.float32, -bound, bound)
        b = jax.random.uniform(keys[2 * i + 1], (1, fan_out),
                               jnp.float32, -bound, bound)
        params += [w, b]
    alphas = jnp.full((3,), 0.25, jnp.float32)  # 3 PReLU layers, default slope
    params.append(alphas)
    return tuple(params)


def decoder_reference(x, params):
    """Pure-JAX f32 reference for validation."""
    w1, b1, w2, b2, w3, b3, w4, b4, a = params
    prelu = lambda h, s: jnp.where(h > 0, h, s * h)
    h = prelu(x @ w1 + b1, a[0])
    h = prelu(h @ w2 + b2, a[1])
    h = prelu(h @ w3 + b3, a[2])
    return h @ w4 + b4


if __name__ == "__main__":
    key = jax.random.PRNGKey(0)
    pkey, xkey = jax.random.split(key)
    params = init_params(pkey)
    prepared = prepare_params(params)   # one-time weight prep (hoisted)

    batch = 2
    x = jax.random.normal(xkey, (batch, IN_DIM), jnp.float32)

    out = jax.block_until_ready(decoder_forward(x, prepared))

    ref = decoder_reference(x, params)
    assert out.shape == (batch, MAX_OBS_POINTS), out.shape
    # bf16 matmul operands with f32 accumulation -> loosened tolerance vs f32 ref
    assert jnp.allclose(out, ref, atol=3e-2, rtol=3e-2), \
        float(jnp.max(jnp.abs(out - ref)))

    print("KERNEL_OK")
</pallas_src>

<mosaic_0001>
module attributes {stable_mosaic.version = 11 : i64} {
  func.func @decoder_kernel(%arg0: i32, %arg1: memref<3xf32, #tpu.memory_space<smem>>, %arg2: memref<8x28xf32, #tpu.memory_space<vmem>>, %arg3: memref<28x128xbf16, #tpu.memory_space<vmem>>, %arg4: memref<1x128xf32, #tpu.memory_space<vmem>>, %arg5: memref<128x256xbf16, #tpu.memory_space<vmem>>, %arg6: memref<1x256xf32, #tpu.memory_space<vmem>>, %arg7: memref<256x512xbf16, #tpu.memory_space<vmem>>, %arg8: memref<1x512xf32, #tpu.memory_space<vmem>>, %arg9: memref<512x1408xbf16, #tpu.memory_space<vmem>>, %arg10: memref<1x1408xf32, #tpu.memory_space<vmem>>, %arg11: memref<8x1400xf32, #tpu.memory_space<vmem>>) attributes {dimension_semantics = [#tpu.dimension_semantics<parallel>], iteration_bounds = array<i64: 1>, scalar_prefetch = 0 : i64, scratch_operands = 0 : i64, tpu.core_type = #tpu.core_type<tc>, window_params = [{transform_indices = @transform_0, window_bounds = array<i64: 3>}, {transform_indices = @transform_1, window_bounds = array<i64: 8, 28>}, {pipeline_mode = #tpu.pipeline_mode<synchronous>, transform_indices = @transform_2, window_bounds = array<i64: 28, 128>}, {pipeline_mode = #tpu.pipeline_mode<synchronous>, transform_indices = @transform_3, window_bounds = array<i64: 1, 128>}, {pipeline_mode = #tpu.pipeline_mode<synchronous>, transform_indices = @transform_4, window_bounds = array<i64: 128, 256>}, {pipeline_mode = #tpu.pipeline_mode<synchronous>, transform_indices = @transform_5, window_bounds = array<i64: 1, 256>}, {pipeline_mode = #tpu.pipeline_mode<synchronous>, transform_indices = @transform_6, window_bounds = array<i64: 256, 512>}, {pipeline_mode = #tpu.pipeline_mode<synchronous>, transform_indices = @transform_7, window_bounds = array<i64: 1, 512>}, {pipeline_mode = #tpu.pipeline_mode<synchronous>, transform_indices = @transform_8, window_bounds = array<i64: 512, 1408>}, {pipeline_mode = #tpu.pipeline_mode<synchronous>, transform_indices = @transform_9, window_bounds = array<i64: 1, 1408>}, {transform_indices = @transform_10, window_bounds = array<i64: 8, 1400>}]} {
    %c0 = arith.constant 0 : index
    %c0_0 = arith.constant 0 : index
    %0 = vector.load %arg2[%c0, %c0_0] : memref<8x28xf32, #tpu.memory_space<vmem>>, vector<8x28xf32>
    %1 = arith.truncf %0 : vector<8x28xf32> to vector<8x28xbf16>
    %c0_1 = arith.constant 0 : index
    %c0_2 = arith.constant 0 : index
    %2 = vector.load %arg3[%c0_1, %c0_2] : memref<28x128xbf16, #tpu.memory_space<vmem>>, vector<28x128xbf16>
    %cst = arith.constant dense<0.000000e+00> : vector<8x128xf32>
    %3 = tpu.matmul %1, %2, %cst {dimension_numbers = #tpu.dot_dimension_numbers<[1], [0], [0], [1], [0, 0, 1, 1], [], []>} : vector<8x28xbf16>, vector<28x128xbf16>, vector<8x128xf32> -> vector<8x128xf32>
    %c0_3 = arith.constant 0 : index
    %c0_4 = arith.constant 0 : index
    %4 = vector.load %arg4[%c0_3, %c0_4] : memref<1x128xf32, #tpu.memory_space<vmem>>, vector<1x128xf32>
    %5 = vector.broadcast %4 : vector<1x128xf32> to vector<8x128xf32>
    %6 = arith.addf %3, %5 : vector<8x128xf32>
    %c0_5 = arith.constant 0 : index
    %7 = memref.load %arg1[%c0_5] : memref<3xf32, #tpu.memory_space<smem>>
    %cst_6 = arith.constant 0.000000e+00 : f32
    %8 = vector.broadcast %cst_6 : f32 to vector<8x128xf32>
    %9 = arith.cmpf ogt, %6, %8 : vector<8x128xf32>
    %10 = vector.broadcast %7 : f32 to vector<8x128xf32>
    %11 = arith.mulf %10, %6 : vector<8x128xf32>
    %12 = arith.select %9, %6, %11 : vector<8x128xi1>, vector<8x128xf32>
    %13 = arith.truncf %12 : vector<8x128xf32> to vector<8x128xbf16>
    %c0_7 = arith.constant 0 : index
    %c0_8 = arith.constant 0 : index
    %14 = vector.load %arg5[%c0_7, %c0_8] : memref<128x256xbf16, #tpu.memory_space<vmem>>, vector<128x256xbf16>
    %cst_9 = arith.constant dense<0.000000e+00> : vector<8x256xf32>
    %15 = tpu.matmul %13, %14, %cst_9 {dimension_numbers = #tpu.dot_dimension_numbers<[1], [0], [0], [1], [0, 0, 1, 1], [], []>} : vector<8x128xbf16>, vector<128x256xbf16>, vector<8x256xf32> -> vector<8x256xf32>
    %c0_10 = arith.constant 0 : index
    %c0_11 = arith.constant 0 : index
    %16 = vector.load %arg6[%c0_10, %c0_11] : memref<1x256xf32, #tpu.memory_space<vmem>>, vector<1x256xf32>
    %17 = vector.broadcast %16 : vector<1x256xf32> to vector<8x256xf32>
    %18 = arith.addf %15, %17 : vector<8x256xf32>
    %c1 = arith.constant 1 : index
    %19 = memref.load %arg1[%c1] : memref<3xf32, #tpu.memory_space<smem>>
    %cst_12 = arith.constant 0.000000e+00 : f32
    %20 = vector.broadcast %cst_12 : f32 to vector<8x256xf32>
    %21 = arith.cmpf ogt, %18, %20 : vector<8x256xf32>
    %22 = vector.broadcast %19 : f32 to vector<8x256xf32>
    %23 = arith.mulf %22, %18 : vector<8x256xf32>
    %24 = arith.select %21, %18, %23 : vector<8x256xi1>, vector<8x256xf32>
    %25 = arith.truncf %24 : vector<8x256xf32> to vector<8x256xbf16>
    %c0_13 = arith.constant 0 : index
    %c0_14 = arith.constant 0 : index
    %26 = vector.load %arg7[%c0_13, %c0_14] : memref<256x512xbf16, #tpu.memory_space<vmem>>, vector<256x512xbf16>
    %cst_15 = arith.constant dense<0.000000e+00> : vector<8x512xf32>
    %27 = tpu.matmul %25, %26, %cst_15 {dimension_numbers = #tpu.dot_dimension_numbers<[1], [0], [0], [1], [0, 0, 1, 1], [], []>} : vector<8x256xbf16>, vector<256x512xbf16>, vector<8x512xf32> -> vector<8x512xf32>
    %c0_16 = arith.constant 0 : index
    %c0_17 = arith.constant 0 : index
    %28 = vector.load %arg8[%c0_16, %c0_17] : memref<1x512xf32, #tpu.memory_space<vmem>>, vector<1x512xf32>
    %29 = vector.broadcast %28 : vector<1x512xf32> to vector<8x512xf32>
    %30 = arith.addf %27, %29 : vector<8x512xf32>
    %c2 = arith.constant 2 : index
    %31 = memref.load %arg1[%c2] : memref<3xf32, #tpu.memory_space<smem>>
    %cst_18 = arith.constant 0.000000e+00 : f32
    %32 = vector.broadcast %cst_18 : f32 to vector<8x512xf32>
    %33 = arith.cmpf ogt, %30, %32 : vector<8x512xf32>
    %34 = vector.broadcast %31 : f32 to vector<8x512xf32>
    %35 = arith.mulf %34, %30 : vector<8x512xf32>
    %36 = arith.select %33, %30, %35 : vector<8x512xi1>, vector<8x512xf32>
    %37 = arith.truncf %36 : vector<8x512xf32> to vector<8x512xbf16>
    %c0_19 = arith.constant 0 : index
    %c0_20 = arith.constant 0 : index
    %38 = vector.load %arg9[%c0_19, %c0_20] : memref<512x1408xbf16, #tpu.memory_space<vmem>>, vector<512x1408xbf16>
    %cst_21 = arith.constant dense<0.000000e+00> : vector<8x1408xf32>
    %39 = tpu.matmul %37, %38, %cst_21 {dimension_numbers = #tpu.dot_dimension_numbers<[1], [0], [0], [1], [0, 0, 1, 1], [], []>} : vector<8x512xbf16>, vector<512x1408xbf16>, vector<8x1408xf32> -> vector<8x1408xf32>
    %c0_22 = arith.constant 0 : index
    %c0_23 = arith.constant 0 : index
    %40 = vector.load %arg10[%c0_22, %c0_23] : memref<1x1408xf32, #tpu.memory_space<vmem>>, vector<1x1408xf32>
    %41 = vector.broadcast %40 : vector<1x1408xf32> to vector<8x1408xf32>
    %42 = arith.addf %39, %41 : vector<8x1408xf32>
    %43 = vector.extract_strided_slice %42 {offsets = [0, 0], sizes = [8, 1400], strides = [1, 1]} : vector<8x1408xf32> to vector<8x1400xf32>
    %c0_24 = arith.constant 0 : index
    %c0_25 = arith.constant 0 : index
    %44 = vector.load %arg11[%c0_24, %c0_25] : memref<8x1400xf32, #tpu.memory_space<vmem>>, vector<8x1400xf32>
    tpu.vector_store %arg11[%c0_24, %c0_25], %43 {strides = array<i32>} : memref<8x1400xf32, #tpu.memory_space<vmem>>, vector<8x1400xf32>,
    return
  }
  func.func @transform_0(%arg0: i32) -> i32 {
    %c0_i32 = arith.constant 0 : i32
    %c0_i32_0 = arith.constant 0 : i32
    return %c0_i32 : i32
  }
  func.func @transform_1(%arg0: i32) -> (i32, i32) {
    %c0_i32 = arith.constant 0 : i32
    %c0_i32_0 = arith.constant 0 : i32
    return %arg0, %c0_i32 : i32, i32
  }
  func.func @transform_2(%arg0: i32) -> (i32, i32) {
    %c0_i32 = arith.constant 0 : i32
    %c0_i32_0 = arith.constant 0 : i32
    %c0_i32_1 = arith.constant 0 : i32
    return %c0_i32, %c0_i32_0 : i32, i32
  }
  func.func @transform_3(%arg0: i32) -> (i32, i32) {
    %c0_i32 = arith.constant 0 : i32
    %c0_i32_0 = arith.constant 0 : i32
    %c0_i32_1 = arith.constant 0 : i32
    return %c0_i32, %c0_i32_0 : i32, i32
  }
  func.func @transform_4(%arg0: i32) -> (i32, i32) {
    %c0_i32 = arith.constant 0 : i32
    %c0_i32_0 = arith.constant 0 : i32
    %c0_i32_1 = arith.constant 0 : i32
    return %c0_i32, %c0_i32_0 : i32, i32
  }
  func.func @transform_5(%arg0: i32) -> (i32, i32) {
    %c0_i32 = arith.constant 0 : i32
    %c0_i32_0 = arith.constant 0 : i32
    %c0_i32_1 = arith.constant 0 : i32
    return %c0_i32, %c0_i32_0 : i32, i32
  }
  func.func @transform_6(%arg0: i32) -> (i32, i32) {
    %c0_i32 = arith.constant 0 : i32
    %c0_i32_0 = arith.constant 0 : i32
    %c0_i32_1 = arith.constant 0 : i32
    return %c0_i32, %c0_i32_0 : i32, i32
  }
  func.func @transform_7(%arg0: i32) -> (i32, i32) {
    %c0_i32 = arith.constant 0 : i32
    %c0_i32_0 = arith.constant 0 : i32
    %c0_i32_1 = arith.constant 0 : i32
    return %c0_i32, %c0_i32_0 : i32, i32
  }
  func.func @transform_8(%arg0: i32) -> (i32, i32) {
    %c0_i32 = arith.constant 0 : i32
    %c0_i32_0 = arith.constant 0 : i32
    %c0_i32_1 = arith.constant 0 : i32
    return %c0_i32, %c0_i32_0 : i32, i32
  }
  func.func @transform_9(%arg0: i32) -> (i32, i32) {
    %c0_i32 = arith.constant 0 : i32
    %c0_i32_0 = arith.constant 0 : i32
    %c0_i32_1 = arith.constant 0 : i32
    return %c0_i32, %c0_i32_0 : i32, i32
  }
  func.func @transform_10(%arg0: i32) -> (i32, i32) {
    %c0_i32 = arith.constant 0 : i32
    %c0_i32_0 = arith.constant 0 : i32
    return %arg0, %c0_i32 : i32, i32
  }
}

</mosaic_0001>

<llo_original>
// kernel: tpu_custom_call.1
$region0: #{tpu_custom_call.1}
  #allocation0 [shape = 'u32[]', space=smem, size = 0x4, offset = 0x4, fixed_abs, tag = 'smem constant byte address 0x4 - core index']
  #allocation1 [shape = 'u32[144,128]{1,0:T(1,128)}', space=vmem, size = 0x12000, scoped, tag = 'internal scratch']
  %s0 = inlined_call_operand.hbm [shape: f32[3], index: 0, kind: input, shape index: {}]
  %s1 = inlined_call_operand.hbm [shape: f32[8,28], index: 1, kind: input, shape index: {}]
  %s2 = inlined_call_operand.hbm [shape: bf16[28,128], index: 2, kind: input, shape index: {}]
  %s3 = inlined_call_operand.hbm [shape: f32[1,128], index: 3, kind: input, shape index: {}]
  %s4 = inlined_call_operand.hbm [shape: bf16[128,256], index: 4, kind: input, shape index: {}]
  %s5 = inlined_call_operand.hbm [shape: f32[1,256], index: 5, kind: input, shape index: {}]
  %s6 = inlined_call_operand.hbm [shape: bf16[256,512], index: 6, kind: input, shape index: {}]
  %s7 = inlined_call_operand.hbm [shape: f32[1,512], index: 7, kind: input, shape index: {}]
  %s8 = inlined_call_operand.hbm [shape: bf16[512,1408], index: 8, kind: input, shape index: {}]
  %s9 = inlined_call_operand.hbm [shape: f32[1,1408], index: 9, kind: input, shape index: {}]
  %s10 = inlined_call_operand.hbm [shape: f32[8,1400], index: 10, kind: output, shape index: {}]
  %s11 = sld [smem:[#allocation0]]
  $region90: #{tpu_custom_call.1} parent=0
    _
  %s13 = ssub.s32 1, %s11
  %s14 = scalar_select 0, %s13, %s11
  $region1: #{tpu_custom_call.1} parent=0
    #allocation2 [shape = 'u8[512]{0}', space=smem, size = 0x200, scoped, tag = 'input window, operand 0, single buffered']
    #allocation3 [shape = 's32[1]{0}', space=sflag, size = 0x4, scoped, tag = 'scoped memory for tpu_custom_call.1']
    #allocation4 [shape = 's32[1]{0}', space=sflag, size = 0x4, scoped, tag = 'scoped memory for tpu_custom_call.1']
    #allocation5 [shape = 's32[1]{0}', space=sflag, size = 0x4, scoped, tag = 'scoped memory for tpu_custom_call.1']
    #allocation6 [shape = 'u8[4096]{0}', space=vmem, size = 0x1000, scoped, tag = 'input window, operand 1, single buffered']
    #allocation7 [shape = 'u8[8192]{0}', space=vmem, size = 0x2000, scoped, tag = 'input window, operand 2, single buffered']
    #allocation8 [shape = 's32[1]{0}', space=sflag, size = 0x4, scoped, tag = 'scoped memory for tpu_custom_call.1']
    #allocation9 [shape = 'u8[512]{0}', space=vmem, size = 0x400, scoped, tag = 'input window, operand 3, single buffered']
    #allocation10 [shape = 'u8[65536]{0}', space=vmem, size = 0x10000, scoped, tag = 'input window, operand 4, single buffered']
    #allocation11 [shape = 's32[1]{0}', space=sflag, size = 0x4, scoped, tag = 'scoped memory for tpu_custom_call.1']
    #allocation12 [shape = 'u8[1024]{0}', space=vmem, size = 0x400, scoped, tag = 'input window, operand 5, single buffered']
    #allocation13 [shape = 'u8[262144]{0}', space=vmem, size = 0x40000, scoped, tag = 'input window, operand 6, single buffered']
    #allocation14 [shape = 's32[1]{0}', space=sflag, size = 0x4, scoped, tag = 'scoped memory for tpu_custom_call.1']
    #allocation15 [shape = 'u8[2048]{0}', space=vmem, size = 0x800, scoped, tag = 'input window, operand 7, single buffered']
    #allocation16 [shape = 'u8[1441792]{0}', space=vmem, size = 0x160000, scoped, tag = 'input window, operand 8, single buffered']
    #allocation17 [shape = 's32[1]{0}', space=sflag, size = 0x4, scoped, tag = 'scoped memory for tpu_custom_call.1']
    #allocation18 [shape = 'u8[5632]{0}', space=vmem, size = 0x1800, scoped, tag = 'input window, operand 9, single buffered']
    #allocation19 [shape = 'u8[45056]{0}', space=vmem, size = 0xb000, scoped, tag = 'output window, operand 0, single buffered']
    %15 = vsyncpa [#allocation5], 0
    %16 = vsyncpa [#allocation3], 0
    %17 = vsyncpa [#allocation8], 0
    %18 = vsyncpa [#allocation11], 0
    %19 = vsyncpa [#allocation14], 0
    %20 = vsyncpa [#allocation17], 0
    %21 = vsyncpa [#allocation4], 0
    // Predicated region
    $region2: #{tpu_custom_call.1} parent=1 // pred_check
      _
    $region3: #{tpu_custom_call.1} parent=1 // pred_check_branch
      %23 = sbr.rel (0) target = $region5
    $region4: #{tpu_custom_call.1} parent=1 // pred_region
      %s25 = ssub.s32 16, 16
      %26 = vsyncadd [#allocation5], %s25
      %29 = dma.hbm_to_smem %s0, 16, [#allocation2], [#allocation5]
    $region5: #{tpu_custom_call.1} parent=1 // pred_fallthru
      _
    // Predicated region
    $region6: #{tpu_custom_call.1} parent=1 // pred_check
      _
    $region7: #{tpu_custom_call.1} parent=1 // pred_check_branch
      %31 = sbr.rel (0) target = $region9
    $region8: #{tpu_custom_call.1} parent=1 // pred_region
      %s33 = ssub.s32 128, 128
      %34 = vsyncadd [#allocation3], %s33
      %s36 = sshll.u32 [#allocation6], 4
      %s37 = int_to_ptr.vmem [resolvable:$true] %s36
      %39 = dma.hbm_to_vmem [thread:$0]  %s1, 128, %s37, [#allocation3]
    $region9: #{tpu_custom_call.1} parent=1 // pred_fallthru
      _
    // Predicated region
    $region10: #{tpu_custom_call.1} parent=1 // pred_check
      _
    $region11: #{tpu_custom_call.1} parent=1 // pred_check_branch
      %41 = sbr.rel (0) target = $region13
    $region12: #{tpu_custom_call.1} parent=1 // pred_region
      %s43 = ssub.s32 256, 256
      %44 = vsyncadd [#allocation8], %s43
      %s45 = sshll.u32 [#allocation7], 4
      %s46 = int_to_ptr.vmem [resolvable:$true] %s45
      %51 = dma.hbm_to_vmem [thread:$0]  %s2, 256, %s46, [#allocation8], 64, 64, 4
    $region13: #{tpu_custom_call.1} parent=1 // pred_fallthru
      _
    // Predicated region
    $region14: #{tpu_custom_call.1} parent=1 // pred_check
      _
    $region15: #{tpu_custom_call.1} parent=1 // pred_check_branch
      %53 = sbr.rel (0) target = $region17
    $region16: #{tpu_custom_call.1} parent=1 // pred_region
      %s55 = ssub.s32 16, 16
      %56 = vsyncadd [#allocation8], %s55
      %s58 = sshll.u32 [#allocation9], 4
      %s59 = int_to_ptr.vmem [resolvable:$true] %s58
      %61 = dma.hbm_to_vmem [thread:$0]  %s3, 16, %s59, [#allocation8]
    $region17: #{tpu_custom_call.1} parent=1 // pred_fallthru
      _
    // Predicated region
    $region18: #{tpu_custom_call.1} parent=1 // pred_check
      _
    $region19: #{tpu_custom_call.1} parent=1 // pred_check_branch
      %63 = sbr.rel (0) target = $region21
    $region20: #{tpu_custom_call.1} parent=1 // pred_region
      %s65 = ssub.s32 2048, 2048
      %66 = vsyncadd [#allocation11], %s65
      %s67 = sshll.u32 [#allocation10], 4
      %s68 = int_to_ptr.vmem [resolvable:$true] %s67
      %73 = dma.hbm_to_vmem [thread:$0]  %s4, 2048, %s68, [#allocation11], 128, 128, 8
    $region21: #{tpu_custom_call.1} parent=1 // pred_fallthru
      _
    // Predicated region
    $region22: #{tpu_custom_call.1} parent=1 // pred_check
      _
    $region23: #{tpu_custom_call.1} parent=1 // pred_check_branch
      %75 = sbr.rel (0) target = $region25
    $region24: #{tpu_custom_call.1} parent=1 // pred_region
      %s77 = ssub.s32 32, 32
      %78 = vsyncadd [#allocation11], %s77
      %s80 = sshll.u32 [#allocation12], 4
      %s81 = int_to_ptr.vmem [resolvable:$true] %s80
      %83 = dma.hbm_to_vmem [thread:$0]  %s5, 32, %s81, [#allocation11]
    $region25: #{tpu_custom_call.1} parent=1 // pred_fallthru
      _
    // Predicated region
    $region26: #{tpu_custom_call.1} parent=1 // pred_check
      _
    $region27: #{tpu_custom_call.1} parent=1 // pred_check_branch
      %85 = sbr.rel (0) target = $region29
    $region28: #{tpu_custom_call.1} parent=1 // pred_region
      %s87 = ssub.s32 8192, 8192
      %88 = vsyncadd [#allocation14], %s87
      %s89 = sshll.u32 [#allocation13], 4
      %s90 = int_to_ptr.vmem [resolvable:$true] %s89
      %95 = dma.hbm_to_vmem [thread:$0]  %s6, 8192, %s90, [#allocation14], 256, 256, 16
    $region29: #{tpu_custom_call.1} parent=1 // pred_fallthru
      _
    // Predicated region
    $region30: #{tpu_custom_call.1} parent=1 // pred_check
      _
    $region31: #{tpu_custom_call.1} parent=1 // pred_check_branch
      %97 = sbr.rel (0) target = $region33
    $region32: #{tpu_custom_call.1} parent=1 // pred_region
      %s99 = ssub.s32 64, 64
      %100 = vsyncadd [#allocation14], %s99
      %s102 = sshll.u32 [#allocation15], 4
      %s103 = int_to_ptr.vmem [resolvable:$true] %s102
      %105 = dma.hbm_to_vmem [thread:$0]  %s7, 64, %s103, [#allocation14]
    $region33: #{tpu_custom_call.1} parent=1 // pred_fallthru
      _
    // Predicated region
    $region34: #{tpu_custom_call.1} parent=1 // pred_check
      _
    $region35: #{tpu_custom_call.1} parent=1 // pred_check_branch
      %107 = sbr.rel (0) target = $region37
    $region36: #{tpu_custom_call.1} parent=1 // pred_region
      %s109 = ssub.s32 45056, 45056
      %110 = vsyncadd [#allocation17], %s109
      %s111 = sshll.u32 [#allocation16], 4
      %s112 = int_to_ptr.vmem [resolvable:$true] %s111
      %117 = dma.hbm_to_vmem [thread:$0]  %s8, 45056, %s112, [#allocation17], 704, 704, 44
    $region37: #{tpu_custom_call.1} parent=1 // pred_fallthru
      _
    // Predicated region
    $region38: #{tpu_custom_call.1} parent=1 // pred_check
      _
    $region39: #{tpu_custom_call.1} parent=1 // pred_check_branch
      %119 = sbr.rel (0) target = $region41
    $region40: #{tpu_custom_call.1} parent=1 // pred_region
      %s121 = ssub.s32 176, 176
      %122 = vsyncadd [#allocation17], %s121
      %s124 = sshll.u32 [#allocation18], 4
      %s125 = int_to_ptr.vmem [resolvable:$true] %s124
      %127 = dma.hbm_to_vmem [thread:$0]  %s9, 176, %s125, [#allocation17]
    $region41: #{tpu_custom_call.1} parent=1 // pred_fallthru
      _
    // Predicated region
    $region42: #{tpu_custom_call.1} parent=1 // pred_check
      _
    $region43: #{tpu_custom_call.1} parent=1 // pred_check_branch
      %129 = sbr.rel (0) target = $region45
    $region44: #{tpu_custom_call.1} parent=1 // pred_region
      %130 = dma.done [#allocation5], 16
    $region45: #{tpu_custom_call.1} parent=1 // pred_fallthru
      _
    // Predicated region
    $region46: #{tpu_custom_call.1} parent=1 // pred_check
      _
    $region47: #{tpu_custom_call.1} parent=1 // pred_check_branch
      %132 = sbr.rel (0) target = $region49
    $region48: #{tpu_custom_call.1} parent=1 // pred_region
      %133 = dma.done [#allocation3], 128
    $region49: #{tpu_custom_call.1} parent=1 // pred_fallthru
      _
    // Predicated region
    $region50: #{tpu_custom_call.1} parent=1 // pred_check
      _
    $region51: #{tpu_custom_call.1} parent=1 // pred_check_branch
      %135 = sbr.rel (0) target = $region53
    $region52: #{tpu_custom_call.1} parent=1 // pred_region
      %136 = dma.done [#allocation8], 256
    $region53: #{tpu_custom_call.1} parent=1 // pred_fallthru
      _
    // Predicated region
    $region54: #{tpu_custom_call.1} parent=1 // pred_check
      _
    $region55: #{tpu_custom_call.1} parent=1 // pred_check_branch
      %138 = sbr.rel (0) target = $region57
    $region56: #{tpu_custom_call.1} parent=1 // pred_region
      %139 = dma.done [#allocation8], 16
    $region57: #{tpu_custom_call.1} parent=1 // pred_fallthru
      _
    // Predicated region
    $region58: #{tpu_custom_call.1} parent=1 // pred_check
      _
    $region59: #{tpu_custom_call.1} parent=1 // pred_check_branch
      %141 = sbr.rel (0) target = $region61
    $region60: #{tpu_custom_call.1} parent=1 // pred_region
      %142 = dma.done [#allocation11], 2048
    $region61: #{tpu_custom_call.1} parent=1 // pred_fallthru
      _
    // Predicated region
    $region62: #{tpu_custom_call.1} parent=1 // pred_check
      _
    $region63: #{tpu_custom_call.1} parent=1 // pred_check_branch
      %144 = sbr.rel (0) target = $region65
    $region64: #{tpu_custom_call.1} parent=1 // pred_region
      %145 = dma.done [#allocation11], 32
    $region65: #{tpu_custom_call.1} parent=1 // pred_fallthru
      _
    // Predicated region
    $region66: #{tpu_custom_call.1} parent=1 // pred_check
      _
    $region67: #{tpu_custom_call.1} parent=1 // pred_check_branch
      %147 = sbr.rel (0) target = $region69
    $region68: #{tpu_custom_call.1} parent=1 // pred_region
      %148 = dma.done [#allocation14], 8192
    $region69: #{tpu_custom_call.1} parent=1 // pred_fallthru
      _
    // Predicated region
    $region70: #{tpu_custom_call.1} parent=1 // pred_check
      _
    $region71: #{tpu_custom_call.1} parent=1 // pred_check_branch
      %150 = sbr.rel (0) target = $region73
    $region72: #{tpu_custom_call.1} parent=1 // pred_region
      %151 = dma.done [#allocation14], 64
    $region73: #{tpu_custom_call.1} parent=1 // pred_fallthru
      _
    // Predicated region
    $region74: #{tpu_custom_call.1} parent=1 // pred_check
      _
    $region75: #{tpu_custom_call.1} parent=1 // pred_check_branch
      %153 = sbr.rel (0) target = $region77
    $region76: #{tpu_custom_call.1} parent=1 // pred_region
      %154 = dma.done [#allocation17], 45056
    $region77: #{tpu_custom_call.1} parent=1 // pred_fallthru
      _
    // Predicated region
    $region78: #{tpu_custom_call.1} parent=1 // pred_check
      _
    $region79: #{tpu_custom_call.1} parent=1 // pred_check_branch
      %156 = sbr.rel (0) target = $region81
    $region80: #{tpu_custom_call.1} parent=1 // pred_region
      %157 = dma.done [#allocation17], 176
    $region81: #{tpu_custom_call.1} parent=1 // pred_fallthru
      _
    %158 = sfence
    %v160 = vld [vmem:[#allocation6] sm:$0xff]
    %v161 = vpack.c.bf16 %v160, %v160
    %v162 = vld [vmem:[#allocation7] sm:$0xf]
    %v163 = vld [vmem:[#allocation7 + $0x4] sm:$0xf]
    %v164 = vld [vmem:[#allocation7 + $0x8] sm:$0xf]
    %v165 = vld [vmem:[#allocation7 + $0xc] sm:$0x3]
    %v166 = vld [vmem:[#allocation9] sm:$0x1]
    %v168 = vlaneseq
    %v169 = vshrl.u32 %v168, 7
    %v170 = vsub.s32 0, %v169
    %v171 = vrot.slane %v166, %v170
    %v177 = vunpack.c.l.b16 %v162
    %v178 = vunpack.c.l.b16 %v163
    %v179 = vunpack.c.l.b16 %v164
    %v180 = vunpack.c.l.b16 %v165
    %v181 = vpack.c.b16 %v178, %v177
    %v182 = vpack.c.b16 %v180, %v179
    %vm184 = vcmask 228352
    %v186 = vsel %vm184, %v161, 0
    %vm188 = vcmask 1045504
    %v190 = vsel %vm188, %v182, 0
    %192 = vmatprep.subr.bf16.mxu0 0
    %193 = vmatpush1.bf16.msra.mxu0 %v181
    %194 = vmatprep.subr.bf16.mxu0 0
    %195 = vmatpush1.bf16.msra.mxu0 %v190
    %196 = vmatprep.subr.bf16.mxu0 0
    %197 = vmatpush1.bf16.msra.mxu0 0
    %198 = vmatprep.subr.bf16.mxu0 0
    %199 = vmatpush1.bf16.msra.mxu0 0
    %200 = vmatprep.subr.bf16.mxu0 0
    %201 = vmatpush1.bf16.msra.mxu0 0
    %202 = vmatprep.subr.bf16.mxu0 0
    %203 = vmatpush1.bf16.msra.mxu0 0
    %204 = vmatprep.subr.bf16.mxu0 0
    %205 = vmatpush1.bf16.msra.mxu0 0
    %206 = vmatprep.subr.bf16.mxu0 0
    %207 = vmatpush1.bf16.msra.mxu0 0
    %208 = vmatprep.subr.bf16.mxu0 0
    %209 = vmatpush1.bf16.msra.mxu0 0
    %210 = vmatprep.subr.bf16.mxu0 0
    %211 = vmatpush1.bf16.msra.mxu0 0
    %212 = vmatprep.subr.bf16.mxu0 0
    %213 = vmatpush1.bf16.msra.mxu0 0
    %214 = vmatprep.subr.bf16.mxu0 0
    %215 = vmatpush1.bf16.msra.mxu0 0
    %216 = vmatprep.subr.bf16.mxu0 0
    %217 = vmatpush1.bf16.msra.mxu0 0
    %218 = vmatprep.subr.bf16.mxu0 0
    %219 = vmatpush1.bf16.msra.mxu0 0
    %220 = vmatprep.subr.bf16.mxu0 0
    %221 = vmatpush1.bf16.msra.mxu0 0
    %222 = vmatprep.subr.bf16.mxu0 0
    %223 = vmatpush1.bf16.msra.mxu0 0
    %224 = vmatprep.mubr.bf16.mxu0 0
    %225 = vmatmul.mubr.bf16.gmra.mrb[0].mxu0 %v186
    %v226 = vpop.f32.mrb[0].mxu0
    %v227 = vadd.f32 %v171, %v226
    %v228 = vpop.f32.mrb[0].mxu0
    %v229 = vpop.f32.mrb[0].mxu0
    %v230 = vpop.f32.mrb[0].mxu0
    %231 = vdwg.mxu0
    %s232 = sld [smem:[#allocation2]]
    %vm233 = vcmp.gt.f32.partialorder %v227, 0.0
    %v234 = vstv %s232
    %v235 = vmul.f32 %v234, %v227
    %v236 = vsel %vm233, %v227, %v235
    %v237 = vpack.c.bf16 %v236, %v236
    %v238 = vld [vmem:[#allocation10] sm:$0xff]
    %v239 = vld [vmem:[#allocation10 + $0x8] sm:$0xff]
    %v240 = vld [vmem:[#allocation10 + $0x10] sm:$0xff]
    %v241 = vld [vmem:[#allocation10 + $0x18] sm:$0xff]
    %v242 = vld [vmem:[#allocation10 + $0x20] sm:$0xff]
    %v243 = vld [vmem:[#allocation10 + $0x28] sm:$0xff]
    %v244 = vld [vmem:[#allocation10 + $0x30] sm:$0xff]
    %v245 = vld [vmem:[#allocation10 + $0x38] sm:$0xff]
    %v246 = vld [vmem:[#allocation10 + $0x40] sm:$0xff]
    %v247 = vld [vmem:[#allocation10 + $0x48] sm:$0xff]
    %v248 = vld [vmem:[#allocation10 + $0x50] sm:$0xff]
    %v249 = vld [vmem:[#allocation10 + $0x58] sm:$0xff]
    %v250 = vld [vmem:[#allocation10 + $0x60] sm:$0xff]
    %v251 = vld [vmem:[#allocation10 + $0x68] sm:$0xff]
    %v252 = vld [vmem:[#allocation10 + $0x70] sm:$0xff]
    %v253 = vld [vmem:[#allocation10 + $0x78] sm:$0xff]
    %v254 = vld [vmem:[#allocation12] sm:$0x3]
    %v256 = vlaneseq
    %v257 = vshrl.u32 %v256, 7
    %v258 = vsub.s32 0, %v257
    %v259 = vrot.slane %v254, %v258
    %v260 = vlaneseq
    %v261 = vshrl.u32 %v260, 7
    %v262 = vsub.s32 1, %v261
    %v263 = vrot.slane %v254, %v262
    %v282 = vunpack.c.l.b16 %v238
    %v283 = vunpack.c.h.b16 %v238
    %v284 = vunpack.c.l.b16 %v239
    %v285 = vunpack.c.h.b16 %v239
    %v286 = vunpack.c.l.b16 %v240
    %v287 = vunpack.c.h.b16 %v240
    %v288 = vunpack.c.l.b16 %v241
    %v289 = vunpack.c.h.b16 %v241
    %v290 = vunpack.c.l.b16 %v242
    %v291 = vunpack.c.h.b16 %v242
    %v292 = vunpack.c.l.b16 %v243
    %v293 = vunpack.c.h.b16 %v243
    %v294 = vunpack.c.l.b16 %v244
    %v295 = vunpack.c.h.b16 %v244
    %v296 = vunpack.c.l.b16 %v245
    %v297 = vunpack.c.h.b16 %v245
    %v298 = vunpack.c.l.b16 %v246
    %v299 = vunpack.c.h.b16 %v246
    %v300 = vunpack.c.l.b16 %v247
    %v301 = vunpack.c.h.b16 %v247
    %v302 = vunpack.c.l.b16 %v248
    %v303 = vunpack.c.h.b16 %v248
    %v304 = vunpack.c.l.b16 %v249
    %v305 = vunpack.c.h.b16 %v249
    %v306 = vunpack.c.l.b16 %v250
    %v307 = vunpack.c.h.b16 %v250
    %v308 = vunpack.c.l.b16 %v251
    %v309 = vunpack.c.h.b16 %v251
    %v310 = vunpack.c.l.b16 %v252
    %v311 = vunpack.c.h.b16 %v252
    %v312 = vunpack.c.l.b16 %v253
    %v313 = vunpack.c.h.b16 %v253
    %v314 = vpack.c.b16 %v284, %v282
    %v315 = vpack.c.b16 %v285, %v283
    %v316 = vpack.c.b16 %v288, %v286
    %v317 = vpack.c.b16 %v289, %v287
    %v318 = vpack.c.b16 %v292, %v290
    %v319 = vpack.c.b16 %v293, %v291
    %v320 = vpack.c.b16 %v296, %v294
    %v321 = vpack.c.b16 %v297, %v295
    %v322 = vpack.c.b16 %v300, %v298
    %v323 = vpack.c.b16 %v301, %v299
    %v324 = vpack.c.b16 %v304, %v302
    %v325 = vpack.c.b16 %v305, %v303
    %v326 = vpack.c.b16 %v308, %v306
    %v327 = vpack.c.b16 %v309, %v307
    %v328 = vpack.c.b16 %v312, %v310
    %v329 = vpack.c.b16 %v313, %v311
    %346 = vmatprep.subr.bf16.mxu0 %v315
    %347 = vmatpush1.bf16.msra.mxu0 %v314
    %348 = vmatprep.subr.bf16.mxu0 %v317
    %349 = vmatpush1.bf16.msra.mxu0 %v316
    %350 = vmatprep.subr.bf16.mxu0 %v319
    %351 = vmatpush1.bf16.msra.mxu0 %v318
    %352 = vmatprep.subr.bf16.mxu0 %v321
    %353 = vmatpush1.bf16.msra.mxu0 %v320
    %354 = vmatprep.subr.bf16.mxu0 %v323
    %355 = vmatpush1.bf16.msra.mxu0 %v322
    %356 = vmatprep.subr.bf16.mxu0 %v325
    %357 = vmatpush1.bf16.msra.mxu0 %v324
    %358 = vmatprep.subr.bf16.mxu0 %v327
    %359 = vmatpush1.bf16.msra.mxu0 %v326
    %360 = vmatprep.subr.bf16.mxu0 %v329
    %361 = vmatpush1.bf16.msra.mxu0 %v328
    %362 = vmatprep.subr.bf16.mxu0 0
    %363 = vmatpush1.bf16.msra.mxu0 0
    %364 = vmatprep.subr.bf16.mxu0 0
    %365 = vmatpush1.bf16.msra.mxu0 0
    %366 = vmatprep.subr.bf16.mxu0 0
    %367 = vmatpush1.bf16.msra.mxu0 0
    %368 = vmatprep.subr.bf16.mxu0 0
    %369 = vmatpush1.bf16.msra.mxu0 0
    %370 = vmatprep.subr.bf16.mxu0 0
    %371 = vmatpush1.bf16.msra.mxu0 0
    %372 = vmatprep.subr.bf16.mxu0 0
    %373 = vmatpush1.bf16.msra.mxu0 0
    %374 = vmatprep.subr.bf16.mxu0 0
    %375 = vmatpush1.bf16.msra.mxu0 0
    %376 = vmatprep.subr.bf16.mxu0 0
    %377 = vmatpush1.bf16.msra.mxu0 0
    %378 = vmatprep.mubr.bf16.mxu0 0
    %379 = vmatmul.mubr.bf16.gmra.mrb[0].mxu0 %v237
    %v380 = vpop.f32.mrb[0].mxu0
    %v381 = vadd.f32 %v259, %v380
    %v382 = vpop.f32.mrb[0].mxu0
    %v383 = vadd.f32 %v263, %v382
    %v384 = vpop.f32.mrb[0].mxu0
    %v385 = vpop.f32.mrb[0].mxu0
    %386 = vdwg.mxu0
    %s387 = sld [smem:[#allocation2 + $0x1]]
    %vm388 = vcmp.gt.f32.partialorder %v381, 0.0
    %vm389 = vcmp.gt.f32.partialorder %v383, 0.0
    %v390 = vstv %s387
    %v391 = vmul.f32 %v390, %v381
    %v392 = vmul.f32 %v390, %v383
    %v393 = vsel %vm388, %v381, %v391
    %v394 = vsel %vm389, %v383, %v392
    %v395 = vpack.c.bf16 %v393, %v393
    %v396 = vpack.c.bf16 %v394, %v394
    %v397 = vld [vmem:[#allocation13] sm:$0xff]
    %v398 = vld [vmem:[#allocation13 + $0x8] sm:$0xff]
    %v399 = vld [vmem:[#allocation13 + $0x10] sm:$0xff]
    %v400 = vld [vmem:[#allocation13 + $0x18] sm:$0xff]
    %v401 = vld [vmem:[#allocation13 + $0x20] sm:$0xff]
    %v402 = vld [vmem:[#allocation13 + $0x28] sm:$0xff]
    %v403 = vld [vmem:[#allocation13 + $0x30] sm:$0xff]
    %v404 = vld [vmem:[#allocation13 + $0x38] sm:$0xff]
    %v405 = vld [vmem:[#allocation13 + $0x40] sm:$0xff]
    %v406 = vld [vmem:[#allocation13 + $0x48] sm:$0xff]
    %v407 = vld [vmem:[#allocation13 + $0x50] sm:$0xff]
    %v408 = vld [vmem:[#allocation13 + $0x58] sm:$0xff]
    %v409 = vld [vmem:[#allocation13 + $0x60] sm:$0xff]
    %v410 = vld [vmem:[#allocation13 + $0x68] sm:$0xff]
    %v411 = vld [vmem:[#allocation13 + $0x70] sm:$0xff]
    %v412 = vld [vmem:[#allocation13 + $0x78] sm:$0xff]
    %v413 = vld [vmem:[#allocation13 + $0x80] sm:$0xff]
    %v414 = vld [vmem:[#allocation13 + $0x88] sm:$0xff]
    %v415 = vld [vmem:[#allocation13 + $0x90] sm:$0xff]
    %v416 = vld [vmem:[#allocation13 + $0x98] sm:$0xff]
    %v417 = vld [vmem:[#allocation13 + $0xa0] sm:$0xff]
    %v418 = vld [vmem:[#allocation13 + $0xa8] sm:$0xff]
    %v419 = vld [vmem:[#allocation13 + $0xb0] sm:$0xff]
    %v420 = vld [vmem:[#allocation13 + $0xb8] sm:$0xff]
    %v421 = vld [vmem:[#allocation13 + $0xc0] sm:$0xff]
    %v422 = vld [vmem:[#allocation13 + $0xc8] sm:$0xff]
    %v423 = vld [vmem:[#allocation13 + $0xd0] sm:$0xff]
    %v424 = vld [vmem:[#allocation13 + $0xd8] sm:$0xff]
    %v425 = vld [vmem:[#allocation13 + $0xe0] sm:$0xff]
    %v426 = vld [vmem:[#allocation13 + $0xe8] sm:$0xff]
    %v427 = vld [vmem:[#allocation13 + $0xf0] sm:$0xff]
    %v428 = vld [vmem:[#allocation13 + $0xf8] sm:$0xff]
    %v429 = vld [vmem:[#allocation13 + $0x100] sm:$0xff]
    %v430 = vld [vmem:[#allocation13 + $0x108] sm:$0xff]
    %v431 = vld [vmem:[#allocation13 + $0x110] sm:$0xff]
    %v432 = vld [vmem:[#allocation13 + $0x118] sm:$0xff]
    %v433 = vld [vmem:[#allocation13 + $0x120] sm:$0xff]
    %v434 = vld [vmem:[#allocation13 + $0x128] sm:$0xff]
    %v435 = vld [vmem:[#allocation13 + $0x130] sm:$0xff]
    %v436 = vld [vmem:[#allocation13 + $0x138] sm:$0xff]
    %v437 = vld [vmem:[#allocation13 + $0x140] sm:$0xff]
    %v438 = vld [vmem:[#allocation13 + $0x148] sm:$0xff]
    %v439 = vld [vmem:[#allocation13 + $0x150] sm:$0xff]
    %v440 = vld [vmem:[#allocation13 + $0x158] sm:$0xff]
    %v441 = vld [vmem:[#allocation13 + $0x160] sm:$0xff]
    %v442 = vld [vmem:[#allocation13 + $0x168] sm:$0xff]
    %v443 = vld [vmem:[#allocation13 + $0x170] sm:$0xff]
    %v444 = vld [vmem:[#allocation13 + $0x178] sm:$0xff]
    %v445 = vld [vmem:[#allocation13 + $0x180] sm:$0xff]
    %v446 = vld [vmem:[#allocation13 + $0x188] sm:$0xff]
    %v447 = vld [vmem:[#allocation13 + $0x190] sm:$0xff]
    %v448 = vld [vmem:[#allocation13 + $0x198] sm:$0xff]
    %v449 = vld [vmem:[#allocation13 + $0x1a0] sm:$0xff]
    %v450 = vld [vmem:[#allocation13 + $0x1a8] sm:$0xff]
    %v451 = vld [vmem:[#allocation13 + $0x1b0] sm:$0xff]
    %v452 = vld [vmem:[#allocation13 + $0x1b8] sm:$0xff]
    %v453 = vld [vmem:[#allocation13 + $0x1c0] sm:$0xff]
    %v454 = vld [vmem:[#allocation13 + $0x1c8] sm:$0xff]
    %v455 = vld [vmem:[#allocation13 + $0x1d0] sm:$0xff]
    %v456 = vld [vmem:[#allocation13 + $0x1d8] sm:$0xff]
    %v457 = vld [vmem:[#allocation13 + $0x1e0] sm:$0xff]
    %v458 = vld [vmem:[#allocation13 + $0x1e8] sm:$0xff]
    %v459 = vld [vmem:[#allocation13 + $0x1f0] sm:$0xff]
    %v460 = vld [vmem:[#allocation13 + $0x1f8] sm:$0xff]
    %v461 = vld [vmem:[#allocation15] sm:$0xf]
    %v463 = vlaneseq
    %v464 = vshrl.u32 %v463, 7
    %v465 = vsub.s32 0, %v464
    %v466 = vrot.slane %v461, %v465
    %v467 = vlaneseq
    %v468 = vshrl.u32 %v467, 7
    %v469 = vsub.s32 1, %v468
    %v470 = vrot.slane %v461, %v469
    %v471 = vlaneseq
    %v472 = vshrl.u32 %v471, 7
    %v473 = vsub.s32 2, %v472
    %v474 = vrot.slane %v461, %v473
    %v475 = vlaneseq
    %v476 = vshrl.u32 %v475, 7
    %v477 = vsub.s32 3, %v476
    %v478 = vrot.slane %v461, %v477
    %v547 = vunpack.c.l.b16 %v397
    %v548 = vunpack.c.h.b16 %v397
    %v549 = vunpack.c.l.b16 %v398
    %v550 = vunpack.c.h.b16 %v398
    %v551 = vunpack.c.l.b16 %v399
    %v552 = vunpack.c.h.b16 %v399
    %v553 = vunpack.c.l.b16 %v400
    %v554 = vunpack.c.h.b16 %v400
    %v555 = vunpack.c.l.b16 %v401
    %v556 = vunpack.c.h.b16 %v401
    %v557 = vunpack.c.l.b16 %v402
    %v558 = vunpack.c.h.b16 %v402
    %v559 = vunpack.c.l.b16 %v403
    %v560 = vunpack.c.h.b16 %v403
    %v561 = vunpack.c.l.b16 %v404
    %v562 = vunpack.c.h.b16 %v404
    %v563 = vunpack.c.l.b16 %v405
    %v564 = vunpack.c.h.b16 %v405
    %v565 = vunpack.c.l.b16 %v406
    %v566 = vunpack.c.h.b16 %v406
    %v567 = vunpack.c.l.b16 %v407
    %v568 = vunpack.c.h.b16 %v407
    %v569 = vunpack.c.l.b16 %v408
    %v570 = vunpack.c.h.b16 %v408
    %v571 = vunpack.c.l.b16 %v409
    %v572 = vunpack.c.h.b16 %v409
    %v573 = vunpack.c.l.b16 %v410
    %v574 = vunpack.c.h.b16 %v410
    %v575 = vunpack.c.l.b16 %v411
    %v576 = vunpack.c.h.b16 %v411
    %v577 = vunpack.c.l.b16 %v412
    %v578 = vunpack.c.h.b16 %v412
    %v579 = vunpack.c.l.b16 %v413
    %v580 = vunpack.c.h.b16 %v413
    %v581 = vunpack.c.l.b16 %v414
    %v582 = vunpack.c.h.b16 %v414
    %v583 = vunpack.c.l.b16 %v415
    %v584 = vunpack.c.h.b16 %v415
    %v585 = vunpack.c.l.b16 %v416
    %v586 = vunpack.c.h.b16 %v416
    %v587 = vunpack.c.l.b16 %v417
    %v588 = vunpack.c.h.b16 %v417
    %v589 = vunpack.c.l.b16 %v418
    %v590 = vunpack.c.h.b16 %v418
    %v591 = vunpack.c.l.b16 %v419
    %v592 = vunpack.c.h.b16 %v419
    %v593 = vunpack.c.l.b16 %v420
    %v594 = vunpack.c.h.b16 %v420
    %v595 = vunpack.c.l.b16 %v421
    %v596 = vunpack.c.h.b16 %v421
    %v597 = vunpack.c.l.b16 %v422
    %v598 = vunpack.c.h.b16 %v422
    %v599 = vunpack.c.l.b16 %v423
    %v600 = vunpack.c.h.b16 %v423
    %v601 = vunpack.c.l.b16 %v424
    %v602 = vunpack.c.h.b16 %v424
    %v603 = vunpack.c.l.b16 %v425
    %v604 = vunpack.c.h.b16 %v425
    %v605 = vunpack.c.l.b16 %v426
    %v606 = vunpack.c.h.b16 %v426
    %v607 = vunpack.c.l.b16 %v427
    %v608 = vunpack.c.h.b16 %v427
    %v609 = vunpack.c.l.b16 %v428
    %v610 = vunpack.c.h.b16 %v428
    %v611 = vunpack.c.l.b16 %v429
    %v612 = vunpack.c.h.b16 %v429
    %v613 = vunpack.c.l.b16 %v430
    %v614 = vunpack.c.h.b16 %v430
    %v615 = vunpack.c.l.b16 %v431
    %v616 = vunpack.c.h.b16 %v431
    %v617 = vunpack.c.l.b16 %v432
    %v618 = vunpack.c.h.b16 %v432
    %v619 = vunpack.c.l.b16 %v433
    %v620 = vunpack.c.h.b16 %v433
    %v621 = vunpack.c.l.b16 %v434
    %v622 = vunpack.c.h.b16 %v434
    %v623 = vunpack.c.l.b16 %v435
    %v624 = vunpack.c.h.b16 %v435
    %v625 = vunpack.c.l.b16 %v436
    %v626 = vunpack.c.h.b16 %v436
    %v627 = vunpack.c.l.b16 %v437
    %v628 = vunpack.c.h.b16 %v437
    %v629 = vunpack.c.l.b16 %v438
    %v630 = vunpack.c.h.b16 %v438
    %v631 = vunpack.c.l.b16 %v439
    %v632 = vunpack.c.h.b16 %v439
    %v633 = vunpack.c.l.b16 %v440
    %v634 = vunpack.c.h.b16 %v440
    %v635 = vunpack.c.l.b16 %v441
    %v636 = vunpack.c.h.b16 %v441
    %v637 = vunpack.c.l.b16 %v442
    %v638 = vunpack.c.h.b16 %v442
    %v639 = vunpack.c.l.b16 %v443
    %v640 = vunpack.c.h.b16 %v443
    %v641 = vunpack.c.l.b16 %v444
    %v642 = vunpack.c.h.b16 %v444
    %v643 = vunpack.c.l.b16 %v445
    %v644 = vunpack.c.h.b16 %v445
    %v645 = vunpack.c.l.b16 %v446
    %v646 = vunpack.c.h.b16 %v446
    %v647 = vunpack.c.l.b16 %v447
    %v648 = vunpack.c.h.b16 %v447
    %v649 = vunpack.c.l.b16 %v448
    %v650 = vunpack.c.h.b16 %v448
    %v651 = vunpack.c.l.b16 %v449
    %v652 = vunpack.c.h.b16 %v449
    %v653 = vunpack.c.l.b16 %v450
    %v654 = vunpack.c.h.b16 %v450
    %v655 = vunpack.c.l.b16 %v451
    %v656 = vunpack.c.h.b16 %v451
    %v657 = vunpack.c.l.b16 %v452
    %v658 = vunpack.c.h.b16 %v452
    %v659 = vunpack.c.l.b16 %v453
    %v660 = vunpack.c.h.b16 %v453
    %v661 = vunpack.c.l.b16 %v454
    %v662 = vunpack.c.h.b16 %v454
    %v663 = vunpack.c.l.b16 %v455
    %v664 = vunpack.c.h.b16 %v455
    %v665 = vunpack.c.l.b16 %v456
    %v666 = vunpack.c.h.b16 %v456
    %v667 = vunpack.c.l.b16 %v457
    %v668 = vunpack.c.h.b16 %v457
    %v669 = vunpack.c.l.b16 %v458
    %v670 = vunpack.c.h.b16 %v458
    %v671 = vunpack.c.l.b16 %v459
    %v672 = vunpack.c.h.b16 %v459
    %v673 = vunpack.c.l.b16 %v460
    %v674 = vunpack.c.h.b16 %v460
    %v675 = vpack.c.b16 %v551, %v547
    %v676 = vpack.c.b16 %v552, %v548
    %v677 = vpack.c.b16 %v553, %v549
    %v678 = vpack.c.b16 %v554, %v550
    %v679 = vpack.c.b16 %v559, %v555
    %v680 = vpack.c.b16 %v560, %v556
    %v681 = vpack.c.b16 %v561, %v557
    %v682 = vpack.c.b16 %v562, %v558
    %v683 = vpack.c.b16 %v567, %v563
    %v684 = vpack.c.b16 %v568, %v564
    %v685 = vpack.c.b16 %v569, %v565
    %v686 = vpack.c.b16 %v570, %v566
    %v687 = vpack.c.b16 %v575, %v571
    %v688 = vpack.c.b16 %v576, %v572
    %v689 = vpack.c.b16 %v577, %v573
    %v690 = vpack.c.b16 %v578, %v574
    %v691 = vpack.c.b16 %v583, %v579
    %v692 = vpack.c.b16 %v584, %v580
    %v693 = vpack.c.b16 %v585, %v581
    %v694 = vpack.c.b16 %v586, %v582
    %v695 = vpack.c.b16 %v591, %v587
    %v696 = vpack.c.b16 %v592, %v588
    %v697 = vpack.c.b16 %v593, %v589
    %v698 = vpack.c.b16 %v594, %v590
    %v699 = vpack.c.b16 %v599, %v595
    %v700 = vpack.c.b16 %v600, %v596
    %v701 = vpack.c.b16 %v601, %v597
    %v702 = vpack.c.b16 %v602, %v598
    %v703 = vpack.c.b16 %v607, %v603
    %v704 = vpack.c.b16 %v608, %v604
    %v705 = vpack.c.b16 %v609, %v605
    %v706 = vpack.c.b16 %v610, %v606
    %v707 = vpack.c.b16 %v615, %v611
    %v708 = vpack.c.b16 %v616, %v612
    %v709 = vpack.c.b16 %v617, %v613
    %v710 = vpack.c.b16 %v618, %v614
    %v711 = vpack.c.b16 %v623, %v619
    %v712 = vpack.c.b16 %v624, %v620
    %v713 = vpack.c.b16 %v625, %v621
    %v714 = vpack.c.b16 %v626, %v622
    %v715 = vpack.c.b16 %v631, %v627
    %v716 = vpack.c.b16 %v632, %v628
    %v717 = vpack.c.b16 %v633, %v629
    %v718 = vpack.c.b16 %v634, %v630
    %v719 = vpack.c.b16 %v639, %v635
    %v720 = vpack.c.b16 %v640, %v636
    %v721 = vpack.c.b16 %v641, %v637
    %v722 = vpack.c.b16 %v642, %v638
    %v723 = vpack.c.b16 %v647, %v643
    %v724 = vpack.c.b16 %v648, %v644
    %v725 = vpack.c.b16 %v649, %v645
    %v726 = vpack.c.b16 %v650, %v646
    %v727 = vpack.c.b16 %v655, %v651
    %v728 = vpack.c.b16 %v656, %v652
    %v729 = vpack.c.b16 %v657, %v653
    %v730 = vpack.c.b16 %v658, %v654
    %v731 = vpack.c.b16 %v663, %v659
    %v732 = vpack.c.b16 %v664, %v660
    %v733 = vpack.c.b16 %v665, %v661
    %v734 = vpack.c.b16 %v666, %v662
    %v735 = vpack.c.b16 %v671, %v667
    %v736 = vpack.c.b16 %v672, %v668
    %v737 = vpack.c.b16 %v673, %v669
    %v738 = vpack.c.b16 %v674, %v670
    %803 = vmatprep.subr.bf16.mxu0 %v676
    %804 = vmatpush1.bf16.msra.mxu0 %v675
    %805 = vmatprep.subr.bf16.mxu0 %v680
    %806 = vmatpush1.bf16.msra.mxu0 %v679
    %807 = vmatprep.subr.bf16.mxu0 %v684
    %808 = vmatpush1.bf16.msra.mxu0 %v683
    %809 = vmatprep.subr.bf16.mxu0 %v688
    %810 = vmatpush1.bf16.msra.mxu0 %v687
    %811 = vmatprep.subr.bf16.mxu0 %v692
    %812 = vmatpush1.bf16.msra.mxu0 %v691
    %813 = vmatprep.subr.bf16.mxu0 %v696
    %814 = vmatpush1.bf16.msra.mxu0 %v695
    %815 = vmatprep.subr.bf16.mxu0 %v700
    %816 = vmatpush1.bf16.msra.mxu0 %v699
    %817 = vmatprep.subr.bf16.mxu0 %v704
    %818 = vmatpush1.bf16.msra.mxu0 %v703
    %819 = vmatprep.subr.bf16.mxu0 %v708
    %820 = vmatpush1.bf16.msra.mxu0 %v707
    %821 = vmatprep.subr.bf16.mxu0 %v712
    %822 = vmatpush1.bf16.msra.mxu0 %v711
    %823 = vmatprep.subr.bf16.mxu0 %v716
    %824 = vmatpush1.bf16.msra.mxu0 %v715
    %825 = vmatprep.subr.bf16.mxu0 %v720
    %826 = vmatpush1.bf16.msra.mxu0 %v719
    %827 = vmatprep.subr.bf16.mxu0 %v724
    %828 = vmatpush1.bf16.msra.mxu0 %v723
    %829 = vmatprep.subr.bf16.mxu0 %v728
    %830 = vmatpush1.bf16.msra.mxu0 %v727
    %831 = vmatprep.subr.bf16.mxu0 %v732
    %832 = vmatpush1.bf16.msra.mxu0 %v731
    %833 = vmatprep.subr.bf16.mxu0 %v736
    %834 = vmatpush1.bf16.msra.mxu0 %v735
    %835 = vmatprep.mubr.bf16.mxu0 %v396
    %836 = vmatmul.mubr.bf16.gmra.mrb[0].mxu0 %v395
    %v837 = vpop.f32.mrb[0].mxu0
    %v838 = vadd.f32 %v466, %v837
    %v839 = vpop.f32.mrb[0].mxu0
    %v840 = vadd.f32 %v470, %v839
    %v841 = vpop.f32.mrb[0].mxu0
    %v842 = vpop.f32.mrb[0].mxu0
    %843 = vdwg.mxu0
    %844 = vmatprep.subr.bf16.mxu0 %v678
    %845 = vmatpush1.bf16.msra.mxu0 %v677
    %846 = vmatprep.subr.bf16.mxu0 %v682
    %847 = vmatpush1.bf16.msra.mxu0 %v681
    %848 = vmatprep.subr.bf16.mxu0 %v686
    %849 = vmatpush1.bf16.msra.mxu0 %v685
    %850 = vmatprep.subr.bf16.mxu0 %v690
    %851 = vmatpush1.bf16.msra.mxu0 %v689
    %852 = vmatprep.subr.bf16.mxu0 %v694
    %853 = vmatpush1.bf16.msra.mxu0 %v693
    %854 = vmatprep.subr.bf16.mxu0 %v698
    %855 = vmatpush1.bf16.msra.mxu0 %v697
    %856 = vmatprep.subr.bf16.mxu0 %v702
    %857 = vmatpush1.bf16.msra.mxu0 %v701
    %858 = vmatprep.subr.bf16.mxu0 %v706
    %859 = vmatpush1.bf16.msra.mxu0 %v705
    %860 = vmatprep.subr.bf16.mxu0 %v710
    %861 = vmatpush1.bf16.msra.mxu0 %v709
    %862 = vmatprep.subr.bf16.mxu0 %v714
    %863 = vmatpush1.bf16.msra.mxu0 %v713
    %864 = vmatprep.subr.bf16.mxu0 %v718
    %865 = vmatpush1.bf16.msra.mxu0 %v717
    %866 = vmatprep.subr.bf16.mxu0 %v722
    %867 = vmatpush1.bf16.msra.mxu0 %v721
    %868 = vmatprep.subr.bf16.mxu0 %v726
    %869 = vmatpush1.bf16.msra.mxu0 %v725
    %870 = vmatprep.subr.bf16.mxu0 %v730
    %871 = vmatpush1.bf16.msra.mxu0 %v729
    %872 = vmatprep.subr.bf16.mxu0 %v734
    %873 = vmatpush1.bf16.msra.mxu0 %v733
    %874 = vmatprep.subr.bf16.mxu0 %v738
    %875 = vmatpush1.bf16.msra.mxu0 %v737
    %876 = vmatprep.mubr.bf16.mxu0 %v396
    %877 = vmatmul.mubr.bf16.gmra.mrb[0].mxu0 %v395
    %v878 = vpop.f32.mrb[0].mxu0
    %v879 = vadd.f32 %v474, %v878
    %v880 = vpop.f32.mrb[0].mxu0
    %v881 = vadd.f32 %v478, %v880
    %v882 = vpop.f32.mrb[0].mxu0
    %v883 = vpop.f32.mrb[0].mxu0
    %884 = vdwg.mxu0
    %s885 = sld [smem:[#allocation2 + $0x2]]
    %vm886 = vcmp.gt.f32.partialorder %v838, 0.0
    %vm887 = vcmp.gt.f32.partialorder %v840, 0.0
    %vm888 = vcmp.gt.f32.partialorder %v879, 0.0
    %vm889 = vcmp.gt.f32.partialorder %v881, 0.0
    %v890 = vstv %s885
    %v891 = vmul.f32 %v890, %v838
    %v892 = vmul.f32 %v890, %v840
    %v893 = vmul.f32 %v890, %v879
    %v894 = vmul.f32 %v890, %v881
    %v895 = vsel %vm886, %v838, %v891
    %v896 = vsel %vm887, %v840, %v892
    %v897 = vsel %vm888, %v879, %v893
    %v898 = vsel %vm889, %v881, %v894
    %v899 = vpack.c.bf16 %v895, %v895
    %v900 = vpack.c.bf16 %v896, %v896
    %v901 = vpack.c.bf16 %v897, %v897
    %v902 = vpack.c.bf16 %v898, %v898
    %v903 = vld [vmem:[#allocation16] sm:$0xff]
    %v904 = vld [vmem:[#allocation16 + $0x8] sm:$0xff]
    %v905 = vld [vmem:[#allocation16 + $0x10] sm:$0xff]
    %v906 = vld [vmem:[#allocation16 + $0x18] sm:$0xff]
    %v907 = vld [vmem:[#allocation16 + $0x20] sm:$0xff]
    %v908 = vld [vmem:[#allocation16 + $0x28] sm:$0xf]
    %v909 = vld [vmem:[#allocation16 + $0x2c] sm:$0xff]
    %v910 = vld [vmem:[#allocation16 + $0x34] sm:$0xff]
    %v911 = vld [vmem:[#allocation16 + $0x3c] sm:$0xff]
    %v912 = vld [vmem:[#allocation16 + $0x44] sm:$0xff]
    %v913 = vld [vmem:[#allocation16 + $0x4c] sm:$0xff]
    %v914 = vld [vmem:[#allocation16 + $0x54] sm:$0xf]
    %v915 = vld [vmem:[#allocation16 + $0x58] sm:$0xff]
    %v916 = vld [vmem:[#allocation16 + $0x60] sm:$0xff]
    %v917 = vld [vmem:[#allocation16 + $0x68] sm:$0xff]
    %v918 = vld [vmem:[#allocation16 + $0x70] sm:$0xff]
    %v919 = vld [vmem:[#allocation16 + $0x78] sm:$0xff]
    %v920 = vld [vmem:[#allocation16 + $0x80] sm:$0xf]
    %v921 = vld [vmem:[#allocation16 + $0x84] sm:$0xff]
    %v922 = vld [vmem:[#allocation16 + $0x8c] sm:$0xff]
    %v923 = vld [vmem:[#allocation16 + $0x94] sm:$0xff]
    %v924 = vld [vmem:[#allocation16 + $0x9c] sm:$0xff]
    %v925 = vld [vmem:[#allocation16 + $0xa4] sm:$0xff]
    %v926 = vld [vmem:[#allocation16 + $0xac] sm:$0xf]
    %v927 = vld [vmem:[#allocation16 + $0xb0] sm:$0xff]
    %v928 = vld [vmem:[#allocation16 + $0xb8] sm:$0xff]
    %v929 = vld [vmem:[#allocation16 + $0xc0] sm:$0xff]
    %v930 = vld [vmem:[#allocation16 + $0xc8] sm:$0xff]
    %v931 = vld [vmem:[#allocation16 + $0xd0] sm:$0xff]
    %v932 = vld [vmem:[#allocation16 + $0xd8] sm:$0xf]
    %v933 = vld [vmem:[#allocation16 + $0xdc] sm:$0xff]
    %v934 = vld [vmem:[#allocation16 + $0xe4] sm:$0xff]
    %v935 = vld [vmem:[#allocation16 + $0xec] sm:$0xff]
    %v936 = vld [vmem:[#allocation16 + $0xf4] sm:$0xff]
    %v937 = vld [vmem:[#allocation16 + $0xfc] sm:$0xff]
    %v938 = vld [vmem:[#allocation16 + $0x104] sm:$0xf]
    %v939 = vld [vmem:[#allocation16 + $0x108] sm:$0xff]
    %v940 = vld [vmem:[#allocation16 + $0x110] sm:$0xff]
    %v941 = vld [vmem:[#allocation16 + $0x118] sm:$0xff]
    %v942 = vld [vmem:[#allocation16 + $0x120] sm:$0xff]
    %v943 = vld [vmem:[#allocation16 + $0x128] sm:$0xff]
    %v944 = vld [vmem:[#allocation16 + $0x130] sm:$0xf]
    %v945 = vld [vmem:[#allocation16 + $0x134] sm:$0xff]
    %v946 = vld [vmem:[#allocation16 + $0x13c] sm:$0xff]
    %v947 = vld [vmem:[#allocation16 + $0x144] sm:$0xff]
    %v948 = vld [vmem:[#allocation16 + $0x14c] sm:$0xff]
    %v949 = vld [vmem:[#allocation16 + $0x154] sm:$0xff]
    %v950 = vld [vmem:[#allocation16 + $0x15c] sm:$0xf]
    %v951 = vld [vmem:[#allocation16 + $0x160] sm:$0xff]
    %v952 = vld [vmem:[#allocation16 + $0x168] sm:$0xff]
    %v953 = vld [vmem:[#allocation16 + $0x170] sm:$0xff]
    %v954 = vld [vmem:[#allocation16 + $0x178] sm:$0xff]
    %v955 = vld [vmem:[#allocation16 + $0x180] sm:$0xff]
    %v956 = vld [vmem:[#allocation16 + $0x188] sm:$0xf]
    %v957 = vld [vmem:[#allocation16 + $0x18c] sm:$0xff]
    %v958 = vld [vmem:[#allocation16 + $0x194] sm:$0xff]
    %v959 = vld [vmem:[#allocation16 + $0x19c] sm:$0xff]
    %v960 = vld [vmem:[#allocation16 + $0x1a4] sm:$0xff]
    %v961 = vld [vmem:[#allocation16 + $0x1ac] sm:$0xff]
    %v962 = vld [vmem:[#allocation16 + $0x1b4] sm:$0xf]
    %v963 = vld [vmem:[#allocation16 + $0x1b8] sm:$0xff]
    %v964 = vld [vmem:[#allocation16 + $0x1c0] sm:$0xff]
    %v965 = vld [vmem:[#allocation16 + $0x1c8] sm:$0xff]
    %v966 = vld [vmem:[#allocation16 + $0x1d0] sm:$0xff]
    %v967 = vld [vmem:[#allocation16 + $0x1d8] sm:$0xff]
    %v968 = vld [vmem:[#allocation16 + $0x1e0] sm:$0xf]
    %v969 = vld [vmem:[#allocation16 + $0x1e4] sm:$0xff]
    %v970 = vld [vmem:[#allocation16 + $0x1ec] sm:$0xff]
    %v971 = vld [vmem:[#allocation16 + $0x1f4] sm:$0xff]
    %v972 = vld [vmem:[#allocation16 + $0x1fc] sm:$0xff]
    %v973 = vld [vmem:[#allocation16 + $0x204] sm:$0xff]
    %v974 = vld [vmem:[#allocation16 + $0x20c] sm:$0xf]
    %v975 = vld [vmem:[#allocation16 + $0x210] sm:$0xff]
    %v976 = vld [vmem:[#allocation16 + $0x218] sm:$0xff]
    %v977 = vld [vmem:[#allocation16 + $0x220] sm:$0xff]
    %v978 = vld [vmem:[#allocation16 + $0x228] sm:$0xff]
    %v979 = vld [vmem:[#allocation16 + $0x230] sm:$0xff]
    %v980 = vld [vmem:[#allocation16 + $0x238] sm:$0xf]
    %v981 = vld [vmem:[#allocation16 + $0x23c] sm:$0xff]
    %v982 = vld [vmem:[#allocation16 + $0x244] sm:$0xff]
    %v983 = vld [vmem:[#allocation16 + $0x24c] sm:$0xff]
    %v984 = vld [vmem:[#allocation16 + $0x254] sm:$0xff]
    %v985 = vld [vmem:[#allocation16 + $0x25c] sm:$0xff]
    %v986 = vld [vmem:[#allocation16 + $0x264] sm:$0xf]
    %v987 = vld [vmem:[#allocation16 + $0x268] sm:$0xff]
    %v988 = vld [vmem:[#allocation16 + $0x270] sm:$0xff]
    %v989 = vld [vmem:[#allocation16 + $0x278] sm:$0xff]
    %v990 = vld [vmem:[#allocation16 + $0x280] sm:$0xff]
    %v991 = vld [vmem:[#allocation16 + $0x288] sm:$0xff]
    %v992 = vld [vmem:[#allocation16 + $0x290] sm:$0xf]
    %v993 = vld [vmem:[#allocation16 + $0x294] sm:$0xff]
    %v994 = vld [vmem:[#allocation16 + $0x29c] sm:$0xff]
    %v995 = vld [vmem:[#allocation16 + $0x2a4] sm:$0xff]
    %v996 = vld [vmem:[#allocation16 + $0x2ac] sm:$0xff]
    %v997 = vld [vmem:[#allocation16 + $0x2b4] sm:$0xff]
    %v998 = vld [vmem:[#allocation16 + $0x2bc] sm:$0xf]
    %v999 = vld [vmem:[#allocation16 + $0x2c0] sm:$0xff]
    %v1000 = vld [vmem:[#allocation16 + $0x2c8] sm:$0xff]
    %v1001 = vld [vmem:[#allocation16 + $0x2d0] sm:$0xff]
    %v1002 = vld [vmem:[#allocation16 + $0x2d8] sm:$0xff]
    %v1003 = vld [vmem:[#allocation16 + $0x2e0] sm:$0xff]
    %v1004 = vld [vmem:[#allocation16 + $0x2e8] sm:$0xf]
    %v1005 = vld [vmem:[#allocation16 + $0x2ec] sm:$0xff]
    %v1006 = vld [vmem:[#allocation16 + $0x2f4] sm:$0xff]
    %v1007 = vld [vmem:[#allocation16 + $0x2fc] sm:$0xff]
    %v1008 = vld [vmem:[#allocation16 + $0x304] sm:$0xff]
    %v1009 = vld [vmem:[#allocation16 + $0x30c] sm:$0xff]
    %v1010 = vld [vmem:[#allocation16 + $0x314] sm:$0xf]
    %v1011 = vld [vmem:[#allocation16 + $0x318] sm:$0xff]
    %v1012 = vld [vmem:[#allocation16 + $0x320] sm:$0xff]
    %v1013 = vld [vmem:[#allocation16 + $0x328] sm:$0xff]
    %v1014 = vld [vmem:[#allocation16 + $0x330] sm:$0xff]
    %v1015 = vld [vmem:[#allocation16 + $0x338] sm:$0xff]
    %v1016 = vld [vmem:[#allocation16 + $0x340] sm:$0xf]
    %v1017 = vld [vmem:[#allocation16 + $0x344] sm:$0xff]
    %v1018 = vld [vmem:[#allocation16 + $0x34c] sm:$0xff]
    %v1019 = vld [vmem:[#allocation16 + $0x354] sm:$0xff]
    %v1020 = vld [vmem:[#allocation16 + $0x35c] sm:$0xff]
    %v1021 = vld [vmem:[#allocation16 + $0x364] sm:$0xff]
    %v1022 = vld [vmem:[#allocation16 + $0x36c] sm:$0xf]
    %v1023 = vld [vmem:[#allocation16 + $0x370] sm:$0xff]
    %v1024 = vld [vmem:[#allocation16 + $0x378] sm:$0xff]
    %v1025 = vld [vmem:[#allocation16 + $0x380] sm:$0xff]
    %v1026 = vld [vmem:[#allocation16 + $0x388] sm:$0xff]
    %v1027 = vld [vmem:[#allocation16 + $0x390] sm:$0xff]
    %v1028 = vld [vmem:[#allocation16 + $0x398] sm:$0xf]
    %v1029 = vld [vmem:[#allocation16 + $0x39c] sm:$0xff]
    %v1030 = vld [vmem:[#allocation16 + $0x3a4] sm:$0xff]
    %v1031 = vld [vmem:[#allocation16 + $0x3ac] sm:$0xff]
    %v1032 = vld [vmem:[#allocation16 + $0x3b4] sm:$0xff]
    %v1033 = vld [vmem:[#allocation16 + $0x3bc] sm:$0xff]
    %v1034 = vld [vmem:[#allocation16 + $0x3c4] sm:$0xf]
    %v1035 = vld [vmem:[#allocation16 + $0x3c8] sm:$0xff]
    %v1036 = vld [vmem:[#allocation16 + $0x3d0] sm:$0xff]
    %v1037 = vld [vmem:[#allocation16 + $0x3d8] sm:$0xff]
    %v1038 = vld [vmem:[#allocation16 + $0x3e0] sm:$0xff]
    %v1039 = vld [vmem:[#allocation16 + $0x3e8] sm:$0xff]
    %v1040 = vld [vmem:[#allocation16 + $0x3f0] sm:$0xf]
    %v1041 = vld [vmem:[#allocation16 + $0x3f4] sm:$0xff]
    %v1042 = vld [vmem:[#allocation16 + $0x3fc] sm:$0xff]
    %v1043 = vld [vmem:[#allocation16 + $0x404] sm:$0xff]
    %v1044 = vld [vmem:[#allocation16 + $0x40c] sm:$0xff]
    %v1045 = vld [vmem:[#allocation16 + $0x414] sm:$0xff]
    %v1046 = vld [vmem:[#allocation16 + $0x41c] sm:$0xf]
    %v1047 = vld [vmem:[#allocation16 + $0x420] sm:$0xff]
    %v1048 = vld [vmem:[#allocation16 + $0x428] sm:$0xff]
    %v1049 = vld [vmem:[#allocation16 + $0x430] sm:$0xff]
    %v1050 = vld [vmem:[#allocation16 + $0x438] sm:$0xff]
    %v1051 = vld [vmem:[#allocation16 + $0x440] sm:$0xff]
    %v1052 = vld [vmem:[#allocation16 + $0x448] sm:$0xf]
    %v1053 = vld [vmem:[#allocation16 + $0x44c] sm:$0xff]
    %v1054 = vld [vmem:[#allocation16 + $0x454] sm:$0xff]
    %v1055 = vld [vmem:[#allocation16 + $0x45c] sm:$0xff]
    %v1056 = vld [vmem:[#allocation16 + $0x464] sm:$0xff]
    %v1057 = vld [vmem:[#allocation16 + $0x46c] sm:$0xff]
    %v1058 = vld [vmem:[#allocation16 + $0x474] sm:$0xf]
    %v1059 = vld [vmem:[#allocation16 + $0x478] sm:$0xff]
    %v1060 = vld [vmem:[#allocation16 + $0x480] sm:$0xff]
    %v1061 = vld [vmem:[#allocation16 + $0x488] sm:$0xff]
    %v1062 = vld [vmem:[#allocation16 + $0x490] sm:$0xff]
    %v1063 = vld [vmem:[#allocation16 + $0x498] sm:$0xff]
    %v1064 = vld [vmem:[#allocation16 + $0x4a0] sm:$0xf]
    %v1065 = vld [vmem:[#allocation16 + $0x4a4] sm:$0xff]
    %v1066 = vld [vmem:[#allocation16 + $0x4ac] sm:$0xff]
    %v1067 = vld [vmem:[#allocation16 + $0x4b4] sm:$0xff]
    %v1068 = vld [vmem:[#allocation16 + $0x4bc] sm:$0xff]
    %v1069 = vld [vmem:[#allocation16 + $0x4c4] sm:$0xff]
    %v1070 = vld [vmem:[#allocation16 + $0x4cc] sm:$0xf]
    %v1071 = vld [vmem:[#allocation16 + $0x4d0] sm:$0xff]
    %v1072 = vld [vmem:[#allocation16 + $0x4d8] sm:$0xff]
    %v1073 = vld [vmem:[#allocation16 + $0x4e0] sm:$0xff]
    %v1074 = vld [vmem:[#allocation16 + $0x4e8] sm:$0xff]
    %v1075 = vld [vmem:[#allocation16 + $0x4f0] sm:$0xff]
    %v1076 = vld [vmem:[#allocation16 + $0x4f8] sm:$0xf]
    %v1077 = vld [vmem:[#allocation16 + $0x4fc] sm:$0xff]
    %v1078 = vld [vmem:[#allocation16 + $0x504] sm:$0xff]
    %v1079 = vld [vmem:[#allocation16 + $0x50c] sm:$0xff]
    %v1080 = vld [vmem:[#allocation16 + $0x514] sm:$0xff]
    %v1081 = vld [vmem:[#allocation16 + $0x51c] sm:$0xff]
    %v1082 = vld [vmem:[#allocation16 + $0x524] sm:$0xf]
    %v1083 = vld [vmem:[#allocation16 + $0x528] sm:$0xff]
    %v1084 = vld [vmem:[#allocation16 + $0x530] sm:$0xff]
    %v1085 = vld [vmem:[#allocation16 + $0x538] sm:$0xff]
    %v1086 = vld [vmem:[#allocation16 + $0x540] sm:$0xff]
    %v1087 = vld [vmem:[#allocation16 + $0x548] sm:$0xff]
    %v1088 = vld [vmem:[#allocation16 + $0x550] sm:$0xf]
    %v1089 = vld [vmem:[#allocation16 + $0x554] sm:$0xff]
    %v1090 = vld [vmem:[#allocation16 + $0x55c] sm:$0xff]
    %v1091 = vld [vmem:[#allocation16 + $0x564] sm:$0xff]
    %v1092 = vld [vmem:[#allocation16 + $0x56c] sm:$0xff]
    %v1093 = vld [vmem:[#allocation16 + $0x574] sm:$0xff]
    %v1094 = vld [vmem:[#allocation16 + $0x57c] sm:$0xf]
    %v1095 = vld [vmem:[#allocation16 + $0x580] sm:$0xff]
    %v1096 = vld [vmem:[#allocation16 + $0x588] sm:$0xff]
    %v1097 = vld [vmem:[#allocation16 + $0x590] sm:$0xff]
    %v1098 = vld [vmem:[#allocation16 + $0x598] sm:$0xff]
    %v1099 = vld [vmem:[#allocation16 + $0x5a0] sm:$0xff]
    %v1100 = vld [vmem:[#allocation16 + $0x5a8] sm:$0xf]
    %v1101 = vld [vmem:[#allocation16 + $0x5ac] sm:$0xff]
    %v1102 = vld [vmem:[#allocation16 + $0x5b4] sm:$0xff]
    %v1103 = vld [vmem:[#allocation16 + $0x5bc] sm:$0xff]
    %v1104 = vld [vmem:[#allocation16 + $0x5c4] sm:$0xff]
    %v1105 = vld [vmem:[#allocation16 + $0x5cc] sm:$0xff]
    %v1106 = vld [vmem:[#allocation16 + $0x5d4] sm:$0xf]
    %v1107 = vld [vmem:[#allocation16 + $0x5d8] sm:$0xff]
    %v1108 = vld [vmem:[#allocation16 + $0x5e0] sm:$0xff]
    %v1109 = vld [vmem:[#allocation16 + $0x5e8] sm:$0xff]
    %v1110 = vld [vmem:[#allocation16 + $0x5f0] sm:$0xff]
    %v1111 = vld [vmem:[#allocation16 + $0x5f8] sm:$0xff]
    %v1112 = vld [vmem:[#allocation16 + $0x600] sm:$0xf]
    %v1113 = vld [vmem:[#allocation16 + $0x604] sm:$0xff]
    %v1114 = vld [vmem:[#allocation16 + $0x60c] sm:$0xff]
    %v1115 = vld [vmem:[#allocation16 + $0x614] sm:$0xff]
    %v1116 = vld [vmem:[#allocation16 + $0x61c] sm:$0xff]
    %v1117 = vld [vmem:[#allocation16 + $0x624] sm:$0xff]
    %v1118 = vld [vmem:[#allocation16 + $0x62c] sm:$0xf]
    %v1119 = vld [vmem:[#allocation16 + $0x630] sm:$0xff]
    %v1120 = vld [vmem:[#allocation16 + $0x638] sm:$0xff]
    %v1121 = vld [vmem:[#allocation16 + $0x640] sm:$0xff]
    %v1122 = vld [vmem:[#allocation16 + $0x648] sm:$0xff]
    %v1123 = vld [vmem:[#allocation16 + $0x650] sm:$0xff]
    %v1124 = vld [vmem:[#allocation16 + $0x658] sm:$0xf]
    %v1125 = vld [vmem:[#allocation16 + $0x65c] sm:$0xff]
    %v1126 = vld [vmem:[#allocation16 + $0x664] sm:$0xff]
    %v1127 = vld [vmem:[#allocation16 + $0x66c] sm:$0xff]
    %v1128 = vld [vmem:[#allocation16 + $0x674] sm:$0xff]
    %v1129 = vld [vmem:[#allocation16 + $0x67c] sm:$0xff]
    %v1130 = vld [vmem:[#allocation16 + $0x684] sm:$0xf]
    %v1131 = vld [vmem:[#allocation16 + $0x688] sm:$0xff]
    %v1132 = vld [vmem:[#allocation16 + $0x690] sm:$0xff]
    %v1133 = vld [vmem:[#allocation16 + $0x698] sm:$0xff]
    %v1134 = vld [vmem:[#allocation16 + $0x6a0] sm:$0xff]
    %v1135 = vld [vmem:[#allocation16 + $0x6a8] sm:$0xff]
    %v1136 = vld [vmem:[#allocation16 + $0x6b0] sm:$0xf]
    %v1137 = vld [vmem:[#allocation16 + $0x6b4] sm:$0xff]
    %v1138 = vld [vmem:[#allocation16 + $0x6bc] sm:$0xff]
    %v1139 = vld [vmem:[#allocation16 + $0x6c4] sm:$0xff]
    %v1140 = vld [vmem:[#allocation16 + $0x6cc] sm:$0xff]
    %v1141 = vld [vmem:[#allocation16 + $0x6d4] sm:$0xff]
    %v1142 = vld [vmem:[#allocation16 + $0x6dc] sm:$0xf]
    %v1143 = vld [vmem:[#allocation16 + $0x6e0] sm:$0xff]
    %v1144 = vld [vmem:[#allocation16 + $0x6e8] sm:$0xff]
    %v1145 = vld [vmem:[#allocation16 + $0x6f0] sm:$0xff]
    %v1146 = vld [vmem:[#allocation16 + $0x6f8] sm:$0xff]
    %v1147 = vld [vmem:[#allocation16 + $0x700] sm:$0xff]
    %v1148 = vld [vmem:[#allocation16 + $0x708] sm:$0xf]
    %v1149 = vld [vmem:[#allocation16 + $0x70c] sm:$0xff]
    %v1150 = vld [vmem:[#allocation16 + $0x714] sm:$0xff]
    %v1151 = vld [vmem:[#allocation16 + $0x71c] sm:$0xff]
    %v1152 = vld [vmem:[#allocation16 + $0x724] sm:$0xff]
    %v1153 = vld [vmem:[#allocation16 + $0x72c] sm:$0xff]
    %v1154 = vld [vmem:[#allocation16 + $0x734] sm:$0xf]
    %v1155 = vld [vmem:[#allocation16 + $0x738] sm:$0xff]
    %v1156 = vld [vmem:[#allocation16 + $0x740] sm:$0xff]
    %v1157 = vld [vmem:[#allocation16 + $0x748] sm:$0xff]
    %v1158 = vld [vmem:[#allocation16 + $0x750] sm:$0xff]
    %v1159 = vld [vmem:[#allocation16 + $0x758] sm:$0xff]
    %v1160 = vld [vmem:[#allocation16 + $0x760] sm:$0xf]
    %v1161 = vld [vmem:[#allocation16 + $0x764] sm:$0xff]
    %v1162 = vld [vmem:[#allocation16 + $0x76c] sm:$0xff]
    %v1163 = vld [vmem:[#allocation16 + $0x774] sm:$0xff]
    %v1164 = vld [vmem:[#allocation16 + $0x77c] sm:$0xff]
    %v1165 = vld [vmem:[#allocation16 + $0x784] sm:$0xff]
    %v1166 = vld [vmem:[#allocation16 + $0x78c] sm:$0xf]
    %v1167 = vld [vmem:[#allocation16 + $0x790] sm:$0xff]
    %v1168 = vld [vmem:[#allocation16 + $0x798] sm:$0xff]
    %v1169 = vld [vmem:[#allocation16 + $0x7a0] sm:$0xff]
    %v1170 = vld [vmem:[#allocation16 + $0x7a8] sm:$0xff]
    %v1171 = vld [vmem:[#allocation16 + $0x7b0] sm:$0xff]
    %v1172 = vld [vmem:[#allocation16 + $0x7b8] sm:$0xf]
    %v1173 = vld [vmem:[#allocation16 + $0x7bc] sm:$0xff]
    %v1174 = vld [vmem:[#allocation16 + $0x7c4] sm:$0xff]
    %v1175 = vld [vmem:[#allocation16 + $0x7cc] sm:$0xff]
    %v1176 = vld [vmem:[#allocation16 + $0x7d4] sm:$0xff]
    %v1177 = vld [vmem:[#allocation16 + $0x7dc] sm:$0xff]
    %v1178 = vld [vmem:[#allocation16 + $0x7e4] sm:$0xf]
    %v1179 = vld [vmem:[#allocation16 + $0x7e8] sm:$0xff]
    %v1180 = vld [vmem:[#allocation16 + $0x7f0] sm:$0xff]
    %v1181 = vld [vmem:[#allocation16 + $0x7f8] sm:$0xff]
    %v1182 = vld [vmem:[#allocation16 + $0x800] sm:$0xff]
    %v1183 = vld [vmem:[#allocation16 + $0x808] sm:$0xff]
    %v1184 = vld [vmem:[#allocation16 + $0x810] sm:$0xf]
    %v1185 = vld [vmem:[#allocation16 + $0x814] sm:$0xff]
    %v1186 = vld [vmem:[#allocation16 + $0x81c] sm:$0xff]
    %v1187 = vld [vmem:[#allocation16 + $0x824] sm:$0xff]
    %v1188 = vld [vmem:[#allocation16 + $0x82c] sm:$0xff]
    %v1189 = vld [vmem:[#allocation16 + $0x834] sm:$0xff]
    %v1190 = vld [vmem:[#allocation16 + $0x83c] sm:$0xf]
    %v1191 = vld [vmem:[#allocation16 + $0x840] sm:$0xff]
    %v1192 = vld [vmem:[#allocation16 + $0x848] sm:$0xff]
    %v1193 = vld [vmem:[#allocation16 + $0x850] sm:$0xff]
    %v1194 = vld [vmem:[#allocation16 + $0x858] sm:$0xff]
    %v1195 = vld [vmem:[#allocation16 + $0x860] sm:$0xff]
    %v1196 = vld [vmem:[#allocation16 + $0x868] sm:$0xf]
    %v1197 = vld [vmem:[#allocation16 + $0x86c] sm:$0xff]
    %v1198 = vld [vmem:[#allocation16 + $0x874] sm:$0xff]
    %v1199 = vld [vmem:[#allocation16 + $0x87c] sm:$0xff]
    %v1200 = vld [vmem:[#allocation16 + $0x884] sm:$0xff]
    %v1201 = vld [vmem:[#allocation16 + $0x88c] sm:$0xff]
    %v1202 = vld [vmem:[#allocation16 + $0x894] sm:$0xf]
    %v1203 = vld [vmem:[#allocation16 + $0x898] sm:$0xff]
    %v1204 = vld [vmem:[#allocation16 + $0x8a0] sm:$0xff]
    %v1205 = vld [vmem:[#allocation16 + $0x8a8] sm:$0xff]
    %v1206 = vld [vmem:[#allocation16 + $0x8b0] sm:$0xff]
    %v1207 = vld [vmem:[#allocation16 + $0x8b8] sm:$0xff]
    %v1208 = vld [vmem:[#allocation16 + $0x8c0] sm:$0xf]
    %v1209 = vld [vmem:[#allocation16 + $0x8c4] sm:$0xff]
    %v1210 = vld [vmem:[#allocation16 + $0x8cc] sm:$0xff]
    %v1211 = vld [vmem:[#allocation16 + $0x8d4] sm:$0xff]
    %v1212 = vld [vmem:[#allocation16 + $0x8dc] sm:$0xff]
    %v1213 = vld [vmem:[#allocation16 + $0x8e4] sm:$0xff]
    %v1214 = vld [vmem:[#allocation16 + $0x8ec] sm:$0xf]
    %v1215 = vld [vmem:[#allocation16 + $0x8f0] sm:$0xff]
    %v1216 = vld [vmem:[#allocation16 + $0x8f8] sm:$0xff]
    %v1217 = vld [vmem:[#allocation16 + $0x900] sm:$0xff]
    %v1218 = vld [vmem:[#allocation16 + $0x908] sm:$0xff]
    %v1219 = vld [vmem:[#allocation16 + $0x910] sm:$0xff]
    %v1220 = vld [vmem:[#allocation16 + $0x918] sm:$0xf]
    %v1221 = vld [vmem:[#allocation16 + $0x91c] sm:$0xff]
    %v1222 = vld [vmem:[#allocation16 + $0x924] sm:$0xff]
    %v1223 = vld [vmem:[#allocation16 + $0x92c] sm:$0xff]
    %v1224 = vld [vmem:[#allocation16 + $0x934] sm:$0xff]
    %v1225 = vld [vmem:[#allocation16 + $0x93c] sm:$0xff]
    %v1226 = vld [vmem:[#allocation16 + $0x944] sm:$0xf]
    %v1227 = vld [vmem:[#allocation16 + $0x948] sm:$0xff]
    %v1228 = vld [vmem:[#allocation16 + $0x950] sm:$0xff]
    %v1229 = vld [vmem:[#allocation16 + $0x958] sm:$0xff]
    %v1230 = vld [vmem:[#allocation16 + $0x960] sm:$0xff]
    %v1231 = vld [vmem:[#allocation16 + $0x968] sm:$0xff]
    %v1232 = vld [vmem:[#allocation16 + $0x970] sm:$0xf]
    %v1233 = vld [vmem:[#allocation16 + $0x974] sm:$0xff]
    %v1234 = vld [vmem:[#allocation16 + $0x97c] sm:$0xff]
    %v1235 = vld [vmem:[#allocation16 + $0x984] sm:$0xff]
    %v1236 = vld [vmem:[#allocation16 + $0x98c] sm:$0xff]
    %v1237 = vld [vmem:[#allocation16 + $0x994] sm:$0xff]
    %v1238 = vld [vmem:[#allocation16 + $0x99c] sm:$0xf]
    %v1239 = vld [vmem:[#allocation16 + $0x9a0] sm:$0xff]
    %v1240 = vld [vmem:[#allocation16 + $0x9a8] sm:$0xff]
    %v1241 = vld [vmem:[#allocation16 + $0x9b0] sm:$0xff]
    %v1242 = vld [vmem:[#allocation16 + $0x9b8] sm:$0xff]
    %v1243 = vld [vmem:[#allocation16 + $0x9c0] sm:$0xff]
    %v1244 = vld [vmem:[#allocation16 + $0x9c8] sm:$0xf]
    %v1245 = vld [vmem:[#allocation16 + $0x9cc] sm:$0xff]
    %v1246 = vld [vmem:[#allocation16 + $0x9d4] sm:$0xff]
    %v1247 = vld [vmem:[#allocation16 + $0x9dc] sm:$0xff]
    %v1248 = vld [vmem:[#allocation16 + $0x9e4] sm:$0xff]
    %v1249 = vld [vmem:[#allocation16 + $0x9ec] sm:$0xff]
    %v1250 = vld [vmem:[#allocation16 + $0x9f4] sm:$0xf]
    %v1251 = vld [vmem:[#allocation16 + $0x9f8] sm:$0xff]
    %v1252 = vld [vmem:[#allocation16 + $0xa00] sm:$0xff]
    %v1253 = vld [vmem:[#allocation16 + $0xa08] sm:$0xff]
    %v1254 = vld [vmem:[#allocation16 + $0xa10] sm:$0xff]
    %v1255 = vld [vmem:[#allocation16 + $0xa18] sm:$0xff]
    %v1256 = vld [vmem:[#allocation16 + $0xa20] sm:$0xf]
    %v1257 = vld [vmem:[#allocation16 + $0xa24] sm:$0xff]
    %v1258 = vld [vmem:[#allocation16 + $0xa2c] sm:$0xff]
    %v1259 = vld [vmem:[#allocation16 + $0xa34] sm:$0xff]
    %v1260 = vld [vmem:[#allocation16 + $0xa3c] sm:$0xff]
    %v1261 = vld [vmem:[#allocation16 + $0xa44] sm:$0xff]
    %v1262 = vld [vmem:[#allocation16 + $0xa4c] sm:$0xf]
    %v1263 = vld [vmem:[#allocation16 + $0xa50] sm:$0xff]
    %v1264 = vld [vmem:[#allocation16 + $0xa58] sm:$0xff]
    %v1265 = vld [vmem:[#allocation16 + $0xa60] sm:$0xff]
    %v1266 = vld [vmem:[#allocation16 + $0xa68] sm:$0xff]
    %v1267 = vld [vmem:[#allocation16 + $0xa70] sm:$0xff]
    %v1268 = vld [vmem:[#allocation16 + $0xa78] sm:$0xf]
    %v1269 = vld [vmem:[#allocation16 + $0xa7c] sm:$0xff]
    %v1270 = vld [vmem:[#allocation16 + $0xa84] sm:$0xff]
    %v1271 = vld [vmem:[#allocation16 + $0xa8c] sm:$0xff]
    %v1272 = vld [vmem:[#allocation16 + $0xa94] sm:$0xff]
    %v1273 = vld [vmem:[#allocation16 + $0xa9c] sm:$0xff]
    %v1274 = vld [vmem:[#allocation16 + $0xaa4] sm:$0xf]
    %v1275 = vld [vmem:[#allocation16 + $0xaa8] sm:$0xff]
    %v1276 = vld [vmem:[#allocation16 + $0xab0] sm:$0xff]
    %v1277 = vld [vmem:[#allocation16 + $0xab8] sm:$0xff]
    %v1278 = vld [vmem:[#allocation16 + $0xac0] sm:$0xff]
    %v1279 = vld [vmem:[#allocation16 + $0xac8] sm:$0xff]
    %v1280 = vld [vmem:[#allocation16 + $0xad0] sm:$0xf]
    %v1281 = vld [vmem:[#allocation16 + $0xad4] sm:$0xff]
    %v1282 = vld [vmem:[#allocation16 + $0xadc] sm:$0xff]
    %v1283 = vld [vmem:[#allocation16 + $0xae4] sm:$0xff]
    %v1284 = vld [vmem:[#allocation16 + $0xaec] sm:$0xff]
    %v1285 = vld [vmem:[#allocation16 + $0xaf4] sm:$0xff]
    %v1286 = vld [vmem:[#allocation16 + $0xafc] sm:$0xf]
    %v1287 = vld [vmem:[#allocation18] sm:$0xff]
    %v1288 = vld [vmem:[#allocation18 + $0x8] sm:$0x7]
    %v1291 = vlaneseq
    %v1292 = vshrl.u32 %v1291, 7
    %v1293 = vsub.s32 0, %v1292
    %v1294 = vrot.slane %v1287, %v1293
    %v1295 = vlaneseq
    %v1296 = vshrl.u32 %v1295, 7
    %v1297 = vsub.s32 1, %v1296
    %v1298 = vrot.slane %v1287, %v1297
    %v1299 = vlaneseq
    %v1300 = vshrl.u32 %v1299, 7
    %v1301 = vsub.s32 2, %v1300
    %v1302 = vrot.slane %v1287, %v1301
    %v1303 = vlaneseq
    %v1304 = vshrl.u32 %v1303, 7
    %v1305 = vsub.s32 3, %v1304
    %v1306 = vrot.slane %v1287, %v1305
    %v1307 = vlaneseq
    %v1308 = vshrl.u32 %v1307, 7
    %v1309 = vsub.s32 4, %v1308
    %v1310 = vrot.slane %v1287, %v1309
    %v1311 = vlaneseq
    %v1312 = vshrl.u32 %v1311, 7
    %v1313 = vsub.s32 5, %v1312
    %v1314 = vrot.slane %v1287, %v1313
    %v1315 = vlaneseq
    %v1316 = vshrl.u32 %v1315, 7
    %v1317 = vsub.s32 6, %v1316
    %v1318 = vrot.slane %v1287, %v1317
    %v1319 = vlaneseq
    %v1320 = vshrl.u32 %v1319, 7
    %v1321 = vsub.s32 7, %v1320
    %v1322 = vrot.slane %v1287, %v1321
    %v1323 = vlaneseq
    %v1324 = vshrl.u32 %v1323, 7
    %v1325 = vsub.s32 0, %v1324
    %v1326 = vrot.slane %v1288, %v1325
    %v1327 = vlaneseq
    %v1328 = vshrl.u32 %v1327, 7
    %v1329 = vsub.s32 1, %v1328
    %v1330 = vrot.slane %v1288, %v1329
    %v1331 = vlaneseq
    %v1332 = vshrl.u32 %v1331, 7
    %v1333 = vsub.s32 2, %v1332
    %v1334 = vrot.slane %v1288, %v1333
    %v1730 = vunpack.c.l.b16 %v903
    %v1731 = vunpack.c.h.b16 %v903
    %v1732 = vunpack.c.l.b16 %v904
    %v1733 = vunpack.c.h.b16 %v904
    %v1734 = vunpack.c.l.b16 %v905
    %v1735 = vunpack.c.h.b16 %v905
    %v1736 = vunpack.c.l.b16 %v906
    %v1737 = vunpack.c.h.b16 %v906
    %v1738 = vunpack.c.l.b16 %v907
    %v1739 = vunpack.c.h.b16 %v907
    %v1740 = vunpack.c.l.b16 %v908
    %v1741 = vunpack.c.l.b16 %v909
    %v1742 = vunpack.c.h.b16 %v909
    %v1743 = vunpack.c.l.b16 %v910
    %v1744 = vunpack.c.h.b16 %v910
    %v1745 = vunpack.c.l.b16 %v911
    %v1746 = vunpack.c.h.b16 %v911
    %v1747 = vunpack.c.l.b16 %v912
    %v1748 = vunpack.c.h.b16 %v912
    %v1749 = vunpack.c.l.b16 %v913
    %v1750 = vunpack.c.h.b16 %v913
    %v1751 = vunpack.c.l.b16 %v914
    %v1752 = vunpack.c.l.b16 %v915
    %v1753 = vunpack.c.h.b16 %v915
    %v1754 = vunpack.c.l.b16 %v916
    %v1755 = vunpack.c.h.b16 %v916
    %v1756 = vunpack.c.l.b16 %v917
    %v1757 = vunpack.c.h.b16 %v917
    %v1758 = vunpack.c.l.b16 %v918
    %v1759 = vunpack.c.h.b16 %v918
    %v1760 = vunpack.c.l.b16 %v919
    %v1761 = vunpack.c.h.b16 %v919
    %v1762 = vunpack.c.l.b16 %v920
    %v1763 = vunpack.c.l.b16 %v921
    %v1764 = vunpack.c.h.b16 %v921
    %v1765 = vunpack.c.l.b16 %v922
    %v1766 = vunpack.c.h.b16 %v922
    %v1767 = vunpack.c.l.b16 %v923
    %v1768 = vunpack.c.h.b16 %v923
    %v1769 = vunpack.c.l.b16 %v924
    %v1770 = vunpack.c.h.b16 %v924
    %v1771 = vunpack.c.l.b16 %v925
    %v1772 = vunpack.c.h.b16 %v925
    %v1773 = vunpack.c.l.b16 %v926
    %v1774 = vunpack.c.l.b16 %v927
    %v1775 = vunpack.c.h.b16 %v927
    %v1776 = vunpack.c.l.b16 %v928
    %v1777 = vunpack.c.h.b16 %v928
    %v1778 = vunpack.c.l.b16 %v929
    %v1779 = vunpack.c.h.b16 %v929
    %v1780 = vunpack.c.l.b16 %v930
    %v1781 = vunpack.c.h.b16 %v930
    %v1782 = vunpack.c.l.b16 %v931
    %v1783 = vunpack.c.h.b16 %v931
    %v1784 = vunpack.c.l.b16 %v932
    %v1785 = vunpack.c.l.b16 %v933
    %v1786 = vunpack.c.h.b16 %v933
    %v1787 = vunpack.c.l.b16 %v934
    %v1788 = vunpack.c.h.b16 %v934
    %v1789 = vunpack.c.l.b16 %v935
    %v1790 = vunpack.c.h.b16 %v935
    %v1791 = vunpack.c.l.b16 %v936
    %v1792 = vunpack.c.h.b16 %v936
    %v1793 = vunpack.c.l.b16 %v937
    %v1794 = vunpack.c.h.b16 %v937
    %v1795 = vunpack.c.l.b16 %v938
    %v1796 = vunpack.c.l.b16 %v939
    %v1797 = vunpack.c.h.b16 %v939
    %v1798 = vunpack.c.l.b16 %v940
    %v1799 = vunpack.c.h.b16 %v940
    %v1800 = vunpack.c.l.b16 %v941
    %v1801 = vunpack.c.h.b16 %v941
    %v1802 = vunpack.c.l.b16 %v942
    %v1803 = vunpack.c.h.b16 %v942
    %v1804 = vunpack.c.l.b16 %v943
    %v1805 = vunpack.c.h.b16 %v943
    %v1806 = vunpack.c.l.b16 %v944
    %v1807 = vunpack.c.l.b16 %v945
    %v1808 = vunpack.c.h.b16 %v945
    %v1809 = vunpack.c.l.b16 %v946
    %v1810 = vunpack.c.h.b16 %v946
    %v1811 = vunpack.c.l.b16 %v947
    %v1812 = vunpack.c.h.b16 %v947
    %v1813 = vunpack.c.l.b16 %v948
    %v1814 = vunpack.c.h.b16 %v948
    %v1815 = vunpack.c.l.b16 %v949
    %v1816 = vunpack.c.h.b16 %v949
    %v1817 = vunpack.c.l.b16 %v950
    %v1818 = vunpack.c.l.b16 %v951
    %v1819 = vunpack.c.h.b16 %v951
    %v1820 = vunpack.c.l.b16 %v952
    %v1821 = vunpack.c.h.b16 %v952
    %v1822 = vunpack.c.l.b16 %v953
    %v1823 = vunpack.c.h.b16 %v953
    %v1824 = vunpack.c.l.b16 %v954
    %v1825 = vunpack.c.h.b16 %v954
    %v1826 = vunpack.c.l.b16 %v955
    %v1827 = vunpack.c.h.b16 %v955
    %v1828 = vunpack.c.l.b16 %v956
    %v1829 = vunpack.c.l.b16 %v957
    %v1830 = vunpack.c.h.b16 %v957
    %v1831 = vunpack.c.l.b16 %v958
    %v1832 = vunpack.c.h.b16 %v958
    %v1833 = vunpack.c.l.b16 %v959
    %v1834 = vunpack.c.h.b16 %v959
    %v1835 = vunpack.c.l.b16 %v960
    %v1836 = vunpack.c.h.b16 %v960
    %v1837 = vunpack.c.l.b16 %v961
    %v1838 = vunpack.c.h.b16 %v961
    %v1839 = vunpack.c.l.b16 %v962
    %v1840 = vunpack.c.l.b16 %v963
    %v1841 = vunpack.c.h.b16 %v963
    %v1842 = vunpack.c.l.b16 %v964
    %v1843 = vunpack.c.h.b16 %v964
    %v1844 = vunpack.c.l.b16 %v965
    %v1845 = vunpack.c.h.b16 %v965
    %v1846 = vunpack.c.l.b16 %v966
    %v1847 = vunpack.c.h.b16 %v966
    %v1848 = vunpack.c.l.b16 %v967
    %v1849 = vunpack.c.h.b16 %v967
    %v1850 = vunpack.c.l.b16 %v968
    %v1851 = vunpack.c.l.b16 %v969
    %v1852 = vunpack.c.h.b16 %v969
    %v1853 = vunpack.c.l.b16 %v970
    %v1854 = vunpack.c.h.b16 %v970
    %v1855 = vunpack.c.l.b16 %v971
    %v1856 = vunpack.c.h.b16 %v971
    %v1857 = vunpack.c.l.b16 %v972
    %v1858 = vunpack.c.h.b16 %v972
    %v1859 = vunpack.c.l.b16 %v973
    %v1860 = vunpack.c.h.b16 %v973
    %v1861 = vunpack.c.l.b16 %v974
    %v1862 = vunpack.c.l.b16 %v975
    %v1863 = vunpack.c.h.b16 %v975
    %v1864 = vunpack.c.l.b16 %v976
    %v1865 = vunpack.c.h.b16 %v976
    %v1866 = vunpack.c.l.b16 %v977
    %v1867 = vunpack.c.h.b16 %v977
    %v1868 = vunpack.c.l.b16 %v978
    %v1869 = vunpack.c.h.b16 %v978
    %v1870 = vunpack.c.l.b16 %v979
    %v1871 = vunpack.c.h.b16 %v979
    %v1872 = vunpack.c.l.b16 %v980
    %v1873 = vunpack.c.l.b16 %v981
    %v1874 = vunpack.c.h.b16 %v981
    %v1875 = vunpack.c.l.b16 %v982
    %v1876 = vunpack.c.h.b16 %v982
    %v1877 = vunpack.c.l.b16 %v983
    %v1878 = vunpack.c.h.b16 %v983
    %v1879 = vunpack.c.l.b16 %v984
    %v1880 = vunpack.c.h.b16 %v984
    %v1881 = vunpack.c.l.b16 %v985
    %v1882 = vunpack.c.h.b16 %v985
    %v1883 = vunpack.c.l.b16 %v986
    %v1884 = vunpack.c.l.b16 %v987
    %v1885 = vunpack.c.h.b16 %v987
    %v1886 = vunpack.c.l.b16 %v988
    %v1887 = vunpack.c.h.b16 %v988
    %v1888 = vunpack.c.l.b16 %v989
    %v1889 = vunpack.c.h.b16 %v989
    %v1890 = vunpack.c.l.b16 %v990
    %v1891 = vunpack.c.h.b16 %v990
    %v1892 = vunpack.c.l.b16 %v991
    %v1893 = vunpack.c.h.b16 %v991
    %v1894 = vunpack.c.l.b16 %v992
    %v1895 = vunpack.c.l.b16 %v993
    %v1896 = vunpack.c.h.b16 %v993
    %v1897 = vunpack.c.l.b16 %v994
    %v1898 = vunpack.c.h.b16 %v994
    %v1899 = vunpack.c.l.b16 %v995
    %v1900 = vunpack.c.h.b16 %v995
    %v1901 = vunpack.c.l.b16 %v996
    %v1902 = vunpack.c.h.b16 %v996
    %v1903 = vunpack.c.l.b16 %v997
    %v1904 = vunpack.c.h.b16 %v997
    %v1905 = vunpack.c.l.b16 %v998
    %v1906 = vunpack.c.l.b16 %v999
    %v1907 = vunpack.c.h.b16 %v999
    %v1908 = vunpack.c.l.b16 %v1000
    %v1909 = vunpack.c.h.b16 %v1000
    %v1910 = vunpack.c.l.b16 %v1001
    %v1911 = vunpack.c.h.b16 %v1001
    %v1912 = vunpack.c.l.b16 %v1002
    %v1913 = vunpack.c.h.b16 %v1002
    %v1914 = vunpack.c.l.b16 %v1003
    %v1915 = vunpack.c.h.b16 %v1003
    %v1916 = vunpack.c.l.b16 %v1004
    %v1917 = vunpack.c.l.b16 %v1005
    %v1918 = vunpack.c.h.b16 %v1005
    %v1919 = vunpack.c.l.b16 %v1006
    %v1920 = vunpack.c.h.b16 %v1006
    %v1921 = vunpack.c.l.b16 %v1007
    %v1922 = vunpack.c.h.b16 %v1007
    %v1923 = vunpack.c.l.b16 %v1008
    %v1924 = vunpack.c.h.b16 %v1008
    %v1925 = vunpack.c.l.b16 %v1009
    %v1926 = vunpack.c.h.b16 %v1009
    %v1927 = vunpack.c.l.b16 %v1010
    %v1928 = vunpack.c.l.b16 %v1011
    %v1929 = vunpack.c.h.b16 %v1011
    %v1930 = vunpack.c.l.b16 %v1012
    %v1931 = vunpack.c.h.b16 %v1012
    %v1932 = vunpack.c.l.b16 %v1013
    %v1933 = vunpack.c.h.b16 %v1013
    %v1934 = vunpack.c.l.b16 %v1014
    %v1935 = vunpack.c.h.b16 %v1014
    %v1936 = vunpack.c.l.b16 %v1015
    %v1937 = vunpack.c.h.b16 %v1015
    %v1938 = vunpack.c.l.b16 %v1016
    %v1939 = vunpack.c.l.b16 %v1017
    %v1940 = vunpack.c.h.b16 %v1017
    %v1941 = vunpack.c.l.b16 %v1018
    %v1942 = vunpack.c.h.b16 %v1018
    %v1943 = vunpack.c.l.b16 %v1019
    %v1944 = vunpack.c.h.b16 %v1019
    %v1945 = vunpack.c.l.b16 %v1020
    %v1946 = vunpack.c.h.b16 %v1020
    %v1947 = vunpack.c.l.b16 %v1021
    %v1948 = vunpack.c.h.b16 %v1021
    %v1949 = vunpack.c.l.b16 %v1022
    %v1950 = vunpack.c.l.b16 %v1023
    %v1951 = vunpack.c.h.b16 %v1023
    %v1952 = vunpack.c.l.b16 %v1024
    %v1953 = vunpack.c.h.b16 %v1024
    %v1954 = vunpack.c.l.b16 %v1025
    %v1955 = vunpack.c.h.b16 %v1025
    %v1956 = vunpack.c.l.b16 %v1026
    %v1957 = vunpack.c.h.b16 %v1026
    %v1958 = vunpack.c.l.b16 %v1027
    %v1959 = vunpack.c.h.b16 %v1027
    %v1960 = vunpack.c.l.b16 %v1028
    %v1961 = vunpack.c.l.b16 %v1029
    %v1962 = vunpack.c.h.b16 %v1029
    %v1963 = vunpack.c.l.b16 %v1030
    %v1964 = vunpack.c.h.b16 %v1030
    %v1965 = vunpack.c.l.b16 %v1031
    %v1966 = vunpack.c.h.b16 %v1031
    %v1967 = vunpack.c.l.b16 %v1032
    %v1968 = vunpack.c.h.b16 %v1032
    %v1969 = vunpack.c.l.b16 %v1033
    %v1970 = vunpack.c.h.b16 %v1033
    %v1971 = vunpack.c.l.b16 %v1034
    %v1972 = vunpack.c.l.b16 %v1035
    %v1973 = vunpack.c.h.b16 %v1035
    %v1974 = vunpack.c.l.b16 %v1036
    %v1975 = vunpack.c.h.b16 %v1036
    %v1976 = vunpack.c.l.b16 %v1037
    %v1977 = vunpack.c.h.b16 %v1037
    %v1978 = vunpack.c.l.b16 %v1038
    %v1979 = vunpack.c.h.b16 %v1038
    %v1980 = vunpack.c.l.b16 %v1039
    %v1981 = vunpack.c.h.b16 %v1039
    %v1982 = vunpack.c.l.b16 %v1040
    %v1983 = vunpack.c.l.b16 %v1041
    %v1984 = vunpack.c.h.b16 %v1041
    %v1985 = vunpack.c.l.b16 %v1042
    %v1986 = vunpack.c.h.b16 %v1042
    %v1987 = vunpack.c.l.b16 %v1043
    %v1988 = vunpack.c.h.b16 %v1043
    %v1989 = vunpack.c.l.b16 %v1044
    %v1990 = vunpack.c.h.b16 %v1044
    %v1991 = vunpack.c.l.b16 %v1045
    %v1992 = vunpack.c.h.b16 %v1045
    %v1993 = vunpack.c.l.b16 %v1046
    %v1994 = vunpack.c.l.b16 %v1047
    %v1995 = vunpack.c.h.b16 %v1047
    %v1996 = vunpack.c.l.b16 %v1048
    %v1997 = vunpack.c.h.b16 %v1048
    %v1998 = vunpack.c.l.b16 %v1049
    %v1999 = vunpack.c.h.b16 %v1049
    %v2000 = vunpack.c.l.b16 %v1050
    %v2001 = vunpack.c.h.b16 %v1050
    %v2002 = vunpack.c.l.b16 %v1051
    %v2003 = vunpack.c.h.b16 %v1051
    %v2004 = vunpack.c.l.b16 %v1052
    %v2005 = vunpack.c.l.b16 %v1053
    %v2006 = vunpack.c.h.b16 %v1053
    %v2007 = vunpack.c.l.b16 %v1054
    %v2008 = vunpack.c.h.b16 %v1054
    %v2009 = vunpack.c.l.b16 %v1055
    %v2010 = vunpack.c.h.b16 %v1055
    %v2011 = vunpack.c.l.b16 %v1056
    %v2012 = vunpack.c.h.b16 %v1056
    %v2013 = vunpack.c.l.b16 %v1057
    %v2014 = vunpack.c.h.b16 %v1057
    %v2015 = vunpack.c.l.b16 %v1058
    %v2016 = vunpack.c.l.b16 %v1059
    %v2017 = vunpack.c.h.b16 %v1059
    %v2018 = vunpack.c.l.b16 %v1060
    %v2019 = vunpack.c.h.b16 %v1060
    %v2020 = vunpack.c.l.b16 %v1061
    %v2021 = vunpack.c.h.b16 %v1061
    %v2022 = vunpack.c.l.b16 %v1062
    %v2023 = vunpack.c.h.b16 %v1062
    %v2024 = vunpack.c.l.b16 %v1063
    %v2025 = vunpack.c.h.b16 %v1063
    %v2026 = vunpack.c.l.b16 %v1064
    %v2027 = vunpack.c.l.b16 %v1065
    %v2028 = vunpack.c.h.b16 %v1065
    %v2029 = vunpack.c.l.b16 %v1066
    %v2030 = vunpack.c.h.b16 %v1066
    %v2031 = vunpack.c.l.b16 %v1067
    %v2032 = vunpack.c.h.b16 %v1067
    %v2033 = vunpack.c.l.b16 %v1068
    %v2034 = vunpack.c.h.b16 %v1068
    %v2035 = vunpack.c.l.b16 %v1069
    %v2036 = vunpack.c.h.b16 %v1069
    %v2037 = vunpack.c.l.b16 %v1070
    %v2038 = vunpack.c.l.b16 %v1071
    %v2039 = vunpack.c.h.b16 %v1071
    %v2040 = vunpack.c.l.b16 %v1072
    %v2041 = vunpack.c.h.b16 %v1072
    %v2042 = vunpack.c.l.b16 %v1073
    %v2043 = vunpack.c.h.b16 %v1073
    %v2044 = vunpack.c.l.b16 %v1074
    %v2045 = vunpack.c.h.b16 %v1074
    %v2046 = vunpack.c.l.b16 %v1075
    %v2047 = vunpack.c.h.b16 %v1075
    %v2048 = vunpack.c.l.b16 %v1076
    %v2049 = vunpack.c.l.b16 %v1077
    %v2050 = vunpack.c.h.b16 %v1077
    %v2051 = vunpack.c.l.b16 %v1078
    %v2052 = vunpack.c.h.b16 %v1078
    %v2053 = vunpack.c.l.b16 %v1079
    %v2054 = vunpack.c.h.b16 %v1079
    %v2055 = vunpack.c.l.b16 %v1080
    %v2056 = vunpack.c.h.b16 %v1080
    %v2057 = vunpack.c.l.b16 %v1081
    %v2058 = vunpack.c.h.b16 %v1081
    %v2059 = vunpack.c.l.b16 %v1082
    %v2060 = vunpack.c.l.b16 %v1083
    %v2061 = vunpack.c.h.b16 %v1083
    %v2062 = vunpack.c.l.b16 %v1084
    %v2063 = vunpack.c.h.b16 %v1084
    %v2064 = vunpack.c.l.b16 %v1085
    %v2065 = vunpack.c.h.b16 %v1085
    %v2066 = vunpack.c.l.b16 %v1086
    %v2067 = vunpack.c.h.b16 %v1086
    %v2068 = vunpack.c.l.b16 %v1087
    %v2069 = vunpack.c.h.b16 %v1087
    %v2070 = vunpack.c.l.b16 %v1088
    %v2071 = vunpack.c.l.b16 %v1089
    %v2072 = vunpack.c.h.b16 %v1089
    %v2073 = vunpack.c.l.b16 %v1090
    %v2074 = vunpack.c.h.b16 %v1090
    %v2075 = vunpack.c.l.b16 %v1091
    %v2076 = vunpack.c.h.b16 %v1091
    %v2077 = vunpack.c.l.b16 %v1092
    %v2078 = vunpack.c.h.b16 %v1092
    %v2079 = vunpack.c.l.b16 %v1093
    %v2080 = vunpack.c.h.b16 %v1093
    %v2081 = vunpack.c.l.b16 %v1094
    %v2082 = vunpack.c.l.b16 %v1095
    %v2083 = vunpack.c.h.b16 %v1095
    %v2084 = vunpack.c.l.b16 %v1096
    %v2085 = vunpack.c.h.b16 %v1096
    %v2086 = vunpack.c.l.b16 %v1097
    %v2087 = vunpack.c.h.b16 %v1097
    %v2088 = vunpack.c.l.b16 %v1098
    %v2089 = vunpack.c.h.b16 %v1098
    %v2090 = vunpack.c.l.b16 %v1099
    %v2091 = vunpack.c.h.b16 %v1099
    %v2092 = vunpack.c.l.b16 %v1100
    %v2093 = vunpack.c.l.b16 %v1101
    %v2094 = vunpack.c.h.b16 %v1101
    %v2095 = vunpack.c.l.b16 %v1102
    %v2096 = vunpack.c.h.b16 %v1102
    %v2097 = vunpack.c.l.b16 %v1103
    %v2098 = vunpack.c.h.b16 %v1103
    %v2099 = vunpack.c.l.b16 %v1104
    %v2100 = vunpack.c.h.b16 %v1104
    %v2101 = vunpack.c.l.b16 %v1105
    %v2102 = vunpack.c.h.b16 %v1105
    %v2103 = vunpack.c.l.b16 %v1106
    %v2104 = vunpack.c.l.b16 %v1107
    %v2105 = vunpack.c.h.b16 %v1107
    %v2106 = vunpack.c.l.b16 %v1108
    %v2107 = vunpack.c.h.b16 %v1108
    %v2108 = vunpack.c.l.b16 %v1109
    %v2109 = vunpack.c.h.b16 %v1109
    %v2110 = vunpack.c.l.b16 %v1110
    %v2111 = vunpack.c.h.b16 %v1110
    %v2112 = vunpack.c.l.b16 %v1111
    %v2113 = vunpack.c.h.b16 %v1111
    %v2114 = vunpack.c.l.b16 %v1112
    %v2115 = vunpack.c.l.b16 %v1113
    %v2116 = vunpack.c.h.b16 %v1113
    %v2117 = vunpack.c.l.b16 %v1114
    %v2118 = vunpack.c.h.b16 %v1114
    %v2119 = vunpack.c.l.b16 %v1115
    %v2120 = vunpack.c.h.b16 %v1115
    %v2121 = vunpack.c.l.b16 %v1116
    %v2122 = vunpack.c.h.b16 %v1116
    %v2123 = vunpack.c.l.b16 %v1117
    %v2124 = vunpack.c.h.b16 %v1117
    %v2125 = vunpack.c.l.b16 %v1118
    %v2126 = vunpack.c.l.b16 %v1119
    %v2127 = vunpack.c.h.b16 %v1119
    %v2128 = vunpack.c.l.b16 %v1120
    %v2129 = vunpack.c.h.b16 %v1120
    %v2130 = vunpack.c.l.b16 %v1121
    %v2131 = vunpack.c.h.b16 %v1121
    %v2132 = vunpack.c.l.b16 %v1122
    %v2133 = vunpack.c.h.b16 %v1122
    %v2134 = vunpack.c.l.b16 %v1123
    %v2135 = vunpack.c.h.b16 %v1123
    %v2136 = vunpack.c.l.b16 %v1124
    %v2137 = vunpack.c.l.b16 %v1125
    %v2138 = vunpack.c.h.b16 %v1125
    %v2139 = vunpack.c.l.b16 %v1126
    %v2140 = vunpack.c.h.b16 %v1126
    %v2141 = vunpack.c.l.b16 %v1127
    %v2142 = vunpack.c.h.b16 %v1127
    %v2143 = vunpack.c.l.b16 %v1128
    %v2144 = vunpack.c.h.b16 %v1128
    %v2145 = vunpack.c.l.b16 %v1129
    %v2146 = vunpack.c.h.b16 %v1129
    %v2147 = vunpack.c.l.b16 %v1130
    %v2148 = vunpack.c.l.b16 %v1131
    %v2149 = vunpack.c.h.b16 %v1131
    %v2150 = vunpack.c.l.b16 %v1132
    %v2151 = vunpack.c.h.b16 %v1132
    %v2152 = vunpack.c.l.b16 %v1133
    %v2153 = vunpack.c.h.b16 %v1133
    %v2154 = vunpack.c.l.b16 %v1134
    %v2155 = vunpack.c.h.b16 %v1134
    %v2156 = vunpack.c.l.b16 %v1135
    %v2157 = vunpack.c.h.b16 %v1135
    %v2158 = vunpack.c.l.b16 %v1136
    %v2159 = vunpack.c.l.b16 %v1137
    %v2160 = vunpack.c.h.b16 %v1137
    %v2161 = vunpack.c.l.b16 %v1138
    %v2162 = vunpack.c.h.b16 %v1138
    %v2163 = vunpack.c.l.b16 %v1139
    %v2164 = vunpack.c.h.b16 %v1139
    %v2165 = vunpack.c.l.b16 %v1140
    %v2166 = vunpack.c.h.b16 %v1140
    %v2167 = vunpack.c.l.b16 %v1141
    %v2168 = vunpack.c.h.b16 %v1141
    %v2169 = vunpack.c.l.b16 %v1142
    %v2170 = vunpack.c.l.b16 %v1143
    %v2171 = vunpack.c.h.b16 %v1143
    %v2172 = vunpack.c.l.b16 %v1144
    %v2173 = vunpack.c.h.b16 %v1144
    %v2174 = vunpack.c.l.b16 %v1145
    %v2175 = vunpack.c.h.b16 %v1145
    %v2176 = vunpack.c.l.b16 %v1146
    %v2177 = vunpack.c.h.b16 %v1146
    %v2178 = vunpack.c.l.b16 %v1147
    %v2179 = vunpack.c.h.b16 %v1147
    %v2180 = vunpack.c.l.b16 %v1148
    %v2181 = vunpack.c.l.b16 %v1149
    %v2182 = vunpack.c.h.b16 %v1149
    %v2183 = vunpack.c.l.b16 %v1150
    %v2184 = vunpack.c.h.b16 %v1150
    %v2185 = vunpack.c.l.b16 %v1151
    %v2186 = vunpack.c.h.b16 %v1151
    %v2187 = vunpack.c.l.b16 %v1152
    %v2188 = vunpack.c.h.b16 %v1152
    %v2189 = vunpack.c.l.b16 %v1153
    %v2190 = vunpack.c.h.b16 %v1153
    %v2191 = vunpack.c.l.b16 %v1154
    %v2192 = vunpack.c.l.b16 %v1155
    %v2193 = vunpack.c.h.b16 %v1155
    %v2194 = vunpack.c.l.b16 %v1156
    %v2195 = vunpack.c.h.b16 %v1156
    %v2196 = vunpack.c.l.b16 %v1157
    %v2197 = vunpack.c.h.b16 %v1157
    %v2198 = vunpack.c.l.b16 %v1158
    %v2199 = vunpack.c.h.b16 %v1158
    %v2200 = vunpack.c.l.b16 %v1159
    %v2201 = vunpack.c.h.b16 %v1159
    %v2202 = vunpack.c.l.b16 %v1160
    %v2203 = vunpack.c.l.b16 %v1161
    %v2204 = vunpack.c.h.b16 %v1161
    %v2205 = vunpack.c.l.b16 %v1162
    %v2206 = vunpack.c.h.b16 %v1162
    %v2207 = vunpack.c.l.b16 %v1163
    %v2208 = vunpack.c.h.b16 %v1163
    %v2209 = vunpack.c.l.b16 %v1164
    %v2210 = vunpack.c.h.b16 %v1164
    %v2211 = vunpack.c.l.b16 %v1165
    %v2212 = vunpack.c.h.b16 %v1165
    %v2213 = vunpack.c.l.b16 %v1166
    %v2214 = vunpack.c.l.b16 %v1167
    %v2215 = vunpack.c.h.b16 %v1167
    %v2216 = vunpack.c.l.b16 %v1168
    %v2217 = vunpack.c.h.b16 %v1168
    %v2218 = vunpack.c.l.b16 %v1169
    %v2219 = vunpack.c.h.b16 %v1169
    %v2220 = vunpack.c.l.b16 %v1170
    %v2221 = vunpack.c.h.b16 %v1170
    %v2222 = vunpack.c.l.b16 %v1171
    %v2223 = vunpack.c.h.b16 %v1171
    %v2224 = vunpack.c.l.b16 %v1172
    %v2225 = vunpack.c.l.b16 %v1173
    %v2226 = vunpack.c.h.b16 %v1173
    %v2227 = vunpack.c.l.b16 %v1174
    %v2228 = vunpack.c.h.b16 %v1174
    %v2229 = vunpack.c.l.b16 %v1175
    %v2230 = vunpack.c.h.b16 %v1175
    %v2231 = vunpack.c.l.b16 %v1176
    %v2232 = vunpack.c.h.b16 %v1176
    %v2233 = vunpack.c.l.b16 %v1177
    %v2234 = vunpack.c.h.b16 %v1177
    %v2235 = vunpack.c.l.b16 %v1178
    %v2236 = vunpack.c.l.b16 %v1179
    %v2237 = vunpack.c.h.b16 %v1179
    %v2238 = vunpack.c.l.b16 %v1180
    %v2239 = vunpack.c.h.b16 %v1180
    %v2240 = vunpack.c.l.b16 %v1181
    %v2241 = vunpack.c.h.b16 %v1181
    %v2242 = vunpack.c.l.b16 %v1182
    %v2243 = vunpack.c.h.b16 %v1182
    %v2244 = vunpack.c.l.b16 %v1183
    %v2245 = vunpack.c.h.b16 %v1183
    %v2246 = vunpack.c.l.b16 %v1184
    %v2247 = vunpack.c.l.b16 %v1185
    %v2248 = vunpack.c.h.b16 %v1185
    %v2249 = vunpack.c.l.b16 %v1186
    %v2250 = vunpack.c.h.b16 %v1186
    %v2251 = vunpack.c.l.b16 %v1187
    %v2252 = vunpack.c.h.b16 %v1187
    %v2253 = vunpack.c.l.b16 %v1188
    %v2254 = vunpack.c.h.b16 %v1188
    %v2255 = vunpack.c.l.b16 %v1189
    %v2256 = vunpack.c.h.b16 %v1189
    %v2257 = vunpack.c.l.b16 %v1190
    %v2258 = vunpack.c.l.b16 %v1191
    %v2259 = vunpack.c.h.b16 %v1191
    %v2260 = vunpack.c.l.b16 %v1192
    %v2261 = vunpack.c.h.b16 %v1192
    %v2262 = vunpack.c.l.b16 %v1193
    %v2263 = vunpack.c.h.b16 %v1193
    %v2264 = vunpack.c.l.b16 %v1194
    %v2265 = vunpack.c.h.b16 %v1194
    %v2266 = vunpack.c.l.b16 %v1195
    %v2267 = vunpack.c.h.b16 %v1195
    %v2268 = vunpack.c.l.b16 %v1196
    %v2269 = vunpack.c.l.b16 %v1197
    %v2270 = vunpack.c.h.b16 %v1197
    %v2271 = vunpack.c.l.b16 %v1198
    %v2272 = vunpack.c.h.b16 %v1198
    %v2273 = vunpack.c.l.b16 %v1199
    %v2274 = vunpack.c.h.b16 %v1199
    %v2275 = vunpack.c.l.b16 %v1200
    %v2276 = vunpack.c.h.b16 %v1200
    %v2277 = vunpack.c.l.b16 %v1201
    %v2278 = vunpack.c.h.b16 %v1201
    %v2279 = vunpack.c.l.b16 %v1202
    %v2280 = vunpack.c.l.b16 %v1203
    %v2281 = vunpack.c.h.b16 %v1203
    %v2282 = vunpack.c.l.b16 %v1204
    %v2283 = vunpack.c.h.b16 %v1204
    %v2284 = vunpack.c.l.b16 %v1205
    %v2285 = vunpack.c.h.b16 %v1205
    %v2286 = vunpack.c.l.b16 %v1206
    %v2287 = vunpack.c.h.b16 %v1206
    %v2288 = vunpack.c.l.b16 %v1207
    %v2289 = vunpack.c.h.b16 %v1207
    %v2290 = vunpack.c.l.b16 %v1208
    %v2291 = vunpack.c.l.b16 %v1209
    %v2292 = vunpack.c.h.b16 %v1209
    %v2293 = vunpack.c.l.b16 %v1210
    %v2294 = vunpack.c.h.b16 %v1210
    %v2295 = vunpack.c.l.b16 %v1211
    %v2296 = vunpack.c.h.b16 %v1211
    %v2297 = vunpack.c.l.b16 %v1212
    %v2298 = vunpack.c.h.b16 %v1212
    %v2299 = vunpack.c.l.b16 %v1213
    %v2300 = vunpack.c.h.b16 %v1213
    %v2301 = vunpack.c.l.b16 %v1214
    %v2302 = vunpack.c.l.b16 %v1215
    %v2303 = vunpack.c.h.b16 %v1215
    %v2304 = vunpack.c.l.b16 %v1216
    %v2305 = vunpack.c.h.b16 %v1216
    %v2306 = vunpack.c.l.b16 %v1217
    %v2307 = vunpack.c.h.b16 %v1217
    %v2308 = vunpack.c.l.b16 %v1218
    %v2309 = vunpack.c.h.b16 %v1218
    %v2310 = vunpack.c.l.b16 %v1219
    %v2311 = vunpack.c.h.b16 %v1219
    %v2312 = vunpack.c.l.b16 %v1220
    %v2313 = vunpack.c.l.b16 %v1221
    %v2314 = vunpack.c.h.b16 %v1221
    %v2315 = vunpack.c.l.b16 %v1222
    %v2316 = vunpack.c.h.b16 %v1222
    %v2317 = vunpack.c.l.b16 %v1223
    %v2318 = vunpack.c.h.b16 %v1223
    %v2319 = vunpack.c.l.b16 %v1224
    %v2320 = vunpack.c.h.b16 %v1224
    %v2321 = vunpack.c.l.b16 %v1225
    %v2322 = vunpack.c.h.b16 %v1225
    %v2323 = vunpack.c.l.b16 %v1226
    %v2324 = vunpack.c.l.b16 %v1227
    %v2325 = vunpack.c.h.b16 %v1227
    %v2326 = vunpack.c.l.b16 %v1228
    %v2327 = vunpack.c.h.b16 %v1228
    %v2328 = vunpack.c.l.b16 %v1229
    %v2329 = vunpack.c.h.b16 %v1229
    %v2330 = vunpack.c.l.b16 %v1230
    %v2331 = vunpack.c.h.b16 %v1230
    %v2332 = vunpack.c.l.b16 %v1231
    %v2333 = vunpack.c.h.b16 %v1231
    %v2334 = vunpack.c.l.b16 %v1232
    %v2335 = vunpack.c.l.b16 %v1233
    %v2336 = vunpack.c.h.b16 %v1233
    %v2337 = vunpack.c.l.b16 %v1234
    %v2338 = vunpack.c.h.b16 %v1234
    %v2339 = vunpack.c.l.b16 %v1235
    %v2340 = vunpack.c.h.b16 %v1235
    %v2341 = vunpack.c.l.b16 %v1236
    %v2342 = vunpack.c.h.b16 %v1236
    %v2343 = vunpack.c.l.b16 %v1237
    %v2344 = vunpack.c.h.b16 %v1237
    %v2345 = vunpack.c.l.b16 %v1238
    %v2346 = vunpack.c.l.b16 %v1239
    %v2347 = vunpack.c.h.b16 %v1239
    %v2348 = vunpack.c.l.b16 %v1240
    %v2349 = vunpack.c.h.b16 %v1240
    %v2350 = vunpack.c.l.b16 %v1241
    %v2351 = vunpack.c.h.b16 %v1241
    %v2352 = vunpack.c.l.b16 %v1242
    %v2353 = vunpack.c.h.b16 %v1242
    %v2354 = vunpack.c.l.b16 %v1243
    %v2355 = vunpack.c.h.b16 %v1243
    %v2356 = vunpack.c.l.b16 %v1244
    %v2357 = vunpack.c.l.b16 %v1245
    %v2358 = vunpack.c.h.b16 %v1245
    %v2359 = vunpack.c.l.b16 %v1246
    %v2360 = vunpack.c.h.b16 %v1246
    %v2361 = vunpack.c.l.b16 %v1247
    %v2362 = vunpack.c.h.b16 %v1247
    %v2363 = vunpack.c.l.b16 %v1248
    %v2364 = vunpack.c.h.b16 %v1248
    %v2365 = vunpack.c.l.b16 %v1249
    %v2366 = vunpack.c.h.b16 %v1249
    %v2367 = vunpack.c.l.b16 %v1250
    %v2368 = vunpack.c.l.b16 %v1251
    %v2369 = vunpack.c.h.b16 %v1251
    %v2370 = vunpack.c.l.b16 %v1252
    %v2371 = vunpack.c.h.b16 %v1252
    %v2372 = vunpack.c.l.b16 %v1253
    %v2373 = vunpack.c.h.b16 %v1253
    %v2374 = vunpack.c.l.b16 %v1254
    %v2375 = vunpack.c.h.b16 %v1254
    %v2376 = vunpack.c.l.b16 %v1255
    %v2377 = vunpack.c.h.b16 %v1255
    %v2378 = vunpack.c.l.b16 %v1256
    %v2379 = vunpack.c.l.b16 %v1257
    %v2380 = vunpack.c.h.b16 %v1257
    %v2381 = vunpack.c.l.b16 %v1258
    %v2382 = vunpack.c.h.b16 %v1258
    %v2383 = vunpack.c.l.b16 %v1259
    %v2384 = vunpack.c.h.b16 %v1259
    %v2385 = vunpack.c.l.b16 %v1260
    %v2386 = vunpack.c.h.b16 %v1260
    %v2387 = vunpack.c.l.b16 %v1261
    %v2388 = vunpack.c.h.b16 %v1261
    %v2389 = vunpack.c.l.b16 %v1262
    %v2390 = vunpack.c.l.b16 %v1263
    %v2391 = vunpack.c.h.b16 %v1263
    %v2392 = vunpack.c.l.b16 %v1264
    %v2393 = vunpack.c.h.b16 %v1264
    %v2394 = vunpack.c.l.b16 %v1265
    %v2395 = vunpack.c.h.b16 %v1265
    %v2396 = vunpack.c.l.b16 %v1266
    %v2397 = vunpack.c.h.b16 %v1266
    %v2398 = vunpack.c.l.b16 %v1267
    %v2399 = vunpack.c.h.b16 %v1267
    %v2400 = vunpack.c.l.b16 %v1268
    %v2401 = vunpack.c.l.b16 %v1269
    %v2402 = vunpack.c.h.b16 %v1269
    %v2403 = vunpack.c.l.b16 %v1270
    %v2404 = vunpack.c.h.b16 %v1270
    %v2405 = vunpack.c.l.b16 %v1271
    %v2406 = vunpack.c.h.b16 %v1271
    %v2407 = vunpack.c.l.b16 %v1272
    %v2408 = vunpack.c.h.b16 %v1272
    %v2409 = vunpack.c.l.b16 %v1273
    %v2410 = vunpack.c.h.b16 %v1273
    %v2411 = vunpack.c.l.b16 %v1274
    %v2412 = vunpack.c.l.b16 %v1275
    %v2413 = vunpack.c.h.b16 %v1275
    %v2414 = vunpack.c.l.b16 %v1276
    %v2415 = vunpack.c.h.b16 %v1276
    %v2416 = vunpack.c.l.b16 %v1277
    %v2417 = vunpack.c.h.b16 %v1277
    %v2418 = vunpack.c.l.b16 %v1278
    %v2419 = vunpack.c.h.b16 %v1278
    %v2420 = vunpack.c.l.b16 %v1279
    %v2421 = vunpack.c.h.b16 %v1279
    %v2422 = vunpack.c.l.b16 %v1280
    %v2423 = vunpack.c.l.b16 %v1281
    %v2424 = vunpack.c.h.b16 %v1281
    %v2425 = vunpack.c.l.b16 %v1282
    %v2426 = vunpack.c.h.b16 %v1282
    %v2427 = vunpack.c.l.b16 %v1283
    %v2428 = vunpack.c.h.b16 %v1283
    %v2429 = vunpack.c.l.b16 %v1284
    %v2430 = vunpack.c.h.b16 %v1284
    %v2431 = vunpack.c.l.b16 %v1285
    %v2432 = vunpack.c.h.b16 %v1285
    %v2433 = vunpack.c.l.b16 %v1286
    %v2434 = vpack.c.b16 %v1741, %v1730
    %v2435 = vpack.c.b16 %v1742, %v1731
    %v2436 = vpack.c.b16 %v1743, %v1732
    %v2437 = vpack.c.b16 %v1744, %v1733
    %v2438 = vpack.c.b16 %v1745, %v1734
    %v2439 = vpack.c.b16 %v1746, %v1735
    %v2440 = vpack.c.b16 %v1747, %v1736
    %v2441 = vpack.c.b16 %v1748, %v1737
    %v2442 = vpack.c.b16 %v1749, %v1738
    %v2443 = vpack.c.b16 %v1750, %v1739
    %v2444 = vpack.c.b16 %v1751, %v1740
    %v2445 = vpack.c.b16 %v1763, %v1752
    %v2446 = vpack.c.b16 %v1764, %v1753
    %v2447 = vpack.c.b16 %v1765, %v1754
    %v2448 = vpack.c.b16 %v1766, %v1755
    %v2449 = vpack.c.b16 %v1767, %v1756
    %v2450 = vpack.c.b16 %v1768, %v1757
    %v2451 = vpack.c.b16 %v1769, %v1758
    %v2452 = vpack.c.b16 %v1770, %v1759
    %v2453 = vpack.c.b16 %v1771, %v1760
    %v2454 = vpack.c.b16 %v1772, %v1761
    %v2455 = vpack.c.b16 %v1773, %v1762
    %v2456 = vpack.c.b16 %v1785, %v1774
    %v2457 = vpack.c.b16 %v1786, %v1775
    %v2458 = vpack.c.b16 %v1787, %v1776
    %v2459 = vpack.c.b16 %v1788, %v1777
    %v2460 = vpack.c.b16 %v1789, %v1778
    %v2461 = vpack.c.b16 %v1790, %v1779
    %v2462 = vpack.c.b16 %v1791, %v1780
    %v2463 = vpack.c.b16 %v1792, %v1781
    %v2464 = vpack.c.b16 %v1793, %v1782
    %v2465 = vpack.c.b16 %v1794, %v1783
    %v2466 = vpack.c.b16 %v1795, %v1784
    %v2467 = vpack.c.b16 %v1807, %v1796
    %v2468 = vpack.c.b16 %v1808, %v1797
    %v2469 = vpack.c.b16 %v1809, %v1798
    %v2470 = vpack.c.b16 %v1810, %v1799
    %v2471 = vpack.c.b16 %v1811, %v1800
    %v2472 = vpack.c.b16 %v1812, %v1801
    %v2473 = vpack.c.b16 %v1813, %v1802
    %v2474 = vpack.c.b16 %v1814, %v1803
    %v2475 = vpack.c.b16 %v1815, %v1804
    %v2476 = vpack.c.b16 %v1816, %v1805
    %v2477 = vpack.c.b16 %v1817, %v1806
    %v2478 = vpack.c.b16 %v1829, %v1818
    %v2479 = vpack.c.b16 %v1830, %v1819
    %v2480 = vpack.c.b16 %v1831, %v1820
    %v2481 = vpack.c.b16 %v1832, %v1821
    %v2482 = vpack.c.b16 %v1833, %v1822
    %v2483 = vpack.c.b16 %v1834, %v1823
    %v2484 = vpack.c.b16 %v1835, %v1824
    %v2485 = vpack.c.b16 %v1836, %v1825
    %v2486 = vpack.c.b16 %v1837, %v1826
    %v2487 = vpack.c.b16 %v1838, %v1827
    %v2488 = vpack.c.b16 %v1839, %v1828
    %v2489 = vpack.c.b16 %v1851, %v1840
    %v2490 = vpack.c.b16 %v1852, %v1841
    %v2491 = vpack.c.b16 %v1853, %v1842
    %v2492 = vpack.c.b16 %v1854, %v1843
    %v2493 = vpack.c.b16 %v1855, %v1844
    %v2494 = vpack.c.b16 %v1856, %v1845
    %v2495 = vpack.c.b16 %v1857, %v1846
    %v2496 = vpack.c.b16 %v1858, %v1847
    %v2497 = vpack.c.b16 %v1859, %v1848
    %v2498 = vpack.c.b16 %v1860, %v1849
    %v2499 = vpack.c.b16 %v1861, %v1850
    %v2500 = vpack.c.b16 %v1873, %v1862
    %v2501 = vpack.c.b16 %v1874, %v1863
    %v2502 = vpack.c.b16 %v1875, %v1864
    %v2503 = vpack.c.b16 %v1876, %v1865
    %v2504 = vpack.c.b16 %v1877, %v1866
    %v2505 = vpack.c.b16 %v1878, %v1867
    %v2506 = vpack.c.b16 %v1879, %v1868
    %v2507 = vpack.c.b16 %v1880, %v1869
    %v2508 = vpack.c.b16 %v1881, %v1870
    %v2509 = vpack.c.b16 %v1882, %v1871
    %v2510 = vpack.c.b16 %v1883, %v1872
    %v2511 = vpack.c.b16 %v1895, %v1884
    %v2512 = vpack.c.b16 %v1896, %v1885
    %v2513 = vpack.c.b16 %v1897, %v1886
    %v2514 = vpack.c.b16 %v1898, %v1887
    %v2515 = vpack.c.b16 %v1899, %v1888
    %v2516 = vpack.c.b16 %v1900, %v1889
    %v2517 = vpack.c.b16 %v1901, %v1890
    %v2518 = vpack.c.b16 %v1902, %v1891
    %v2519 = vpack.c.b16 %v1903, %v1892
    %v2520 = vpack.c.b16 %v1904, %v1893
    %v2521 = vpack.c.b16 %v1905, %v1894
    %v2522 = vpack.c.b16 %v1917, %v1906
    %v2523 = vpack.c.b16 %v1918, %v1907
    %v2524 = vpack.c.b16 %v1919, %v1908
    %v2525 = vpack.c.b16 %v1920, %v1909
    %v2526 = vpack.c.b16 %v1921, %v1910
    %v2527 = vpack.c.b16 %v1922, %v1911
    %v2528 = vpack.c.b16 %v1923, %v1912
    %v2529 = vpack.c.b16 %v1924, %v1913
    %v2530 = vpack.c.b16 %v1925, %v1914
    %v2531 = vpack.c.b16 %v1926, %v1915
    %v2532 = vpack.c.b16 %v1927, %v1916
    %v2533 = vpack.c.b16 %v1939, %v1928
    %v2534 = vpack.c.b16 %v1940, %v1929
    %v2535 = vpack.c.b16 %v1941, %v1930
    %v2536 = vpack.c.b16 %v1942, %v1931
    %v2537 = vpack.c.b16 %v1943, %v1932
    %v2538 = vpack.c.b16 %v1944, %v1933
    %v2539 = vpack.c.b16 %v1945, %v1934
    %v2540 = vpack.c.b16 %v1946, %v1935
    %v2541 = vpack.c.b16 %v1947, %v1936
    %v2542 = vpack.c.b16 %v1948, %v1937
    %v2543 = vpack.c.b16 %v1949, %v1938
    %v2544 = vpack.c.b16 %v1961, %v1950
    %v2545 = vpack.c.b16 %v1962, %v1951
    %v2546 = vpack.c.b16 %v1963, %v1952
    %v2547 = vpack.c.b16 %v1964, %v1953
    %v2548 = vpack.c.b16 %v1965, %v1954
    %v2549 = vpack.c.b16 %v1966, %v1955
    %v2550 = vpack.c.b16 %v1967, %v1956
    %v2551 = vpack.c.b16 %v1968, %v1957
    %v2552 = vpack.c.b16 %v1969, %v1958
    %v2553 = vpack.c.b16 %v1970, %v1959
    %v2554 = vpack.c.b16 %v1971, %v1960
    %v2555 = vpack.c.b16 %v1983, %v1972
    %v2556 = vpack.c.b16 %v1984, %v1973
    %v2557 = vpack.c.b16 %v1985, %v1974
    %v2558 = vpack.c.b16 %v1986, %v1975
    %v2559 = vpack.c.b16 %v1987, %v1976
    %v2560 = vpack.c.b16 %v1988, %v1977
    %v2561 = vpack.c.b16 %v1989, %v1978
    %v2562 = vpack.c.b16 %v1990, %v1979
    %v2563 = vpack.c.b16 %v1991, %v1980
    %v2564 = vpack.c.b16 %v1992, %v1981
    %v2565 = vpack.c.b16 %v1993, %v1982
    %v2566 = vpack.c.b16 %v2005, %v1994
    %v2567 = vpack.c.b16 %v2006, %v1995
    %v2568 = vpack.c.b16 %v2007, %v1996
    %v2569 = vpack.c.b16 %v2008, %v1997
    %v2570 = vpack.c.b16 %v2009, %v1998
    %v2571 = vpack.c.b16 %v2010, %v1999
    %v2572 = vpack.c.b16 %v2011, %v2000
    %v2573 = vpack.c.b16 %v2012, %v2001
    %v2574 = vpack.c.b16 %v2013, %v2002
    %v2575 = vpack.c.b16 %v2014, %v2003
    %v2576 = vpack.c.b16 %v2015, %v2004
    %v2577 = vpack.c.b16 %v2027, %v2016
    %v2578 = vpack.c.b16 %v2028, %v2017
    %v2579 = vpack.c.b16 %v2029, %v2018
    %v2580 = vpack.c.b16 %v2030, %v2019
    %v2581 = vpack.c.b16 %v2031, %v2020
    %v2582 = vpack.c.b16 %v2032, %v2021
    %v2583 = vpack.c.b16 %v2033, %v2022
    %v2584 = vpack.c.b16 %v2034, %v2023
    %v2585 = vpack.c.b16 %v2035, %v2024
    %v2586 = vpack.c.b16 %v2036, %v2025
    %v2587 = vpack.c.b16 %v2037, %v2026
    %v2588 = vpack.c.b16 %v2049, %v2038
    %v2589 = vpack.c.b16 %v2050, %v2039
    %v2590 = vpack.c.b16 %v2051, %v2040
    %v2591 = vpack.c.b16 %v2052, %v2041
    %v2592 = vpack.c.b16 %v2053, %v2042
    %v2593 = vpack.c.b16 %v2054, %v2043
    %v2594 = vpack.c.b16 %v2055, %v2044
    %v2595 = vpack.c.b16 %v2056, %v2045
    %v2596 = vpack.c.b16 %v2057, %v2046
    %v2597 = vpack.c.b16 %v2058, %v2047
    %v2598 = vpack.c.b16 %v2059, %v2048
    %v2599 = vpack.c.b16 %v2071, %v2060
    %v2600 = vpack.c.b16 %v2072, %v2061
    %v2601 = vpack.c.b16 %v2073, %v2062
    %v2602 = vpack.c.b16 %v2074, %v2063
    %v2603 = vpack.c.b16 %v2075, %v2064
    %v2604 = vpack.c.b16 %v2076, %v2065
    %v2605 = vpack.c.b16 %v2077, %v2066
    %v2606 = vpack.c.b16 %v2078, %v2067
    %v2607 = vpack.c.b16 %v2079, %v2068
    %v2608 = vpack.c.b16 %v2080, %v2069
    %v2609 = vpack.c.b16 %v2081, %v2070
    %v2610 = vpack.c.b16 %v2093, %v2082
    %v2611 = vpack.c.b16 %v2094, %v2083
    %v2612 = vpack.c.b16 %v2095, %v2084
    %v2613 = vpack.c.b16 %v2096, %v2085
    %v2614 = vpack.c.b16 %v2097, %v2086
    %v2615 = vpack.c.b16 %v2098, %v2087
    %v2616 = vpack.c.b16 %v2099, %v2088
    %v2617 = vpack.c.b16 %v2100, %v2089
    %v2618 = vpack.c.b16 %v2101, %v2090
    %v2619 = vpack.c.b16 %v2102, %v2091
    %v2620 = vpack.c.b16 %v2103, %v2092
    %v2621 = vpack.c.b16 %v2115, %v2104
    %v2622 = vpack.c.b16 %v2116, %v2105
    %v2623 = vpack.c.b16 %v2117, %v2106
    %v2624 = vpack.c.b16 %v2118, %v2107
    %v2625 = vpack.c.b16 %v2119, %v2108
    %v2626 = vpack.c.b16 %v2120, %v2109
    %v2627 = vpack.c.b16 %v2121, %v2110
    %v2628 = vpack.c.b16 %v2122, %v2111
    %v2629 = vpack.c.b16 %v2123, %v2112
    %v2630 = vpack.c.b16 %v2124, %v2113
    %v2631 = vpack.c.b16 %v2125, %v2114
    %v2632 = vpack.c.b16 %v2137, %v2126
    %v2633 = vpack.c.b16 %v2138, %v2127
    %v2634 = vpack.c.b16 %v2139, %v2128
    %v2635 = vpack.c.b16 %v2140, %v2129
    %v2636 = vpack.c.b16 %v2141, %v2130
    %v2637 = vpack.c.b16 %v2142, %v2131
    %v2638 = vpack.c.b16 %v2143, %v2132
    %v2639 = vpack.c.b16 %v2144, %v2133
    %v2640 = vpack.c.b16 %v2145, %v2134
    %v2641 = vpack.c.b16 %v2146, %v2135
    %v2642 = vpack.c.b16 %v2147, %v2136
    %v2643 = vpack.c.b16 %v2159, %v2148
    %v2644 = vpack.c.b16 %v2160, %v2149
    %v2645 = vpack.c.b16 %v2161, %v2150
    %v2646 = vpack.c.b16 %v2162, %v2151
    %v2647 = vpack.c.b16 %v2163, %v2152
    %v2648 = vpack.c.b16 %v2164, %v2153
    %v2649 = vpack.c.b16 %v2165, %v2154
    %v2650 = vpack.c.b16 %v2166, %v2155
    %v2651 = vpack.c.b16 %v2167, %v2156
    %v2652 = vpack.c.b16 %v2168, %v2157
    %v2653 = vpack.c.b16 %v2169, %v2158
    %v2654 = vpack.c.b16 %v2181, %v2170
    %v2655 = vpack.c.b16 %v2182, %v2171
    %v2656 = vpack.c.b16 %v2183, %v2172
    %v2657 = vpack.c.b16 %v2184, %v2173
    %v2658 = vpack.c.b16 %v2185, %v2174
    %v2659 = vpack.c.b16 %v2186, %v2175
    %v2660 = vpack.c.b16 %v2187, %v2176
    %v2661 = vpack.c.b16 %v2188, %v2177
    %v2662 = vpack.c.b16 %v2189, %v2178
    %v2663 = vpack.c.b16 %v2190, %v2179
    %v2664 = vpack.c.b16 %v2191, %v2180
    %v2665 = vpack.c.b16 %v2203, %v2192
    %v2666 = vpack.c.b16 %v2204, %v2193
    %v2667 = vpack.c.b16 %v2205, %v2194
    %v2668 = vpack.c.b16 %v2206, %v2195
    %v2669 = vpack.c.b16 %v2207, %v2196
    %v2670 = vpack.c.b16 %v2208, %v2197
    %v2671 = vpack.c.b16 %v2209, %v2198
    %v2672 = vpack.c.b16 %v2210, %v2199
    %v2673 = vpack.c.b16 %v2211, %v2200
    %v2674 = vpack.c.b16 %v2212, %v2201
    %v2675 = vpack.c.b16 %v2213, %v2202
    %v2676 = vpack.c.b16 %v2225, %v2214
    %v2677 = vpack.c.b16 %v2226, %v2215
    %v2678 = vpack.c.b16 %v2227, %v2216
    %v2679 = vpack.c.b16 %v2228, %v2217
    %v2680 = vpack.c.b16 %v2229, %v2218
    %v2681 = vpack.c.b16 %v2230, %v2219
    %v2682 = vpack.c.b16 %v2231, %v2220
    %v2683 = vpack.c.b16 %v2232, %v2221
    %v2684 = vpack.c.b16 %v2233, %v2222
    %v2685 = vpack.c.b16 %v2234, %v2223
    %v2686 = vpack.c.b16 %v2235, %v2224
    %v2687 = vpack.c.b16 %v2247, %v2236
    %v2688 = vpack.c.b16 %v2248, %v2237
    %v2689 = vpack.c.b16 %v2249, %v2238
    %v2690 = vpack.c.b16 %v2250, %v2239
    %v2691 = vpack.c.b16 %v2251, %v2240
    %v2692 = vpack.c.b16 %v2252, %v2241
    %v2693 = vpack.c.b16 %v2253, %v2242
    %v2694 = vpack.c.b16 %v2254, %v2243
    %v2695 = vpack.c.b16 %v2255, %v2244
    %v2696 = vpack.c.b16 %v2256, %v2245
    %v2697 = vpack.c.b16 %v2257, %v2246
    %v2698 = vpack.c.b16 %v2269, %v2258
    %v2699 = vpack.c.b16 %v2270, %v2259
    %v2700 = vpack.c.b16 %v2271, %v2260
    %v2701 = vpack.c.b16 %v2272, %v2261
    %v2702 = vpack.c.b16 %v2273, %v2262
    %v2703 = vpack.c.b16 %v2274, %v2263
    %v2704 = vpack.c.b16 %v2275, %v2264
    %v2705 = vpack.c.b16 %v2276, %v2265
    %v2706 = vpack.c.b16 %v2277, %v2266
    %v2707 = vpack.c.b16 %v2278, %v2267
    %v2708 = vpack.c.b16 %v2279, %v2268
    %v2709 = vpack.c.b16 %v2291, %v2280
    %v2710 = vpack.c.b16 %v2292, %v2281
    %v2711 = vpack.c.b16 %v2293, %v2282
    %v2712 = vpack.c.b16 %v2294, %v2283
    %v2713 = vpack.c.b16 %v2295, %v2284
    %v2714 = vpack.c.b16 %v2296, %v2285
    %v2715 = vpack.c.b16 %v2297, %v2286
    %v2716 = vpack.c.b16 %v2298, %v2287
    %v2717 = vpack.c.b16 %v2299, %v2288
    %v2718 = vpack.c.b16 %v2300, %v2289
    %v2719 = vpack.c.b16 %v2301, %v2290
    %v2720 = vpack.c.b16 %v2313, %v2302
    %v2721 = vpack.c.b16 %v2314, %v2303
    %v2722 = vpack.c.b16 %v2315, %v2304
    %v2723 = vpack.c.b16 %v2316, %v2305
    %v2724 = vpack.c.b16 %v2317, %v2306
    %v2725 = vpack.c.b16 %v2318, %v2307
    %v2726 = vpack.c.b16 %v2319, %v2308
    %v2727 = vpack.c.b16 %v2320, %v2309
    %v2728 = vpack.c.b16 %v2321, %v2310
    %v2729 = vpack.c.b16 %v2322, %v2311
    %v2730 = vpack.c.b16 %v2323, %v2312
    %v2731 = vpack.c.b16 %v2335, %v2324
    %v2732 = vpack.c.b16 %v2336, %v2325
    %v2733 = vpack.c.b16 %v2337, %v2326
    %v2734 = vpack.c.b16 %v2338, %v2327
    %v2735 = vpack.c.b16 %v2339, %v2328
    %v2736 = vpack.c.b16 %v2340, %v2329
    %v2737 = vpack.c.b16 %v2341, %v2330
    %v2738 = vpack.c.b16 %v2342, %v2331
    %v2739 = vpack.c.b16 %v2343, %v2332
    %v2740 = vpack.c.b16 %v2344, %v2333
    %v2741 = vpack.c.b16 %v2345, %v2334
    %v2742 = vpack.c.b16 %v2357, %v2346
    %v2743 = vpack.c.b16 %v2358, %v2347
    %v2744 = vpack.c.b16 %v2359, %v2348
    %v2745 = vpack.c.b16 %v2360, %v2349
    %v2746 = vpack.c.b16 %v2361, %v2350
    %v2747 = vpack.c.b16 %v2362, %v2351
    %v2748 = vpack.c.b16 %v2363, %v2352
    %v2749 = vpack.c.b16 %v2364, %v2353
    %v2750 = vpack.c.b16 %v2365, %v2354
    %v2751 = vpack.c.b16 %v2366, %v2355
    %v2752 = vpack.c.b16 %v2367, %v2356
    %v2753 = vpack.c.b16 %v2379, %v2368
    %v2754 = vpack.c.b16 %v2380, %v2369
    %v2755 = vpack.c.b16 %v2381, %v2370
    %v2756 = vpack.c.b16 %v2382, %v2371
    %v2757 = vpack.c.b16 %v2383, %v2372
    %v2758 = vpack.c.b16 %v2384, %v2373
    %v2759 = vpack.c.b16 %v2385, %v2374
    %v2760 = vpack.c.b16 %v2386, %v2375
    %v2761 = vpack.c.b16 %v2387, %v2376
    %v2762 = vpack.c.b16 %v2388, %v2377
    %v2763 = vpack.c.b16 %v2389, %v2378
    %v2764 = vpack.c.b16 %v2401, %v2390
    %v2765 = vpack.c.b16 %v2402, %v2391
    %v2766 = vpack.c.b16 %v2403, %v2392
    %v2767 = vpack.c.b16 %v2404, %v2393
    %v2768 = vpack.c.b16 %v2405, %v2394
    %v2769 = vpack.c.b16 %v2406, %v2395
    %v2770 = vpack.c.b16 %v2407, %v2396
    %v2771 = vpack.c.b16 %v2408, %v2397
    %v2772 = vpack.c.b16 %v2409, %v2398
    %v2773 = vpack.c.b16 %v2410, %v2399
    %v2774 = vpack.c.b16 %v2411, %v2400
    %v2775 = vpack.c.b16 %v2423, %v2412
    %v2776 = vpack.c.b16 %v2424, %v2413
    %v2777 = vpack.c.b16 %v2425, %v2414
    %v2778 = vpack.c.b16 %v2426, %v2415
    %v2779 = vpack.c.b16 %v2427, %v2416
    %v2780 = vpack.c.b16 %v2428, %v2417
    %v2781 = vpack.c.b16 %v2429, %v2418
    %v2782 = vpack.c.b16 %v2430, %v2419
    %v2783 = vpack.c.b16 %v2431, %v2420
    %v2784 = vpack.c.b16 %v2432, %v2421
    %v2785 = vpack.c.b16 %v2433, %v2422
    %3138 = vmatprep.subr.bf16.mxu0 %v2435
    %3139 = vmatpush1.bf16.msra.mxu0 %v2434
    %3140 = vmatprep.subr.bf16.mxu0 %v2446
    %3141 = vmatpush1.bf16.msra.mxu0 %v2445
    %3142 = vmatprep.subr.bf16.mxu0 %v2457
    %3143 = vmatpush1.bf16.msra.mxu0 %v2456
    %3144 = vmatprep.subr.bf16.mxu0 %v2468
    %3145 = vmatpush1.bf16.msra.mxu0 %v2467
    %3146 = vmatprep.subr.bf16.mxu0 %v2479
    %3147 = vmatpush1.bf16.msra.mxu0 %v2478
    %3148 = vmatprep.subr.bf16.mxu0 %v2490
    %3149 = vmatpush1.bf16.msra.mxu0 %v2489
    %3150 = vmatprep.subr.bf16.mxu0 %v2501
    %3151 = vmatpush1.bf16.msra.mxu0 %v2500
    %3152 = vmatprep.subr.bf16.mxu0 %v2512
    %3153 = vmatpush1.bf16.msra.mxu0 %v2511
    %3154 = vmatprep.subr.bf16.mxu0 %v2523
    %3155 = vmatpush1.bf16.msra.mxu0 %v2522
    %3156 = vmatprep.subr.bf16.mxu0 %v2534
    %3157 = vmatpush1.bf16.msra.mxu0 %v2533
    %3158 = vmatprep.subr.bf16.mxu0 %v2545
    %3159 = vmatpush1.bf16.msra.mxu0 %v2544
    %3160 = vmatprep.subr.bf16.mxu0 %v2556
    %3161 = vmatpush1.bf16.msra.mxu0 %v2555
    %3162 = vmatprep.subr.bf16.mxu0 %v2567
    %3163 = vmatpush1.bf16.msra.mxu0 %v2566
    %3164 = vmatprep.subr.bf16.mxu0 %v2578
    %3165 = vmatpush1.bf16.msra.mxu0 %v2577
    %3166 = vmatprep.subr.bf16.mxu0 %v2589
    %3167 = vmatpush1.bf16.msra.mxu0 %v2588
    %3168 = vmatprep.subr.bf16.mxu0 %v2600
    %3169 = vmatpush1.bf16.msra.mxu0 %v2599
    %3170 = vmatprep.mubr.bf16.mxu0 %v900
    %3171 = vmatmul.mubr.bf16.gmra.mrb[0].mxu0 %v899
    %v3172 = vpop.f32.mrb[0].mxu0
    %v3173 = vadd.f32 %v1294, %v3172
    %v3174 = vpop.f32.mrb[0].mxu0
    %v3175 = vadd.f32 %v1298, %v3174
    %v3176 = vpop.f32.mrb[0].mxu0
    %v3177 = vpop.f32.mrb[0].mxu0
    %3178 = vdwg.mxu0
    %3179 = vmatprep.subr.bf16.mxu0 %v2611
    %3180 = vmatpush1.bf16.msra.mxu0 %v2610
    %3181 = vmatprep.subr.bf16.mxu0 %v2622
    %3182 = vmatpush1.bf16.msra.mxu0 %v2621
    %3183 = vmatprep.subr.bf16.mxu0 %v2633
    %3184 = vmatpush1.bf16.msra.mxu0 %v2632
    %3185 = vmatprep.subr.bf16.mxu0 %v2644
    %3186 = vmatpush1.bf16.msra.mxu0 %v2643
    %3187 = vmatprep.subr.bf16.mxu0 %v2655
    %3188 = vmatpush1.bf16.msra.mxu0 %v2654
    %3189 = vmatprep.subr.bf16.mxu0 %v2666
    %3190 = vmatpush1.bf16.msra.mxu0 %v2665
    %3191 = vmatprep.subr.bf16.mxu0 %v2677
    %3192 = vmatpush1.bf16.msra.mxu0 %v2676
    %3193 = vmatprep.subr.bf16.mxu0 %v2688
    %3194 = vmatpush1.bf16.msra.mxu0 %v2687
    %3195 = vmatprep.subr.bf16.mxu0 %v2699
    %3196 = vmatpush1.bf16.msra.mxu0 %v2698
    %3197 = vmatprep.subr.bf16.mxu0 %v2710
    %3198 = vmatpush1.bf16.msra.mxu0 %v2709
    %3199 = vmatprep.subr.bf16.mxu0 %v2721
    %3200 = vmatpush1.bf16.msra.mxu0 %v2720
    %3201 = vmatprep.subr.bf16.mxu0 %v2732
    %3202 = vmatpush1.bf16.msra.mxu0 %v2731
    %3203 = vmatprep.subr.bf16.mxu0 %v2743
    %3204 = vmatpush1.bf16.msra.mxu0 %v2742
    %3205 = vmatprep.subr.bf16.mxu0 %v2754
    %3206 = vmatpush1.bf16.msra.mxu0 %v2753
    %3207 = vmatprep.subr.bf16.mxu0 %v2765
    %3208 = vmatpush1.bf16.msra.mxu0 %v2764
    %3209 = vmatprep.subr.bf16.mxu0 %v2776
    %3210 = vmatpush1.bf16.msra.mxu0 %v2775
    %3211 = vmatprep.mubr.bf16.mxu0 %v902
    %3212 = vmatmul.mubr.bf16.gmra.mrb[0].mxu0 %v901
    %v3213 = vpop.f32.mrb[0].mxu0
    %v3214 = vadd.f32 %v3173, %v3213
    %v3215 = vpop.f32.mrb[0].mxu0
    %v3216 = vadd.f32 %v3175, %v3215
    %v3217 = vpop.f32.mrb[0].mxu0
    %v3218 = vpop.f32.mrb[0].mxu0
    %3219 = vdwg.mxu0
    %3220 = vmatprep.subr.bf16.mxu0 %v2437
    %3221 = vmatpush1.bf16.msra.mxu0 %v2436
    %3222 = vmatprep.subr.bf16.mxu0 %v2448
    %3223 = vmatpush1.bf16.msra.mxu0 %v2447
    %3224 = vmatprep.subr.bf16.mxu0 %v2459
    %3225 = vmatpush1.bf16.msra.mxu0 %v2458
    %3226 = vmatprep.subr.bf16.mxu0 %v2470
    %3227 = vmatpush1.bf16.msra.mxu0 %v2469
    %3228 = vmatprep.subr.bf16.mxu0 %v2481
    %3229 = vmatpush1.bf16.msra.mxu0 %v2480
    %3230 = vmatprep.subr.bf16.mxu0 %v2492
    %3231 = vmatpush1.bf16.msra.mxu0 %v2491
    %3232 = vmatprep.subr.bf16.mxu0 %v2503
    %3233 = vmatpush1.bf16.msra.mxu0 %v2502
    %3234 = vmatprep.subr.bf16.mxu0 %v2514
    %3235 = vmatpush1.bf16.msra.mxu0 %v2513
    %3236 = vmatprep.subr.bf16.mxu0 %v2525
    %3237 = vmatpush1.bf16.msra.mxu0 %v2524
    %3238 = vmatprep.subr.bf16.mxu0 %v2536
    %3239 = vmatpush1.bf16.msra.mxu0 %v2535
    %3240 = vmatprep.subr.bf16.mxu0 %v2547
    %3241 = vmatpush1.bf16.msra.mxu0 %v2546
    %3242 = vmatprep.subr.bf16.mxu0 %v2558
    %3243 = vmatpush1.bf16.msra.mxu0 %v2557
    %3244 = vmatprep.subr.bf16.mxu0 %v2569
    %3245 = vmatpush1.bf16.msra.mxu0 %v2568
    %3246 = vmatprep.subr.bf16.mxu0 %v2580
    %3247 = vmatpush1.bf16.msra.mxu0 %v2579
    %3248 = vmatprep.subr.bf16.mxu0 %v2591
    %3249 = vmatpush1.bf16.msra.mxu0 %v2590
    %3250 = vmatprep.subr.bf16.mxu0 %v2602
    %3251 = vmatpush1.bf16.msra.mxu0 %v2601
    %3252 = vmatprep.mubr.bf16.mxu0 %v900
    %3253 = vmatmul.mubr.bf16.gmra.mrb[0].mxu0 %v899
    %v3254 = vpop.f32.mrb[0].mxu0
    %v3255 = vadd.f32 %v1302, %v3254
    %v3256 = vpop.f32.mrb[0].mxu0
    %v3257 = vadd.f32 %v1306, %v3256
    %v3258 = vpop.f32.mrb[0].mxu0
    %v3259 = vpop.f32.mrb[0].mxu0
    %3260 = vdwg.mxu0
    %3261 = vmatprep.subr.bf16.mxu0 %v2613
    %3262 = vmatpush1.bf16.msra.mxu0 %v2612
    %3263 = vmatprep.subr.bf16.mxu0 %v2624
    %3264 = vmatpush1.bf16.msra.mxu0 %v2623
    %3265 = vmatprep.subr.bf16.mxu0 %v2635
    %3266 = vmatpush1.bf16.msra.mxu0 %v2634
    %3267 = vmatprep.subr.bf16.mxu0 %v2646
    %3268 = vmatpush1.bf16.msra.mxu0 %v2645
    %3269 = vmatprep.subr.bf16.mxu0 %v2657
    %3270 = vmatpush1.bf16.msra.mxu0 %v2656
    %3271 = vmatprep.subr.bf16.mxu0 %v2668
    %3272 = vmatpush1.bf16.msra.mxu0 %v2667
    %3273 = vmatprep.subr.bf16.mxu0 %v2679
    %3274 = vmatpush1.bf16.msra.mxu0 %v2678
    %3275 = vmatprep.subr.bf16.mxu0 %v2690
    %3276 = vmatpush1.bf16.msra.mxu0 %v2689
    %3277 = vmatprep.subr.bf16.mxu0 %v2701
    %3278 = vmatpush1.bf16.msra.mxu0 %v2700
    %3279 = vmatprep.subr.bf16.mxu0 %v2712
    %3280 = vmatpush1.bf16.msra.mxu0 %v2711
    %3281 = vmatprep.subr.bf16.mxu0 %v2723
    %3282 = vmatpush1.bf16.msra.mxu0 %v2722
    %3283 = vmatprep.subr.bf16.mxu0 %v2734
    %3284 = vmatpush1.bf16.msra.mxu0 %v2733
    %3285 = vmatprep.subr.bf16.mxu0 %v2745
    %3286 = vmatpush1.bf16.msra.mxu0 %v2744
    %3287 = vmatprep.subr.bf16.mxu0 %v2756
    %3288 = vmatpush1.bf16.msra.mxu0 %v2755
    %3289 = vmatprep.subr.bf16.mxu0 %v2767
    %3290 = vmatpush1.bf16.msra.mxu0 %v2766
    %3291 = vmatprep.subr.bf16.mxu0 %v2778
    %3292 = vmatpush1.bf16.msra.mxu0 %v2777
    %3293 = vmatprep.mubr.bf16.mxu0 %v902
    %3294 = vmatmul.mubr.bf16.gmra.mrb[0].mxu0 %v901
    %v3295 = vpop.f32.mrb[0].mxu0
    %v3296 = vadd.f32 %v3255, %v3295
    %v3297 = vpop.f32.mrb[0].mxu0
    %v3298 = vadd.f32 %v3257, %v3297
    %v3299 = vpop.f32.mrb[0].mxu0
    %v3300 = vpop.f32.mrb[0].mxu0
    %3301 = vdwg.mxu0
    %3302 = vmatprep.subr.bf16.mxu0 %v2439
    %3303 = vmatpush1.bf16.msra.mxu0 %v2438
    %3304 = vmatprep.subr.bf16.mxu0 %v2450
    %3305 = vmatpush1.bf16.msra.mxu0 %v2449
    %3306 = vmatprep.subr.bf16.mxu0 %v2461
    %3307 = vmatpush1.bf16.msra.mxu0 %v2460
    %3308 = vmatprep.subr.bf16.mxu0 %v2472
    %3309 = vmatpush1.bf16.msra.mxu0 %v2471
    %3310 = vmatprep.subr.bf16.mxu0 %v2483
    %3311 = vmatpush1.bf16.msra.mxu0 %v2482
    %3312 = vmatprep.subr.bf16.mxu0 %v2494
    %3313 = vmatpush1.bf16.msra.mxu0 %v2493
    %3314 = vmatprep.subr.bf16.mxu0 %v2505
    %3315 = vmatpush1.bf16.msra.mxu0 %v2504
    %3316 = vmatprep.subr.bf16.mxu0 %v2516
    %3317 = vmatpush1.bf16.msra.mxu0 %v2515
    %3318 = vmatprep.subr.bf16.mxu0 %v2527
    %3319 = vmatpush1.bf16.msra.mxu0 %v2526
    %3320 = vmatprep.subr.bf16.mxu0 %v2538
    %3321 = vmatpush1.bf16.msra.mxu0 %v2537
    %3322 = vmatprep.subr.bf16.mxu0 %v2549
    %3323 = vmatpush1.bf16.msra.mxu0 %v2548
    %3324 = vmatprep.subr.bf16.mxu0 %v2560
    %3325 = vmatpush1.bf16.msra.mxu0 %v2559
    %3326 = vmatprep.subr.bf16.mxu0 %v2571
    %3327 = vmatpush1.bf16.msra.mxu0 %v2570
    %3328 = vmatprep.subr.bf16.mxu0 %v2582
    %3329 = vmatpush1.bf16.msra.mxu0 %v2581
    %3330 = vmatprep.subr.bf16.mxu0 %v2593
    %3331 = vmatpush1.bf16.msra.mxu0 %v2592
    %3332 = vmatprep.subr.bf16.mxu0 %v2604
    %3333 = vmatpush1.bf16.msra.mxu0 %v2603
    %3334 = vmatprep.mubr.bf16.mxu0 %v900
    %3335 = vmatmul.mubr.bf16.gmra.mrb[0].mxu0 %v899
    %v3336 = vpop.f32.mrb[0].mxu0
    %v3337 = vadd.f32 %v1310, %v3336
    %v3338 = vpop.f32.mrb[0].mxu0
    %v3339 = vadd.f32 %v1314, %v3338
    %v3340 = vpop.f32.mrb[0].mxu0
    %v3341 = vpop.f32.mrb[0].mxu0
    %3342 = vdwg.mxu0
    %3343 = vmatprep.subr.bf16.mxu0 %v2615
    %3344 = vmatpush1.bf16.msra.mxu0 %v2614
    %3345 = vmatprep.subr.bf16.mxu0 %v2626
    %3346 = vmatpush1.bf16.msra.mxu0 %v2625
    %3347 = vmatprep.subr.bf16.mxu0 %v2637
    %3348 = vmatpush1.bf16.msra.mxu0 %v2636
    %3349 = vmatprep.subr.bf16.mxu0 %v2648
    %3350 = vmatpush1.bf16.msra.mxu0 %v2647
    %3351 = vmatprep.subr.bf16.mxu0 %v2659
    %3352 = vmatpush1.bf16.msra.mxu0 %v2658
    %3353 = vmatprep.subr.bf16.mxu0 %v2670
    %3354 = vmatpush1.bf16.msra.mxu0 %v2669
    %3355 = vmatprep.subr.bf16.mxu0 %v2681
    %3356 = vmatpush1.bf16.msra.mxu0 %v2680
    %3357 = vmatprep.subr.bf16.mxu0 %v2692
    %3358 = vmatpush1.bf16.msra.mxu0 %v2691
    %3359 = vmatprep.subr.bf16.mxu0 %v2703
    %3360 = vmatpush1.bf16.msra.mxu0 %v2702
    %3361 = vmatprep.subr.bf16.mxu0 %v2714
    %3362 = vmatpush1.bf16.msra.mxu0 %v2713
    %3363 = vmatprep.subr.bf16.mxu0 %v2725
    %3364 = vmatpush1.bf16.msra.mxu0 %v2724
    %3365 = vmatprep.subr.bf16.mxu0 %v2736
    %3366 = vmatpush1.bf16.msra.mxu0 %v2735
    %3367 = vmatprep.subr.bf16.mxu0 %v2747
    %3368 = vmatpush1.bf16.msra.mxu0 %v2746
    %3369 = vmatprep.subr.bf16.mxu0 %v2758
    %3370 = vmatpush1.bf16.msra.mxu0 %v2757
    %3371 = vmatprep.subr.bf16.mxu0 %v2769
    %3372 = vmatpush1.bf16.msra.mxu0 %v2768
    %3373 = vmatprep.subr.bf16.mxu0 %v2780
    %3374 = vmatpush1.bf16.msra.mxu0 %v2779
    %3375 = vmatprep.mubr.bf16.mxu0 %v902
    %3376 = vmatmul.mubr.bf16.gmra.mrb[0].mxu0 %v901
    %v3377 = vpop.f32.mrb[0].mxu0
    %v3378 = vadd.f32 %v3337, %v3377
    %v3379 = vpop.f32.mrb[0].mxu0
    %v3380 = vadd.f32 %v3339, %v3379
    %v3381 = vpop.f32.mrb[0].mxu0
    %v3382 = vpop.f32.mrb[0].mxu0
    %3383 = vdwg.mxu0
    %3384 = vmatprep.subr.bf16.mxu0 %v2441
    %3385 = vmatpush1.bf16.msra.mxu0 %v2440
    %3386 = vmatprep.subr.bf16.mxu0 %v2452
    %3387 = vmatpush1.bf16.msra.mxu0 %v2451
    %3388 = vmatprep.subr.bf16.mxu0 %v2463
    %3389 = vmatpush1.bf16.msra.mxu0 %v2462
    %3390 = vmatprep.subr.bf16.mxu0 %v2474
    %3391 = vmatpush1.bf16.msra.mxu0 %v2473
    %3392 = vmatprep.subr.bf16.mxu0 %v2485
    %3393 = vmatpush1.bf16.msra.mxu0 %v2484
    %3394 = vmatprep.subr.bf16.mxu0 %v2496
    %3395 = vmatpush1.bf16.msra.mxu0 %v2495
    %3396 = vmatprep.subr.bf16.mxu0 %v2507
    %3397 = vmatpush1.bf16.msra.mxu0 %v2506
    %3398 = vmatprep.subr.bf16.mxu0 %v2518
    %3399 = vmatpush1.bf16.msra.mxu0 %v2517
    %3400 = vmatprep.subr.bf16.mxu0 %v2529
    %3401 = vmatpush1.bf16.msra.mxu0 %v2528
    %3402 = vmatprep.subr.bf16.mxu0 %v2540
    %3403 = vmatpush1.bf16.msra.mxu0 %v2539
    %3404 = vmatprep.subr.bf16.mxu0 %v2551
    %3405 = vmatpush1.bf16.msra.mxu0 %v2550
    %3406 = vmatprep.subr.bf16.mxu0 %v2562
    %3407 = vmatpush1.bf16.msra.mxu0 %v2561
    %3408 = vmatprep.subr.bf16.mxu0 %v2573
    %3409 = vmatpush1.bf16.msra.mxu0 %v2572
    %3410 = vmatprep.subr.bf16.mxu0 %v2584
    %3411 = vmatpush1.bf16.msra.mxu0 %v2583
    %3412 = vmatprep.subr.bf16.mxu0 %v2595
    %3413 = vmatpush1.bf16.msra.mxu0 %v2594
    %3414 = vmatprep.subr.bf16.mxu0 %v2606
    %3415 = vmatpush1.bf16.msra.mxu0 %v2605
    %3416 = vmatprep.mubr.bf16.mxu0 %v900
    %3417 = vmatmul.mubr.bf16.gmra.mrb[0].mxu0 %v899
    %v3418 = vpop.f32.mrb[0].mxu0
    %v3419 = vadd.f32 %v1318, %v3418
    %v3420 = vpop.f32.mrb[0].mxu0
    %v3421 = vadd.f32 %v1322, %v3420
    %v3422 = vpop.f32.mrb[0].mxu0
    %v3423 = vpop.f32.mrb[0].mxu0
    %3424 = vdwg.mxu0
    %3425 = vmatprep.subr.bf16.mxu0 %v2617
    %3426 = vmatpush1.bf16.msra.mxu0 %v2616
    %3427 = vmatprep.subr.bf16.mxu0 %v2628
    %3428 = vmatpush1.bf16.msra.mxu0 %v2627
    %3429 = vmatprep.subr.bf16.mxu0 %v2639
    %3430 = vmatpush1.bf16.msra.mxu0 %v2638
    %3431 = vmatprep.subr.bf16.mxu0 %v2650
    %3432 = vmatpush1.bf16.msra.mxu0 %v2649
    %3433 = vmatprep.subr.bf16.mxu0 %v2661
    %3434 = vmatpush1.bf16.msra.mxu0 %v2660
    %3435 = vmatprep.subr.bf16.mxu0 %v2672
    %3436 = vmatpush1.bf16.msra.mxu0 %v2671
    %3437 = vmatprep.subr.bf16.mxu0 %v2683
    %3438 = vmatpush1.bf16.msra.mxu0 %v2682
    %3439 = vmatprep.subr.bf16.mxu0 %v2694
    %3440 = vmatpush1.bf16.msra.mxu0 %v2693
    %3441 = vmatprep.subr.bf16.mxu0 %v2705
    %3442 = vmatpush1.bf16.msra.mxu0 %v2704
    %3443 = vmatprep.subr.bf16.mxu0 %v2716
    %3444 = vmatpush1.bf16.msra.mxu0 %v2715
    %3445 = vmatprep.subr.bf16.mxu0 %v2727
    %3446 = vmatpush1.bf16.msra.mxu0 %v2726
    %3447 = vmatprep.subr.bf16.mxu0 %v2738
    %3448 = vmatpush1.bf16.msra.mxu0 %v2737
    %3449 = vmatprep.subr.bf16.mxu0 %v2749
    %3450 = vmatpush1.bf16.msra.mxu0 %v2748
    %3451 = vmatprep.subr.bf16.mxu0 %v2760
    %3452 = vmatpush1.bf16.msra.mxu0 %v2759
    %3453 = vmatprep.subr.bf16.mxu0 %v2771
    %3454 = vmatpush1.bf16.msra.mxu0 %v2770
    %3455 = vmatprep.subr.bf16.mxu0 %v2782
    %3456 = vmatpush1.bf16.msra.mxu0 %v2781
    %3457 = vmatprep.mubr.bf16.mxu0 %v902
    %3458 = vmatmul.mubr.bf16.gmra.mrb[0].mxu0 %v901
    %v3459 = vpop.f32.mrb[0].mxu0
    %v3460 = vadd.f32 %v3419, %v3459
    %v3461 = vpop.f32.mrb[0].mxu0
    %v3462 = vadd.f32 %v3421, %v3461
    %v3463 = vpop.f32.mrb[0].mxu0
    %v3464 = vpop.f32.mrb[0].mxu0
    %3465 = vdwg.mxu0
    %3466 = vmatprep.subr.bf16.mxu0 %v2443
    %3467 = vmatpush1.bf16.msra.mxu0 %v2442
    %3468 = vmatprep.subr.bf16.mxu0 %v2454
    %3469 = vmatpush1.bf16.msra.mxu0 %v2453
    %3470 = vmatprep.subr.bf16.mxu0 %v2465
    %3471 = vmatpush1.bf16.msra.mxu0 %v2464
    %3472 = vmatprep.subr.bf16.mxu0 %v2476
    %3473 = vmatpush1.bf16.msra.mxu0 %v2475
    %3474 = vmatprep.subr.bf16.mxu0 %v2487
    %3475 = vmatpush1.bf16.msra.mxu0 %v2486
    %3476 = vmatprep.subr.bf16.mxu0 %v2498
    %3477 = vmatpush1.bf16.msra.mxu0 %v2497
    %3478 = vmatprep.subr.bf16.mxu0 %v2509
    %3479 = vmatpush1.bf16.msra.mxu0 %v2508
    %3480 = vmatprep.subr.bf16.mxu0 %v2520
    %3481 = vmatpush1.bf16.msra.mxu0 %v2519
    %3482 = vmatprep.subr.bf16.mxu0 %v2531
    %3483 = vmatpush1.bf16.msra.mxu0 %v2530
    %3484 = vmatprep.subr.bf16.mxu0 %v2542
    %3485 = vmatpush1.bf16.msra.mxu0 %v2541
    %3486 = vmatprep.subr.bf16.mxu0 %v2553
    %3487 = vmatpush1.bf16.msra.mxu0 %v2552
    %3488 = vmatprep.subr.bf16.mxu0 %v2564
    %3489 = vmatpush1.bf16.msra.mxu0 %v2563
    %3490 = vmatprep.subr.bf16.mxu0 %v2575
    %3491 = vmatpush1.bf16.msra.mxu0 %v2574
    %3492 = vmatprep.subr.bf16.mxu0 %v2586
    %3493 = vmatpush1.bf16.msra.mxu0 %v2585
    %3494 = vmatprep.subr.bf16.mxu0 %v2597
    %3495 = vmatpush1.bf16.msra.mxu0 %v2596
    %3496 = vmatprep.subr.bf16.mxu0 %v2608
    %3497 = vmatpush1.bf16.msra.mxu0 %v2607
    %3498 = vmatprep.mubr.bf16.mxu0 %v900
    %3499 = vmatmul.mubr.bf16.gmra.mrb[0].mxu0 %v899
    %v3500 = vpop.f32.mrb[0].mxu0
    %v3501 = vadd.f32 %v1326, %v3500
    %v3502 = vpop.f32.mrb[0].mxu0
    %v3503 = vadd.f32 %v1330, %v3502
    %v3504 = vpop.f32.mrb[0].mxu0
    %v3505 = vpop.f32.mrb[0].mxu0
    %3506 = vdwg.mxu0
    %3507 = vmatprep.subr.bf16.mxu0 %v2619
    %3508 = vmatpush1.bf16.msra.mxu0 %v2618
    %3509 = vmatprep.subr.bf16.mxu0 %v2630
    %3510 = vmatpush1.bf16.msra.mxu0 %v2629
    %3511 = vmatprep.subr.bf16.mxu0 %v2641
    %3512 = vmatpush1.bf16.msra.mxu0 %v2640
    %3513 = vmatprep.subr.bf16.mxu0 %v2652
    %3514 = vmatpush1.bf16.msra.mxu0 %v2651
    %3515 = vmatprep.subr.bf16.mxu0 %v2663
    %3516 = vmatpush1.bf16.msra.mxu0 %v2662
    %3517 = vmatprep.subr.bf16.mxu0 %v2674
    %3518 = vmatpush1.bf16.msra.mxu0 %v2673
    %3519 = vmatprep.subr.bf16.mxu0 %v2685
    %3520 = vmatpush1.bf16.msra.mxu0 %v2684
    %3521 = vmatprep.subr.bf16.mxu0 %v2696
    %3522 = vmatpush1.bf16.msra.mxu0 %v2695
    %3523 = vmatprep.subr.bf16.mxu0 %v2707
    %3524 = vmatpush1.bf16.msra.mxu0 %v2706
    %3525 = vmatprep.subr.bf16.mxu0 %v2718
    %3526 = vmatpush1.bf16.msra.mxu0 %v2717
    %3527 = vmatprep.subr.bf16.mxu0 %v2729
    %3528 = vmatpush1.bf16.msra.mxu0 %v2728
    %3529 = vmatprep.subr.bf16.mxu0 %v2740
    %3530 = vmatpush1.bf16.msra.mxu0 %v2739
    %3531 = vmatprep.subr.bf16.mxu0 %v2751
    %3532 = vmatpush1.bf16.msra.mxu0 %v2750
    %3533 = vmatprep.subr.bf16.mxu0 %v2762
    %3534 = vmatpush1.bf16.msra.mxu0 %v2761
    %3535 = vmatprep.subr.bf16.mxu0 %v2773
    %3536 = vmatpush1.bf16.msra.mxu0 %v2772
    %3537 = vmatprep.subr.bf16.mxu0 %v2784
    %3538 = vmatpush1.bf16.msra.mxu0 %v2783
    %3539 = vmatprep.mubr.bf16.mxu0 %v902
    %3540 = vmatmul.mubr.bf16.gmra.mrb[0].mxu0 %v901
    %v3541 = vpop.f32.mrb[0].mxu0
    %v3542 = vadd.f32 %v3501, %v3541
    %v3543 = vpop.f32.mrb[0].mxu0
    %v3544 = vadd.f32 %v3503, %v3543
    %v3545 = vpop.f32.mrb[0].mxu0
    %v3546 = vpop.f32.mrb[0].mxu0
    %3547 = vdwg.mxu0
    %3548 = vmatprep.subr.bf16.mxu0 0
    %3549 = vmatpush1.bf16.msra.mxu0 %v2444
    %3550 = vmatprep.subr.bf16.mxu0 0
    %3551 = vmatpush1.bf16.msra.mxu0 %v2455
    %3552 = vmatprep.subr.bf16.mxu0 0
    %3553 = vmatpush1.bf16.msra.mxu0 %v2466
    %3554 = vmatprep.subr.bf16.mxu0 0
    %3555 = vmatpush1.bf16.msra.mxu0 %v2477
    %3556 = vmatprep.subr.bf16.mxu0 0
    %3557 = vmatpush1.bf16.msra.mxu0 %v2488
    %3558 = vmatprep.subr.bf16.mxu0 0
    %3559 = vmatpush1.bf16.msra.mxu0 %v2499
    %3560 = vmatprep.subr.bf16.mxu0 0
    %3561 = vmatpush1.bf16.msra.mxu0 %v2510
    %3562 = vmatprep.subr.bf16.mxu0 0
    %3563 = vmatpush1.bf16.msra.mxu0 %v2521
    %3564 = vmatprep.subr.bf16.mxu0 0
    %3565 = vmatpush1.bf16.msra.mxu0 %v2532
    %3566 = vmatprep.subr.bf16.mxu0 0
    %3567 = vmatpush1.bf16.msra.mxu0 %v2543
    %3568 = vmatprep.subr.bf16.mxu0 0
    %3569 = vmatpush1.bf16.msra.mxu0 %v2554
    %3570 = vmatprep.subr.bf16.mxu0 0
    %3571 = vmatpush1.bf16.msra.mxu0 %v2565
    %3572 = vmatprep.subr.bf16.mxu0 0
    %3573 = vmatpush1.bf16.msra.mxu0 %v2576
    %3574 = vmatprep.subr.bf16.mxu0 0
    %3575 = vmatpush1.bf16.msra.mxu0 %v2587
    %3576 = vmatprep.subr.bf16.mxu0 0
    %3577 = vmatpush1.bf16.msra.mxu0 %v2598
    %3578 = vmatprep.subr.bf16.mxu0 0
    %3579 = vmatpush1.bf16.msra.mxu0 %v2609
    %3580 = vmatprep.mubr.bf16.mxu0 %v900
    %3581 = vmatmul.mubr.bf16.gmra.mrb[0].mxu0 %v899
    %v3582 = vpop.f32.mrb[0].mxu0
    %v3583 = vadd.f32 %v1334, %v3582
    %v3584 = vpop.f32.mrb[0].mxu0
    %v3585 = vpop.f32.mrb[0].mxu0
    %v3586 = vpop.f32.mrb[0].mxu0
    %3587 = vdwg.mxu0
    %3588 = vmatprep.subr.bf16.mxu0 0
    %3589 = vmatpush1.bf16.msra.mxu0 %v2620
    %3590 = vmatprep.subr.bf16.mxu0 0
    %3591 = vmatpush1.bf16.msra.mxu0 %v2631
    %3592 = vmatprep.subr.bf16.mxu0 0
    %3593 = vmatpush1.bf16.msra.mxu0 %v2642
    %3594 = vmatprep.subr.bf16.mxu0 0
    %3595 = vmatpush1.bf16.msra.mxu0 %v2653
    %3596 = vmatprep.subr.bf16.mxu0 0
    %3597 = vmatpush1.bf16.msra.mxu0 %v2664
    %3598 = vmatprep.subr.bf16.mxu0 0
    %3599 = vmatpush1.bf16.msra.mxu0 %v2675
    %3600 = vmatprep.subr.bf16.mxu0 0
    %3601 = vmatpush1.bf16.msra.mxu0 %v2686
    %3602 = vmatprep.subr.bf16.mxu0 0
    %3603 = vmatpush1.bf16.msra.mxu0 %v2697
    %3604 = vmatprep.subr.bf16.mxu0 0
    %3605 = vmatpush1.bf16.msra.mxu0 %v2708
    %3606 = vmatprep.subr.bf16.mxu0 0
    %3607 = vmatpush1.bf16.msra.mxu0 %v2719
    %3608 = vmatprep.subr.bf16.mxu0 0
    %3609 = vmatpush1.bf16.msra.mxu0 %v2730
    %3610 = vmatprep.subr.bf16.mxu0 0
    %3611 = vmatpush1.bf16.msra.mxu0 %v2741
    %3612 = vmatprep.subr.bf16.mxu0 0
    %3613 = vmatpush1.bf16.msra.mxu0 %v2752
    %3614 = vmatprep.subr.bf16.mxu0 0
    %3615 = vmatpush1.bf16.msra.mxu0 %v2763
    %3616 = vmatprep.subr.bf16.mxu0 0
    %3617 = vmatpush1.bf16.msra.mxu0 %v2774
    %3618 = vmatprep.subr.bf16.mxu0 0
    %3619 = vmatpush1.bf16.msra.mxu0 %v2785
    %3620 = vmatprep.mubr.bf16.mxu0 %v902
    %3621 = vmatmul.mubr.bf16.gmra.mrb[0].mxu0 %v901
    %v3622 = vpop.f32.mrb[0].mxu0
    %v3623 = vadd.f32 %v3583, %v3622
    %v3624 = vpop.f32.mrb[0].mxu0
    %v3625 = vpop.f32.mrb[0].mxu0
    %v3626 = vpop.f32.mrb[0].mxu0
    %3627 = vdwg.mxu0
    %3628 = vst [vmem:[#allocation19] sm:$0xff] %v3214
    %3629 = vst [vmem:[#allocation19 + $0x8] sm:$0xff] %v3216
    %3630 = vst [vmem:[#allocation19 + $0x10] sm:$0xff] %v3296
    %3631 = vst [vmem:[#allocation19 + $0x18] sm:$0xff] %v3298
    %3632 = vst [vmem:[#allocation19 + $0x20] sm:$0xff] %v3378
    %3633 = vst [vmem:[#allocation19 + $0x28] sm:$0xff] %v3380
    %3634 = vst [vmem:[#allocation19 + $0x30] sm:$0xff] %v3460
    %3635 = vst [vmem:[#allocation19 + $0x38] sm:$0xff] %v3462
    %3636 = vst [vmem:[#allocation19 + $0x40] sm:$0xff] %v3542
    %3637 = vst [vmem:[#allocation19 + $0x48] sm:$0xff] %v3544
    %vm3638 = vcmask 982016
    %3639 = vst.msk [vmem:[#allocation19 + $0x50] sm:$0xff] %vm3638, %v3623
    // Predicated region
    $region82: #{tpu_custom_call.1} parent=1 // pred_check
      _
    $region83: #{tpu_custom_call.1} parent=1 // pred_check_branch
      %3641 = sbr.rel (0) target = $region85
    $region84: #{tpu_custom_call.1} parent=1 // pred_region
      %s3643 = ssub.s32 1408, 1408
      %3644 = vsyncadd [#allocation4], %s3643
      %s3646 = sshll.u32 [#allocation19], 4
      %s3647 = int_to_ptr.vmem [resolvable:$true] %s3646
      %3649 = dma.vmem_to_hbm [thread:$0]  %s3647, 1408, %s10, [#allocation4]
    $region85: #{tpu_custom_call.1} parent=1 // pred_fallthru
      _
    // Predicated region
    $region86: #{tpu_custom_call.1} parent=1 // pred_check
      _
    $region87: #{tpu_custom_call.1} parent=1 // pred_check_branch
      %3651 = sbr.rel (0) target = $region89
    $region88: #{tpu_custom_call.1} parent=1 // pred_region
      %3652 = dma.done [#allocation4], 1408
    $region89: #{tpu_custom_call.1} parent=1 // pred_fallthru
      _
    %3653 = vsyncpa [#allocation3], 1
    %3654 = vsyncpa [#allocation8], 1
    %3655 = vsyncpa [#allocation11], 1
    %3656 = vsyncpa [#allocation14], 1
    %3657 = vsyncpa [#allocation17], 1
    %3658 = vsyncpa [#allocation4], 1
    %3659 = vsyncpa [#allocation5], 1

</llo_original>
